<compile_context>
chip_gen: v7x
topology: tpu7x:2x2x1
jax: 0.10.0
libtpu: 0.0.40
codegen_flags: <defaults>
</compile_context>

<pallas_src>
import functools

import jax
import jax.numpy as jnp
import numpy as np
from jax.experimental import pallas as pl
from jax.experimental.pallas import tpu as pltpu


def _cdiv(a: int, b: int) -> int:
    return -(-a // b)


def _linear_upsample_matrix_np(in_size: int) -> np.ndarray:
    """(2*in_size, in_size) matrix M so that (M @ v) reproduces
    torch.nn.functional.interpolate(v, scale_factor=2, mode='linear',
    align_corners=False) along one axis (half-pixel centers, edge clamp)."""
    out_size = 2 * in_size
    o = np.arange(out_size, dtype=np.float64)
    src = np.maximum(0.5 * (o + 0.5) - 0.5, 0.0)
    i0 = np.floor(src).astype(np.int64)
    i1 = np.minimum(i0 + 1, in_size - 1)
    frac = src - i0
    m = np.zeros((out_size, in_size), np.float32)
    rows = np.arange(out_size)
    np.add.at(m, (rows, i0), (1.0 - frac).astype(np.float32))
    np.add.at(m, (rows, i1), frac.astype(np.float32))
    return m


def _upsample_kernel(x_ref, mh_ref, mwt_ref, o_ref, *,
                     can_upsample_d: bool, split_activations: bool):
    # x_ref:   (B, D, H, W)       batch of (n, c) volumes
    # mh_ref:  (2H, H)            linear-interp matrix along H (bf16, exact weights)
    # mwt_ref: (W, 2W)            linear-interp matrix along W, transposed (bf16)
    # o_ref:   (B, D, 2*2H*2W)    if can_upsample_d else (B, D, 2H*2W)   lane-dense rows
    b, d, h, w = x_ref.shape
    ho, wo = 2 * h, 2 * w
    s = ho * wo
    bd = b * d

    mh = mh_ref[...]                                        # (2H, H)
    mwt = mwt_ref[...]                                      # (W, 2W)

    x = x_ref[...].reshape(bd * h, w)                       # free (leading-dim merge)

    # --- W pass: (B*D*H, W) @ (W, 2W) on the MXU, contraction on the lane dim ---------
    if split_activations:
        x32 = x.astype(jnp.float32)
        x_hi = x32.astype(jnp.bfloat16)
        x_lo = (x32 - x_hi.astype(jnp.float32)).astype(jnp.bfloat16)
        yw = (jnp.dot(x_hi, mwt, preferred_element_type=jnp.float32)
              + jnp.dot(x_lo, mwt, preferred_element_type=jnp.float32))
    else:
        yw = jnp.dot(x, mwt, preferred_element_type=jnp.float32)
    yw = yw.reshape(bd, h, wo)                              # f32, free (leading split)

    # --- H pass: batched (2H, H) @ (H, 2W) per slab; no transposes, interleave encoded
    #     in the matrix --------------------------------------------------------------
    mh_b = jnp.broadcast_to(mh[None], (bd, ho, h))
    if split_activations:
        yw_hi = yw.astype(jnp.bfloat16)
        yw_lo = (yw - yw_hi.astype(jnp.float32)).astype(jnp.bfloat16)
        yh = (jnp.einsum("boh,bhw->bow", mh_b, yw_hi,
                         preferred_element_type=jnp.float32)
              + jnp.einsum("boh,bhw->bow", mh_b, yw_lo,
                           preferred_element_type=jnp.float32))
    else:
        yh = jnp.einsum("boh,bhw->bow", mh_b, yw.astype(mh.dtype),
                        preferred_element_type=jnp.float32)  # (bd, 2H, 2W) f32

    # Flatten (2H, 2W) into a single lane-dense row per (n, c, d) slab.
    yflat = yh.reshape(b, d, s)                             # (B, D, 2H*2W) f32

    if not can_upsample_d:
        o_ref[...] = yflat.astype(o_ref.dtype)
        return

    if d == 1:                                              # duplicate the single slab
        dup = yflat.astype(o_ref.dtype)
        o_ref[:, :, :s] = dup
        o_ref[:, :, s:] = dup
        return

    # --- D pass: 2-tap half-pixel blend on dense rows; boundary slabs degenerate to
    #     identity.  even -> out[2k], odd -> out[2k+1], stored directly to lane slices.
    even = jnp.concatenate(
        [yflat[:, :1], 0.75 * yflat[:, 1:] + 0.25 * yflat[:, :-1]], axis=1)
    odd = jnp.concatenate(
        [0.75 * yflat[:, :-1] + 0.25 * yflat[:, 1:], yflat[:, -1:]], axis=1)
    o_ref[:, :, :s] = even.astype(o_ref.dtype)
    o_ref[:, :, s:] = odd.astype(o_ref.dtype)


def _padded_bytes(shape, itemsize: int) -> int:
    """VMEM footprint of an array, accounting for (sublane, 128)-tile padding."""
    shape = tuple(int(v) for v in shape)
    if len(shape) == 1:
        shape = (1,) + shape
    sub_mult = {4: 8, 2: 16, 1: 32}.get(itemsize, 8)
    lanes = _cdiv(shape[-1], 128) * 128
    subs = _cdiv(shape[-2], sub_mult) * sub_mult
    lead = 1
    for v in shape[:-2]:
        lead *= v
    return lead * subs * lanes * itemsize


def _block_vmem_bytes(b, d, h, w, can_d, itemsize, split) -> int:
    """Padding-aware per-grid-step VMEM estimate (pipeline buffers + intermediates)."""
    ho, wo = 2 * h, 2 * w
    s = ho * wo
    out_last = (2 if can_d else 1) * s
    bd = b * d
    wisz = 2  # bf16 weights
    total = 0
    total += 2 * _padded_bytes((b, d, h, w), itemsize)        # input double buffer
    total += 2 * _padded_bytes((b, d, out_last), itemsize)    # output double buffer
    total += 2 * (_padded_bytes((ho, h), wisz) + _padded_bytes((w, wo), wisz))
    total += _padded_bytes((bd * h, w), 4)                    # x in f32
    total += _padded_bytes((bd * h, wo), 4)                   # yw f32
    total += _padded_bytes((bd, ho, h), wisz)                 # broadcast mh
    total += _padded_bytes((bd, ho, wo), 4)                   # yh f32
    total += _padded_bytes((b, d, s), 4)                      # flattened rows
    if split:
        total += 2 * _padded_bytes((bd * h, w), 2)            # x hi/lo (bf16)
        total += 2 * _padded_bytes((bd, h, wo), 2)            # yw hi/lo (bf16)
    if can_d and d > 1:
        total += 2 * _padded_bytes((b, d, s), 4)              # even / odd
    return total


def _vmem_limits():
    """Generation-aware (v5e/v6e: 128 MiB, v7x: 64 MiB) VMEM limit and block budget."""
    cap = 128 * 1024 * 1024
    try:
        cap = int(getattr(pltpu.get_tpu_info(), "vmem_capacity_bytes", cap))
    except Exception:
        pass
    limit = max(16 * 1024 * 1024,
                min(cap - 16 * 1024 * 1024, int(cap * 0.75)))
    budget = int(limit * 0.6)
    return budget, limit


def _multi_tensorcore() -> bool:
    """True on parts with >1 TensorCore per chip (where 'parallel' grid sharding pays)."""
    try:
        kind = jax.devices()[0].device_kind.lower()
    except Exception:
        return False
    return any(tag in kind for tag in ("v7", "v4", "v5p"))


def _pick_block_batch(nc, d, h, w, can_d, itemsize, split, budget, prefer_even) -> int:
    """Largest divisor of nc whose padded per-step footprint fits the budget; on
    multi-TC parts prefer an even grid length so both TensorCores get work."""
    fits = [b for b in range(1, nc + 1)
            if nc % b == 0
            and b * d <= 256  # bound the unrolled batched H-matmul / code size
            and _block_vmem_bytes(b, d, h, w, can_d, itemsize, split) <= budget]
    if not fits:
        # TODO(synk): for volumes whose single-(n,c) footprint exceeds the budget, add a
        # D grid axis with a 1-slab halo instead of collapsing to bsz=1.
        return 1
    if prefer_even:
        even = [b for b in fits if (nc // b) % 2 == 0]
        if even:
            return max(even)
    return max(fits)


def adaptive_interpolation_upsample(x, *, num_downsamples: int,
                                    can_upsample_d: bool = True):
    """x: (N, C, D, H, W). Returns (trilinearly upsampled x, num_downsamples - 1)."""
    n, c, d, h, w = x.shape
    ho, wo = 2 * h, 2 * w
    s = ho * wo
    do = 2 * d if can_upsample_d else d
    nc = n * c

    # bf16 inputs: single MXU pass; f32/f16 inputs: bf16 hi+lo activation split
    # (weights 0.25/0.75/1.0 are exact in bf16), f32 accumulation.
    split = x.dtype != jnp.dtype(jnp.bfloat16)

    mh = jnp.asarray(_linear_upsample_matrix_np(h), dtype=jnp.bfloat16)        # (2H, H)
    mwt = jnp.asarray(_linear_upsample_matrix_np(w).T, dtype=jnp.bfloat16)     # (W, 2W)

    budget, vmem_limit = _vmem_limits()
    bsz = _pick_block_batch(nc, d, h, w, can_upsample_d, x.dtype.itemsize, split,
                            budget, prefer_even=_multi_tensorcore())
    assert nc % bsz == 0

    out_last = (2 if can_upsample_d else 1) * s
    xf = x.reshape(nc, d, h, w)

    kernel = functools.partial(
        _upsample_kernel,
        can_upsample_d=can_upsample_d,
        split_activations=split,
    )

    out = pl.pallas_call(
        kernel,
        out_shape=jax.ShapeDtypeStruct((nc, d, out_last), x.dtype),
        grid_spec=pltpu.PrefetchScalarGridSpec(
            num_scalar_prefetch=0,
            grid=(nc // bsz,),
            in_specs=[
                pl.BlockSpec((bsz, d, h, w), lambda i: (i, 0, 0, 0)),
                pl.BlockSpec((2 * h, h), lambda i: (0, 0)),
                pl.BlockSpec((w, 2 * w), lambda i: (0, 0)),
            ],
            out_specs=pl.BlockSpec((bsz, d, out_last), lambda i: (i, 0, 0)),
        ),
        compiler_params=pltpu.CompilerParams(
            dimension_semantics=("parallel",),
            vmem_limit_bytes=int(vmem_limit),
        ),
    )(xf, mh, mwt)

    # (nc, d, [2*]ho*wo) rows are exactly the row-major layout of (n, c, do, ho, wo).
    y = out.reshape(n, c, do, ho, wo)
    # TODO(synk): SpatialTensor carries aniso_d / num_downsamples metadata; forward()
    # only does x.num_downsamples -= 1, which is plain Python bookkeeping here.
    return y, num_downsamples - 1


if __name__ == "__main__":
    key = jax.random.PRNGKey(0)
    n, c, d, h, w = 2, 4, 4, 8, 8
    x = jax.random.normal(key, (n, c, d, h, w), dtype=jnp.float32)

    # scale_factor = (2, 2, 2) path
    y, nd = adaptive_interpolation_upsample(x, num_downsamples=3, can_upsample_d=True)
    y = jax.block_until_ready(y)
    assert y.shape == (n, c, 2 * d, 2 * h, 2 * w)
    assert nd == 2

    # Pure-JAX reference: half-pixel trilinear resize == PyTorch align_corners=False.
    ref = jax.image.resize(x, (n, c, 2 * d, 2 * h, 2 * w), method="trilinear")
    np.testing.assert_allclose(np.asarray(y), np.asarray(ref), rtol=1e-4, atol=1e-4)

    # scale_factor = (1, 2, 2) path (cannot upsample depth)
    y2, _ = adaptive_interpolation_upsample(x, num_downsamples=1, can_upsample_d=False)
    y2 = jax.block_until_ready(y2)
    assert y2.shape == (n, c, d, 2 * h, 2 * w)
    ref2 = jax.image.resize(x, (n, c, d, 2 * h, 2 * w), method="trilinear")
    np.testing.assert_allclose(np.asarray(y2), np.asarray(ref2), rtol=1e-4, atol=1e-4)

    print("KERNEL_OK")
</pallas_src>

<mosaic_0001>
module attributes {stable_mosaic.version = 11 : i64} {
  func.func @_upsample_kernel(%arg0: i32, %arg1: memref<8x4x8x8xf32, #tpu.memory_space<vmem>>, %arg2: memref<16x8xbf16, #tpu.memory_space<vmem>>, %arg3: memref<8x16xbf16, #tpu.memory_space<vmem>>, %arg4: memref<8x4x512xf32, #tpu.memory_space<vmem>>) attributes {dimension_semantics = [#tpu.dimension_semantics<parallel>], iteration_bounds = array<i64: 1>, scalar_prefetch = 0 : i64, scratch_operands = 0 : i64, tpu.core_type = #tpu.core_type<tc>, window_params = [{transform_indices = @transform_0, window_bounds = array<i64: 8, 4, 8, 8>}, {pipeline_mode = #tpu.pipeline_mode<synchronous>, transform_indices = @transform_1, window_bounds = array<i64: 16, 8>}, {pipeline_mode = #tpu.pipeline_mode<synchronous>, transform_indices = @transform_2, window_bounds = array<i64: 8, 16>}, {transform_indices = @transform_3, window_bounds = array<i64: 8, 4, 512>}]} {
    %c0 = arith.constant 0 : index
    %c0_0 = arith.constant 0 : index
    %0 = vector.load %arg2[%c0, %c0_0] : memref<16x8xbf16, #tpu.memory_space<vmem>>, vector<16x8xbf16>
    %c0_1 = arith.constant 0 : index
    %c0_2 = arith.constant 0 : index
    %1 = vector.load %arg3[%c0_1, %c0_2] : memref<8x16xbf16, #tpu.memory_space<vmem>>, vector<8x16xbf16>
    %c0_3 = arith.constant 0 : index
    %c0_4 = arith.constant 0 : index
    %c0_5 = arith.constant 0 : index
    %c0_6 = arith.constant 0 : index
    %2 = vector.load %arg1[%c0_3, %c0_4, %c0_5, %c0_6] : memref<8x4x8x8xf32, #tpu.memory_space<vmem>>, vector<8x4x8x8xf32>
    %3 = vector.shape_cast %2 : vector<8x4x8x8xf32> to vector<256x8xf32>
    %4 = arith.truncf %3 : vector<256x8xf32> to vector<256x8xbf16>
    %5 = arith.extf %4 : vector<256x8xbf16> to vector<256x8xf32>
    %6 = arith.subf %3, %5 : vector<256x8xf32>
    %7 = arith.truncf %6 : vector<256x8xf32> to vector<256x8xbf16>
    %cst = arith.constant dense<0.000000e+00> : vector<256x16xf32>
    %8 = tpu.matmul %4, %1, %cst {dimension_numbers = #tpu.dot_dimension_numbers<[1], [0], [0], [1], [0, 0, 1, 1], [], []>} : vector<256x8xbf16>, vector<8x16xbf16>, vector<256x16xf32> -> vector<256x16xf32>
    %cst_7 = arith.constant dense<0.000000e+00> : vector<256x16xf32>
    %9 = tpu.matmul %7, %1, %cst_7 {dimension_numbers = #tpu.dot_dimension_numbers<[1], [0], [0], [1], [0, 0, 1, 1], [], []>} : vector<256x8xbf16>, vector<8x16xbf16>, vector<256x16xf32> -> vector<256x16xf32>
    %10 = arith.addf %8, %9 : vector<256x16xf32>
    %11 = vector.shape_cast %10 : vector<256x16xf32> to vector<32x8x16xf32>
    %12 = vector.shape_cast %0 : vector<16x8xbf16> to vector<1x16x8xbf16>
    %13 = vector.shape_cast %12 : vector<1x16x8xbf16> to vector<1x16x8xbf16>
    %14 = vector.broadcast %13 : vector<1x16x8xbf16> to vector<32x16x8xbf16>
    %15 = arith.truncf %11 : vector<32x8x16xf32> to vector<32x8x16xbf16>
    %16 = arith.extf %15 : vector<32x8x16xbf16> to vector<32x8x16xf32>
    %17 = arith.subf %11, %16 : vector<32x8x16xf32>
    %18 = arith.truncf %17 : vector<32x8x16xf32> to vector<32x8x16xbf16>
    "tpu.trace_start"() <{level = 10 : i32, message = "boh,bhw->bow"}> : () -> ()
    %cst_8 = arith.constant dense<0.000000e+00> : vector<32x16x16xf32>
    %19 = tpu.matmul %14, %15, %cst_8 {dimension_numbers = #tpu.dot_dimension_numbers<[2], [1], [1], [2], [0, 0, 0, 1, 1, 2], [0], [0]>} : vector<32x16x8xbf16>, vector<32x8x16xbf16>, vector<32x16x16xf32> -> vector<32x16x16xf32>
    %cst_9 = arith.constant dense<0.000000e+00> : vector<32x16x16xf32>
    %20 = tpu.matmul %14, %18, %cst_9 {dimension_numbers = #tpu.dot_dimension_numbers<[2], [1], [1], [2], [0, 0, 0, 1, 1, 2], [0], [0]>} : vector<32x16x8xbf16>, vector<32x8x16xbf16>, vector<32x16x16xf32> -> vector<32x16x16xf32>
    "tpu.trace_stop"() : () -> ()
    %21 = arith.addf %19, %20 : vector<32x16x16xf32>
    %22 = vector.shape_cast %21 : vector<32x16x16xf32> to vector<8x4x256xf32>
    %23 = vector.extract_strided_slice %22 {offsets = [0, 0, 0], sizes = [8, 1, 256], strides = [1, 1, 1]} : vector<8x4x256xf32> to vector<8x1x256xf32>
    %24 = vector.extract_strided_slice %22 {offsets = [0, 1, 0], sizes = [8, 3, 256], strides = [1, 1, 1]} : vector<8x4x256xf32> to vector<8x3x256xf32>
    %cst_10 = arith.constant 7.500000e-01 : f32
    %25 = vector.broadcast %cst_10 : f32 to vector<8x3x256xf32>
    %26 = arith.mulf %25, %24 : vector<8x3x256xf32>
    %27 = vector.extract_strided_slice %22 {offsets = [0, 0, 0], sizes = [8, 3, 256], strides = [1, 1, 1]} : vector<8x4x256xf32> to vector<8x3x256xf32>
    %cst_11 = arith.constant 2.500000e-01 : f32
    %28 = vector.broadcast %cst_11 : f32 to vector<8x3x256xf32>
    %29 = arith.mulf %28, %27 : vector<8x3x256xf32>
    %30 = arith.addf %26, %29 : vector<8x3x256xf32>
    %31 = tpu.concatenate %23, %30 in 1 : vector<8x1x256xf32>, vector<8x3x256xf32> -> vector<8x4x256xf32>
    %32 = vector.extract_strided_slice %22 {offsets = [0, 0, 0], sizes = [8, 3, 256], strides = [1, 1, 1]} : vector<8x4x256xf32> to vector<8x3x256xf32>
    %cst_12 = arith.constant 7.500000e-01 : f32
    %33 = vector.broadcast %cst_12 : f32 to vector<8x3x256xf32>
    %34 = arith.mulf %33, %32 : vector<8x3x256xf32>
    %35 = vector.extract_strided_slice %22 {offsets = [0, 1, 0], sizes = [8, 3, 256], strides = [1, 1, 1]} : vector<8x4x256xf32> to vector<8x3x256xf32>
    %cst_13 = arith.constant 2.500000e-01 : f32
    %36 = vector.broadcast %cst_13 : f32 to vector<8x3x256xf32>
    %37 = arith.mulf %36, %35 : vector<8x3x256xf32>
    %38 = arith.addf %34, %37 : vector<8x3x256xf32>
    %39 = vector.extract_strided_slice %22 {offsets = [0, 3, 0], sizes = [8, 1, 256], strides = [1, 1, 1]} : vector<8x4x256xf32> to vector<8x1x256xf32>
    %40 = tpu.concatenate %38, %39 in 1 : vector<8x3x256xf32>, vector<8x1x256xf32> -> vector<8x4x256xf32>
    %c0_14 = arith.constant 0 : index
    %c0_15 = arith.constant 0 : index
    %c0_16 = arith.constant 0 : index
    %41 = vector.load %arg4[%c0_14, %c0_15, %c0_16] : memref<8x4x512xf32, #tpu.memory_space<vmem>>, vector<8x4x256xf32>
    tpu.vector_store %arg4[%c0_14, %c0_15, %c0_16], %31 {strides = array<i32>} : memref<8x4x512xf32, #tpu.memory_space<vmem>>, vector<8x4x256xf32>,
    %c0_17 = arith.constant 0 : index
    %c0_18 = arith.constant 0 : index
    %c256 = arith.constant 256 : index
    %42 = vector.load %arg4[%c0_17, %c0_18, %c256] : memref<8x4x512xf32, #tpu.memory_space<vmem>>, vector<8x4x256xf32>
    tpu.vector_store %arg4[%c0_17, %c0_18, %c256], %40 {strides = array<i32>} : memref<8x4x512xf32, #tpu.memory_space<vmem>>, vector<8x4x256xf32>,
    return
  }
  func.func @transform_0(%arg0: i32) -> (i32, i32, i32, i32) {
    %c0_i32 = arith.constant 0 : i32
    %c0_i32_0 = arith.constant 0 : i32
    %c0_i32_1 = arith.constant 0 : i32
    %c0_i32_2 = arith.constant 0 : i32
    return %arg0, %c0_i32, %c0_i32_0, %c0_i32_1 : i32, i32, i32, i32
  }
  func.func @transform_1(%arg0: i32) -> (i32, i32) {
    %c0_i32 = arith.constant 0 : i32
    %c0_i32_0 = arith.constant 0 : i32
    %c0_i32_1 = arith.constant 0 : i32
    return %c0_i32, %c0_i32_0 : i32, i32
  }
  func.func @transform_2(%arg0: i32) -> (i32, i32) {
    %c0_i32 = arith.constant 0 : i32
    %c0_i32_0 = arith.constant 0 : i32
    %c0_i32_1 = arith.constant 0 : i32
    return %c0_i32, %c0_i32_0 : i32, i32
  }
  func.func @transform_3(%arg0: i32) -> (i32, i32, i32) {
    %c0_i32 = arith.constant 0 : i32
    %c0_i32_0 = arith.constant 0 : i32
    %c0_i32_1 = arith.constant 0 : i32
    return %arg0, %c0_i32, %c0_i32_0 : i32, i32, i32
  }
}

</mosaic_0001>

<llo_original>
// kernel: tpu_custom_call.1
$region0: #{tpu_custom_call.1}
  #allocation0 [shape = 'u32[]', space=smem, size = 0x4, offset = 0x4, fixed_abs, tag = 'smem constant byte address 0x4 - core index']
  #allocation1 [shape = 'u32[144,128]{1,0:T(1,128)}', space=vmem, size = 0x12000, scoped, tag = 'internal scratch']
  %s0 = inlined_call_operand.hbm [shape: f32[8,4,8,8], index: 0, kind: input, shape index: {}]
  %s1 = inlined_call_operand.hbm [shape: bf16[16,8], index: 1, kind: input, shape index: {}]
  %s2 = inlined_call_operand.hbm [shape: bf16[8,16], index: 2, kind: input, shape index: {}]
  %s3 = inlined_call_operand.hbm [shape: f32[8,4,512], index: 3, kind: output, shape index: {}]
  %s4 = sld [smem:[#allocation0]]
  $region34: #{tpu_custom_call.1} parent=0
    _
  %s6 = ssub.s32 1, %s4
  %s7 = scalar_select 0, %s6, %s4
  $region1: #{tpu_custom_call.1} parent=0
    #allocation2 [shape = 'u8[131072]{0}', space=vmem, size = 0x20000, scoped, tag = 'input window, operand 0, single buffered']
    #allocation3 [shape = 's32[1]{0}', space=sflag, size = 0x4, scoped, tag = 'scoped memory for tpu_custom_call.1']
    #allocation4 [shape = 's32[1]{0}', space=sflag, size = 0x4, scoped, tag = 'scoped memory for tpu_custom_call.1']
    #allocation5 [shape = 'u8[4096]{0}', space=vmem, size = 0x1000, scoped, tag = 'input window, operand 1, single buffered']
    #allocation6 [shape = 's32[1]{0}', space=sflag, size = 0x4, scoped, tag = 'scoped memory for tpu_custom_call.1']
    #allocation7 [shape = 'u8[2048]{0}', space=vmem, size = 0x800, scoped, tag = 'input window, operand 2, single buffered']
    #allocation8 [shape = 'u8[65536]{0}', space=vmem, size = 0x10000, scoped, tag = 'output window, operand 0, single buffered']
    %8 = vsyncpa [#allocation3], 0
    %9 = vsyncpa [#allocation6], 0
    %10 = vsyncpa [#allocation4], 0
    // Predicated region
    $region2: #{tpu_custom_call.1} parent=1 // pred_check
      _
    $region3: #{tpu_custom_call.1} parent=1 // pred_check_branch
      %12 = sbr.rel (0) target = $region5
    $region4: #{tpu_custom_call.1} parent=1 // pred_region
      %s14 = ssub.s32 4096, 4096
      %15 = vsyncadd [#allocation3], %s14
      %s16 = sshll.u32 [#allocation2], 4
      %s17 = int_to_ptr.vmem [resolvable:$true] %s16
      %22 = dma.hbm_to_vmem [thread:$0]  %s0, 4096, %s17, [#allocation3], 128, 128, 8
    $region5: #{tpu_custom_call.1} parent=1 // pred_fallthru
      _
    // Predicated region
    $region6: #{tpu_custom_call.1} parent=1 // pred_check
      _
    $region7: #{tpu_custom_call.1} parent=1 // pred_check_branch
      %24 = sbr.rel (0) target = $region9
    $region8: #{tpu_custom_call.1} parent=1 // pred_region
      %s26 = ssub.s32 128, 128
      %27 = vsyncadd [#allocation6], %s26
      %s28 = sshll.u32 [#allocation5], 4
      %s29 = int_to_ptr.vmem [resolvable:$true] %s28
      %34 = dma.hbm_to_vmem [thread:$0]  %s1, 128, %s29, [#allocation6], 64, 64, 4
    $region9: #{tpu_custom_call.1} parent=1 // pred_fallthru
      _
    // Predicated region
    $region10: #{tpu_custom_call.1} parent=1 // pred_check
      _
    $region11: #{tpu_custom_call.1} parent=1 // pred_check_branch
      %36 = sbr.rel (0) target = $region13
    $region12: #{tpu_custom_call.1} parent=1 // pred_region
      %s38 = ssub.s32 64, 64
      %39 = vsyncadd [#allocation6], %s38
      %s41 = sshll.u32 [#allocation7], 4
      %s42 = int_to_ptr.vmem [resolvable:$true] %s41
      %44 = dma.hbm_to_vmem [thread:$0]  %s2, 64, %s42, [#allocation6]
    $region13: #{tpu_custom_call.1} parent=1 // pred_fallthru
      _
    // Predicated region
    $region14: #{tpu_custom_call.1} parent=1 // pred_check
      _
    $region15: #{tpu_custom_call.1} parent=1 // pred_check_branch
      %46 = sbr.rel (0) target = $region17
    $region16: #{tpu_custom_call.1} parent=1 // pred_region
      %47 = dma.done [#allocation3], 4096
    $region17: #{tpu_custom_call.1} parent=1 // pred_fallthru
      _
    // Predicated region
    $region18: #{tpu_custom_call.1} parent=1 // pred_check
      _
    $region19: #{tpu_custom_call.1} parent=1 // pred_check_branch
      %49 = sbr.rel (0) target = $region21
    $region20: #{tpu_custom_call.1} parent=1 // pred_region
      %50 = dma.done [#allocation6], 128
    $region21: #{tpu_custom_call.1} parent=1 // pred_fallthru
      _
    // Predicated region
    $region22: #{tpu_custom_call.1} parent=1 // pred_check
      _
    $region23: #{tpu_custom_call.1} parent=1 // pred_check_branch
      %52 = sbr.rel (0) target = $region25
    $region24: #{tpu_custom_call.1} parent=1 // pred_region
      %53 = dma.done [#allocation6], 64
    $region25: #{tpu_custom_call.1} parent=1 // pred_fallthru
      _
    %v55 = vld [vmem:[#allocation5] sm:$0xf]
    %v56 = vld [vmem:[#allocation5 + $0x4] sm:$0xf]
    %v57 = vld [vmem:[#allocation7] sm:$0xf]
    %v58 = vld [vmem:[#allocation2] sm:$0xff]
    %v59 = vld [vmem:[#allocation2 + $0x8] sm:$0xff]
    %v60 = vld [vmem:[#allocation2 + $0x10] sm:$0xff]
    %v61 = vld [vmem:[#allocation2 + $0x18] sm:$0xff]
    %v62 = vld [vmem:[#allocation2 + $0x20] sm:$0xff]
    %v63 = vld [vmem:[#allocation2 + $0x28] sm:$0xff]
    %v64 = vld [vmem:[#allocation2 + $0x30] sm:$0xff]
    %v65 = vld [vmem:[#allocation2 + $0x38] sm:$0xff]
    %v66 = vld [vmem:[#allocation2 + $0x40] sm:$0xff]
    %v67 = vld [vmem:[#allocation2 + $0x48] sm:$0xff]
    %v68 = vld [vmem:[#allocation2 + $0x50] sm:$0xff]
    %v69 = vld [vmem:[#allocation2 + $0x58] sm:$0xff]
    %v70 = vld [vmem:[#allocation2 + $0x60] sm:$0xff]
    %v71 = vld [vmem:[#allocation2 + $0x68] sm:$0xff]
    %v72 = vld [vmem:[#allocation2 + $0x70] sm:$0xff]
    %v73 = vld [vmem:[#allocation2 + $0x78] sm:$0xff]
    %v74 = vld [vmem:[#allocation2 + $0x80] sm:$0xff]
    %v75 = vld [vmem:[#allocation2 + $0x88] sm:$0xff]
    %v76 = vld [vmem:[#allocation2 + $0x90] sm:$0xff]
    %v77 = vld [vmem:[#allocation2 + $0x98] sm:$0xff]
    %v78 = vld [vmem:[#allocation2 + $0xa0] sm:$0xff]
    %v79 = vld [vmem:[#allocation2 + $0xa8] sm:$0xff]
    %v80 = vld [vmem:[#allocation2 + $0xb0] sm:$0xff]
    %v81 = vld [vmem:[#allocation2 + $0xb8] sm:$0xff]
    %v82 = vld [vmem:[#allocation2 + $0xc0] sm:$0xff]
    %v83 = vld [vmem:[#allocation2 + $0xc8] sm:$0xff]
    %v84 = vld [vmem:[#allocation2 + $0xd0] sm:$0xff]
    %v85 = vld [vmem:[#allocation2 + $0xd8] sm:$0xff]
    %v86 = vld [vmem:[#allocation2 + $0xe0] sm:$0xff]
    %v87 = vld [vmem:[#allocation2 + $0xe8] sm:$0xff]
    %v88 = vld [vmem:[#allocation2 + $0xf0] sm:$0xff]
    %v89 = vld [vmem:[#allocation2 + $0xf8] sm:$0xff]
    %v90 = vpack.c.bf16 %v59, %v58
    %v91 = vpack.c.bf16 %v61, %v60
    %v92 = vpack.c.bf16 %v63, %v62
    %v93 = vpack.c.bf16 %v65, %v64
    %v94 = vpack.c.bf16 %v67, %v66
    %v95 = vpack.c.bf16 %v69, %v68
    %v96 = vpack.c.bf16 %v71, %v70
    %v97 = vpack.c.bf16 %v73, %v72
    %v98 = vpack.c.bf16 %v75, %v74
    %v99 = vpack.c.bf16 %v77, %v76
    %v100 = vpack.c.bf16 %v79, %v78
    %v101 = vpack.c.bf16 %v81, %v80
    %v102 = vpack.c.bf16 %v83, %v82
    %v103 = vpack.c.bf16 %v85, %v84
    %v104 = vpack.c.bf16 %v87, %v86
    %v105 = vpack.c.bf16 %v89, %v88
    %v106 = vunpack.c.l.bf16 %v90
    %v107 = vunpack.c.h.bf16 %v90
    %v108 = vunpack.c.l.bf16 %v91
    %v109 = vunpack.c.h.bf16 %v91
    %v110 = vunpack.c.l.bf16 %v92
    %v111 = vunpack.c.h.bf16 %v92
    %v112 = vunpack.c.l.bf16 %v93
    %v113 = vunpack.c.h.bf16 %v93
    %v114 = vunpack.c.l.bf16 %v94
    %v115 = vunpack.c.h.bf16 %v94
    %v116 = vunpack.c.l.bf16 %v95
    %v117 = vunpack.c.h.bf16 %v95
    %v118 = vunpack.c.l.bf16 %v96
    %v119 = vunpack.c.h.bf16 %v96
    %v120 = vunpack.c.l.bf16 %v97
    %v121 = vunpack.c.h.bf16 %v97
    %v122 = vunpack.c.l.bf16 %v98
    %v123 = vunpack.c.h.bf16 %v98
    %v124 = vunpack.c.l.bf16 %v99
    %v125 = vunpack.c.h.bf16 %v99
    %v126 = vunpack.c.l.bf16 %v100
    %v127 = vunpack.c.h.bf16 %v100
    %v128 = vunpack.c.l.bf16 %v101
    %v129 = vunpack.c.h.bf16 %v101
    %v130 = vunpack.c.l.bf16 %v102
    %v131 = vunpack.c.h.bf16 %v102
    %v132 = vunpack.c.l.bf16 %v103
    %v133 = vunpack.c.h.bf16 %v103
    %v134 = vunpack.c.l.bf16 %v104
    %v135 = vunpack.c.h.bf16 %v104
    %v136 = vunpack.c.l.bf16 %v105
    %v137 = vunpack.c.h.bf16 %v105
    %v138 = vsub.f32 %v58, %v106
    %v139 = vsub.f32 %v59, %v107
    %v140 = vsub.f32 %v60, %v108
    %v141 = vsub.f32 %v61, %v109
    %v142 = vsub.f32 %v62, %v110
    %v143 = vsub.f32 %v63, %v111
    %v144 = vsub.f32 %v64, %v112
    %v145 = vsub.f32 %v65, %v113
    %v146 = vsub.f32 %v66, %v114
    %v147 = vsub.f32 %v67, %v115
    %v148 = vsub.f32 %v68, %v116
    %v149 = vsub.f32 %v69, %v117
    %v150 = vsub.f32 %v70, %v118
    %v151 = vsub.f32 %v71, %v119
    %v152 = vsub.f32 %v72, %v120
    %v153 = vsub.f32 %v73, %v121
    %v154 = vsub.f32 %v74, %v122
    %v155 = vsub.f32 %v75, %v123
    %v156 = vsub.f32 %v76, %v124
    %v157 = vsub.f32 %v77, %v125
    %v158 = vsub.f32 %v78, %v126
    %v159 = vsub.f32 %v79, %v127
    %v160 = vsub.f32 %v80, %v128
    %v161 = vsub.f32 %v81, %v129
    %v162 = vsub.f32 %v82, %v130
    %v163 = vsub.f32 %v83, %v131
    %v164 = vsub.f32 %v84, %v132
    %v165 = vsub.f32 %v85, %v133
    %v166 = vsub.f32 %v86, %v134
    %v167 = vsub.f32 %v87, %v135
    %v168 = vsub.f32 %v88, %v136
    %v169 = vsub.f32 %v89, %v137
    %v170 = vpack.c.bf16 %v139, %v138
    %v171 = vpack.c.bf16 %v141, %v140
    %v172 = vpack.c.bf16 %v143, %v142
    %v173 = vpack.c.bf16 %v145, %v144
    %v174 = vpack.c.bf16 %v147, %v146
    %v175 = vpack.c.bf16 %v149, %v148
    %v176 = vpack.c.bf16 %v151, %v150
    %v177 = vpack.c.bf16 %v153, %v152
    %v178 = vpack.c.bf16 %v155, %v154
    %v179 = vpack.c.bf16 %v157, %v156
    %v180 = vpack.c.bf16 %v159, %v158
    %v181 = vpack.c.bf16 %v161, %v160
    %v182 = vpack.c.bf16 %v163, %v162
    %v183 = vpack.c.bf16 %v165, %v164
    %v184 = vpack.c.bf16 %v167, %v166
    %v185 = vpack.c.bf16 %v169, %v168
    %vm186 = vcmask 64512
    %v188 = vsel %vm186, %v170, 0
    %v191 = vsel %vm186, %v171, 0
    %v194 = vsel %vm186, %v172, 0
    %v197 = vsel %vm186, %v173, 0
    %v200 = vsel %vm186, %v174, 0
    %v203 = vsel %vm186, %v175, 0
    %v206 = vsel %vm186, %v176, 0
    %v209 = vsel %vm186, %v177, 0
    %v212 = vsel %vm186, %v178, 0
    %v215 = vsel %vm186, %v179, 0
    %v218 = vsel %vm186, %v180, 0
    %v221 = vsel %vm186, %v181, 0
    %v224 = vsel %vm186, %v182, 0
    %v227 = vsel %vm186, %v183, 0
    %v230 = vsel %vm186, %v184, 0
    %v233 = vsel %vm186, %v185, 0
    %vm235 = vcmask 1043456
    %v237 = vsel %vm235, %v57, 0
    %239 = vmatprep.subr.bf16.mxu0 0
    %240 = vmatpush1.bf16.msra.mxu0 %v237
    %241 = vmatprep.subr.bf16.mxu0 0
    %242 = vmatpush1.bf16.msra.mxu0 0
    %243 = vmatprep.subr.bf16.mxu0 0
    %244 = vmatpush1.bf16.msra.mxu0 0
    %245 = vmatprep.subr.bf16.mxu0 0
    %246 = vmatpush1.bf16.msra.mxu0 0
    %247 = vmatprep.subr.bf16.mxu0 0
    %248 = vmatpush1.bf16.msra.mxu0 0
    %249 = vmatprep.subr.bf16.mxu0 0
    %250 = vmatpush1.bf16.msra.mxu0 0
    %251 = vmatprep.subr.bf16.mxu0 0
    %252 = vmatpush1.bf16.msra.mxu0 0
    %253 = vmatprep.subr.bf16.mxu0 0
    %254 = vmatpush1.bf16.msra.mxu0 0
    %255 = vmatprep.subr.bf16.mxu0 0
    %256 = vmatpush1.bf16.msra.mxu0 0
    %257 = vmatprep.subr.bf16.mxu0 0
    %258 = vmatpush1.bf16.msra.mxu0 0
    %259 = vmatprep.subr.bf16.mxu0 0
    %260 = vmatpush1.bf16.msra.mxu0 0
    %261 = vmatprep.subr.bf16.mxu0 0
    %262 = vmatpush1.bf16.msra.mxu0 0
    %263 = vmatprep.subr.bf16.mxu0 0
    %264 = vmatpush1.bf16.msra.mxu0 0
    %265 = vmatprep.subr.bf16.mxu0 0
    %266 = vmatpush1.bf16.msra.mxu0 0
    %267 = vmatprep.subr.bf16.mxu0 0
    %268 = vmatpush1.bf16.msra.mxu0 0
    %269 = vmatprep.subr.bf16.mxu0 0
    %270 = vmatpush1.bf16.msra.mxu0 0
    %271 = vmatprep.mubr.bf16.mxu0 0
    %272 = vmatmul.mubr.bf16.gmra.mrb[0].mxu0 %v188
    %v273 = vpop.f32.mrb[0].mxu0
    %v274 = vadd.f32 0.0, %v273
    %v275 = vpop.f32.mrb[0].mxu0
    %v276 = vpop.f32.mrb[0].mxu0
    %v277 = vadd.f32 0.0, %v276
    %v278 = vpop.f32.mrb[0].mxu0
    %279 = vmatprep.mubr.bf16.mxu0 0
    %280 = vmatmul.mubr.bf16.gmra.mrb[0].mxu0 %v191
    %v281 = vpop.f32.mrb[0].mxu0
    %v282 = vadd.f32 0.0, %v281
    %v283 = vpop.f32.mrb[0].mxu0
    %v284 = vpop.f32.mrb[0].mxu0
    %v285 = vadd.f32 0.0, %v284
    %v286 = vpop.f32.mrb[0].mxu0
    %287 = vmatprep.mubr.bf16.mxu0 0
    %288 = vmatmul.mubr.bf16.gmra.mrb[0].mxu0 %v194
    %v289 = vpop.f32.mrb[0].mxu0
    %v290 = vadd.f32 0.0, %v289
    %v291 = vpop.f32.mrb[0].mxu0
    %v292 = vpop.f32.mrb[0].mxu0
    %v293 = vadd.f32 0.0, %v292
    %v294 = vpop.f32.mrb[0].mxu0
    %295 = vmatprep.mubr.bf16.mxu0 0
    %296 = vmatmul.mubr.bf16.gmra.mrb[0].mxu0 %v197
    %v297 = vpop.f32.mrb[0].mxu0
    %v298 = vadd.f32 0.0, %v297
    %v299 = vpop.f32.mrb[0].mxu0
    %v300 = vpop.f32.mrb[0].mxu0
    %v301 = vadd.f32 0.0, %v300
    %v302 = vpop.f32.mrb[0].mxu0
    %303 = vmatprep.mubr.bf16.mxu0 0
    %304 = vmatmul.mubr.bf16.gmra.mrb[0].mxu0 %v200
    %v305 = vpop.f32.mrb[0].mxu0
    %v306 = vadd.f32 0.0, %v305
    %v307 = vpop.f32.mrb[0].mxu0
    %v308 = vpop.f32.mrb[0].mxu0
    %v309 = vadd.f32 0.0, %v308
    %v310 = vpop.f32.mrb[0].mxu0
    %311 = vmatprep.mubr.bf16.mxu0 0
    %312 = vmatmul.mubr.bf16.gmra.mrb[0].mxu0 %v203
    %v313 = vpop.f32.mrb[0].mxu0
    %v314 = vadd.f32 0.0, %v313
    %v315 = vpop.f32.mrb[0].mxu0
    %v316 = vpop.f32.mrb[0].mxu0
    %v317 = vadd.f32 0.0, %v316
    %v318 = vpop.f32.mrb[0].mxu0
    %319 = vmatprep.mubr.bf16.mxu0 0
    %320 = vmatmul.mubr.bf16.gmra.mrb[0].mxu0 %v206
    %v321 = vpop.f32.mrb[0].mxu0
    %v322 = vadd.f32 0.0, %v321
    %v323 = vpop.f32.mrb[0].mxu0
    %v324 = vpop.f32.mrb[0].mxu0
    %v325 = vadd.f32 0.0, %v324
    %v326 = vpop.f32.mrb[0].mxu0
    %327 = vmatprep.mubr.bf16.mxu0 0
    %328 = vmatmul.mubr.bf16.gmra.mrb[0].mxu0 %v209
    %v329 = vpop.f32.mrb[0].mxu0
    %v330 = vadd.f32 0.0, %v329
    %v331 = vpop.f32.mrb[0].mxu0
    %v332 = vpop.f32.mrb[0].mxu0
    %v333 = vadd.f32 0.0, %v332
    %v334 = vpop.f32.mrb[0].mxu0
    %335 = vmatprep.mubr.bf16.mxu0 0
    %336 = vmatmul.mubr.bf16.gmra.mrb[0].mxu0 %v212
    %v337 = vpop.f32.mrb[0].mxu0
    %v338 = vadd.f32 0.0, %v337
    %v339 = vpop.f32.mrb[0].mxu0
    %v340 = vpop.f32.mrb[0].mxu0
    %v341 = vadd.f32 0.0, %v340
    %v342 = vpop.f32.mrb[0].mxu0
    %343 = vmatprep.mubr.bf16.mxu0 0
    %344 = vmatmul.mubr.bf16.gmra.mrb[0].mxu0 %v215
    %v345 = vpop.f32.mrb[0].mxu0
    %v346 = vadd.f32 0.0, %v345
    %v347 = vpop.f32.mrb[0].mxu0
    %v348 = vpop.f32.mrb[0].mxu0
    %v349 = vadd.f32 0.0, %v348
    %v350 = vpop.f32.mrb[0].mxu0
    %351 = vmatprep.mubr.bf16.mxu0 0
    %352 = vmatmul.mubr.bf16.gmra.mrb[0].mxu0 %v218
    %v353 = vpop.f32.mrb[0].mxu0
    %v354 = vadd.f32 0.0, %v353
    %v355 = vpop.f32.mrb[0].mxu0
    %v356 = vpop.f32.mrb[0].mxu0
    %v357 = vadd.f32 0.0, %v356
    %v358 = vpop.f32.mrb[0].mxu0
    %359 = vmatprep.mubr.bf16.mxu0 0
    %360 = vmatmul.mubr.bf16.gmra.mrb[0].mxu0 %v221
    %v361 = vpop.f32.mrb[0].mxu0
    %v362 = vadd.f32 0.0, %v361
    %v363 = vpop.f32.mrb[0].mxu0
    %v364 = vpop.f32.mrb[0].mxu0
    %v365 = vadd.f32 0.0, %v364
    %v366 = vpop.f32.mrb[0].mxu0
    %367 = vmatprep.mubr.bf16.mxu0 0
    %368 = vmatmul.mubr.bf16.gmra.mrb[0].mxu0 %v224
    %v369 = vpop.f32.mrb[0].mxu0
    %v370 = vadd.f32 0.0, %v369
    %v371 = vpop.f32.mrb[0].mxu0
    %v372 = vpop.f32.mrb[0].mxu0
    %v373 = vadd.f32 0.0, %v372
    %v374 = vpop.f32.mrb[0].mxu0
    %375 = vmatprep.mubr.bf16.mxu0 0
    %376 = vmatmul.mubr.bf16.gmra.mrb[0].mxu0 %v227
    %v377 = vpop.f32.mrb[0].mxu0
    %v378 = vadd.f32 0.0, %v377
    %v379 = vpop.f32.mrb[0].mxu0
    %v380 = vpop.f32.mrb[0].mxu0
    %v381 = vadd.f32 0.0, %v380
    %v382 = vpop.f32.mrb[0].mxu0
    %383 = vmatprep.mubr.bf16.mxu0 0
    %384 = vmatmul.mubr.bf16.gmra.mrb[0].mxu0 %v230
    %v385 = vpop.f32.mrb[0].mxu0
    %v386 = vadd.f32 0.0, %v385
    %v387 = vpop.f32.mrb[0].mxu0
    %v388 = vpop.f32.mrb[0].mxu0
    %v389 = vadd.f32 0.0, %v388
    %v390 = vpop.f32.mrb[0].mxu0
    %391 = vmatprep.mubr.bf16.mxu0 0
    %392 = vmatmul.mubr.bf16.gmra.mrb[0].mxu0 %v233
    %v393 = vpop.f32.mrb[0].mxu0
    %v394 = vadd.f32 0.0, %v393
    %v395 = vpop.f32.mrb[0].mxu0
    %v396 = vpop.f32.mrb[0].mxu0
    %v397 = vadd.f32 0.0, %v396
    %v398 = vpop.f32.mrb[0].mxu0
    %399 = vdwg.mxu0
    %v401 = vsel %vm186, %v90, 0
    %v404 = vsel %vm186, %v91, 0
    %v407 = vsel %vm186, %v92, 0
    %v410 = vsel %vm186, %v93, 0
    %v413 = vsel %vm186, %v94, 0
    %v416 = vsel %vm186, %v95, 0
    %v419 = vsel %vm186, %v96, 0
    %v422 = vsel %vm186, %v97, 0
    %v425 = vsel %vm186, %v98, 0
    %v428 = vsel %vm186, %v99, 0
    %v431 = vsel %vm186, %v100, 0
    %v434 = vsel %vm186, %v101, 0
    %v437 = vsel %vm186, %v102, 0
    %v440 = vsel %vm186, %v103, 0
    %v443 = vsel %vm186, %v104, 0
    %v446 = vsel %vm186, %v105, 0
    %448 = vmatprep.subr.bf16.mxu0 0
    %449 = vmatpush1.bf16.msra.mxu0 %v237
    %450 = vmatprep.subr.bf16.mxu0 0
    %451 = vmatpush1.bf16.msra.mxu0 0
    %452 = vmatprep.subr.bf16.mxu0 0
    %453 = vmatpush1.bf16.msra.mxu0 0
    %454 = vmatprep.subr.bf16.mxu0 0
    %455 = vmatpush1.bf16.msra.mxu0 0
    %456 = vmatprep.subr.bf16.mxu0 0
    %457 = vmatpush1.bf16.msra.mxu0 0
    %458 = vmatprep.subr.bf16.mxu0 0
    %459 = vmatpush1.bf16.msra.mxu0 0
    %460 = vmatprep.subr.bf16.mxu0 0
    %461 = vmatpush1.bf16.msra.mxu0 0
    %462 = vmatprep.subr.bf16.mxu0 0
    %463 = vmatpush1.bf16.msra.mxu0 0
    %464 = vmatprep.subr.bf16.mxu0 0
    %465 = vmatpush1.bf16.msra.mxu0 0
    %466 = vmatprep.subr.bf16.mxu0 0
    %467 = vmatpush1.bf16.msra.mxu0 0
    %468 = vmatprep.subr.bf16.mxu0 0
    %469 = vmatpush1.bf16.msra.mxu0 0
    %470 = vmatprep.subr.bf16.mxu0 0
    %471 = vmatpush1.bf16.msra.mxu0 0
    %472 = vmatprep.subr.bf16.mxu0 0
    %473 = vmatpush1.bf16.msra.mxu0 0
    %474 = vmatprep.subr.bf16.mxu0 0
    %475 = vmatpush1.bf16.msra.mxu0 0
    %476 = vmatprep.subr.bf16.mxu0 0
    %477 = vmatpush1.bf16.msra.mxu0 0
    %478 = vmatprep.subr.bf16.mxu0 0
    %479 = vmatpush1.bf16.msra.mxu0 0
    %480 = vmatprep.mubr.bf16.mxu0 0
    %481 = vmatmul.mubr.bf16.gmra.mrb[0].mxu0 %v401
    %v482 = vpop.f32.mrb[0].mxu0
    %v483 = vadd.f32 %v274, %v482
    %v484 = vpop.f32.mrb[0].mxu0
    %v485 = vpop.f32.mrb[0].mxu0
    %v486 = vadd.f32 %v277, %v485
    %v487 = vpop.f32.mrb[0].mxu0
    %488 = vmatprep.mubr.bf16.mxu0 0
    %489 = vmatmul.mubr.bf16.gmra.mrb[0].mxu0 %v404
    %v490 = vpop.f32.mrb[0].mxu0
    %v491 = vadd.f32 %v282, %v490
    %v492 = vpop.f32.mrb[0].mxu0
    %v493 = vpop.f32.mrb[0].mxu0
    %v494 = vadd.f32 %v285, %v493
    %v495 = vpop.f32.mrb[0].mxu0
    %496 = vmatprep.mubr.bf16.mxu0 0
    %497 = vmatmul.mubr.bf16.gmra.mrb[0].mxu0 %v407
    %v498 = vpop.f32.mrb[0].mxu0
    %v499 = vadd.f32 %v290, %v498
    %v500 = vpop.f32.mrb[0].mxu0
    %v501 = vpop.f32.mrb[0].mxu0
    %v502 = vadd.f32 %v293, %v501
    %v503 = vpop.f32.mrb[0].mxu0
    %504 = vmatprep.mubr.bf16.mxu0 0
    %505 = vmatmul.mubr.bf16.gmra.mrb[0].mxu0 %v410
    %v506 = vpop.f32.mrb[0].mxu0
    %v507 = vadd.f32 %v298, %v506
    %v508 = vpop.f32.mrb[0].mxu0
    %v509 = vpop.f32.mrb[0].mxu0
    %v510 = vadd.f32 %v301, %v509
    %v511 = vpop.f32.mrb[0].mxu0
    %512 = vmatprep.mubr.bf16.mxu0 0
    %513 = vmatmul.mubr.bf16.gmra.mrb[0].mxu0 %v413
    %v514 = vpop.f32.mrb[0].mxu0
    %v515 = vadd.f32 %v306, %v514
    %v516 = vpop.f32.mrb[0].mxu0
    %v517 = vpop.f32.mrb[0].mxu0
    %v518 = vadd.f32 %v309, %v517
    %v519 = vpop.f32.mrb[0].mxu0
    %520 = vmatprep.mubr.bf16.mxu0 0
    %521 = vmatmul.mubr.bf16.gmra.mrb[0].mxu0 %v416
    %v522 = vpop.f32.mrb[0].mxu0
    %v523 = vadd.f32 %v314, %v522
    %v524 = vpop.f32.mrb[0].mxu0
    %v525 = vpop.f32.mrb[0].mxu0
    %v526 = vadd.f32 %v317, %v525
    %v527 = vpop.f32.mrb[0].mxu0
    %528 = vmatprep.mubr.bf16.mxu0 0
    %529 = vmatmul.mubr.bf16.gmra.mrb[0].mxu0 %v419
    %v530 = vpop.f32.mrb[0].mxu0
    %v531 = vadd.f32 %v322, %v530
    %v532 = vpop.f32.mrb[0].mxu0
    %v533 = vpop.f32.mrb[0].mxu0
    %v534 = vadd.f32 %v325, %v533
    %v535 = vpop.f32.mrb[0].mxu0
    %536 = vmatprep.mubr.bf16.mxu0 0
    %537 = vmatmul.mubr.bf16.gmra.mrb[0].mxu0 %v422
    %v538 = vpop.f32.mrb[0].mxu0
    %v539 = vadd.f32 %v330, %v538
    %v540 = vpop.f32.mrb[0].mxu0
    %v541 = vpop.f32.mrb[0].mxu0
    %v542 = vadd.f32 %v333, %v541
    %v543 = vpop.f32.mrb[0].mxu0
    %544 = vmatprep.mubr.bf16.mxu0 0
    %545 = vmatmul.mubr.bf16.gmra.mrb[0].mxu0 %v425
    %v546 = vpop.f32.mrb[0].mxu0
    %v547 = vadd.f32 %v338, %v546
    %v548 = vpop.f32.mrb[0].mxu0
    %v549 = vpop.f32.mrb[0].mxu0
    %v550 = vadd.f32 %v341, %v549
    %v551 = vpop.f32.mrb[0].mxu0
    %552 = vmatprep.mubr.bf16.mxu0 0
    %553 = vmatmul.mubr.bf16.gmra.mrb[0].mxu0 %v428
    %v554 = vpop.f32.mrb[0].mxu0
    %v555 = vadd.f32 %v346, %v554
    %v556 = vpop.f32.mrb[0].mxu0
    %v557 = vpop.f32.mrb[0].mxu0
    %v558 = vadd.f32 %v349, %v557
    %v559 = vpop.f32.mrb[0].mxu0
    %560 = vmatprep.mubr.bf16.mxu0 0
    %561 = vmatmul.mubr.bf16.gmra.mrb[0].mxu0 %v431
    %v562 = vpop.f32.mrb[0].mxu0
    %v563 = vadd.f32 %v354, %v562
    %v564 = vpop.f32.mrb[0].mxu0
    %v565 = vpop.f32.mrb[0].mxu0
    %v566 = vadd.f32 %v357, %v565
    %v567 = vpop.f32.mrb[0].mxu0
    %568 = vmatprep.mubr.bf16.mxu0 0
    %569 = vmatmul.mubr.bf16.gmra.mrb[0].mxu0 %v434
    %v570 = vpop.f32.mrb[0].mxu0
    %v571 = vadd.f32 %v362, %v570
    %v572 = vpop.f32.mrb[0].mxu0
    %v573 = vpop.f32.mrb[0].mxu0
    %v574 = vadd.f32 %v365, %v573
    %v575 = vpop.f32.mrb[0].mxu0
    %576 = vmatprep.mubr.bf16.mxu0 0
    %577 = vmatmul.mubr.bf16.gmra.mrb[0].mxu0 %v437
    %v578 = vpop.f32.mrb[0].mxu0
    %v579 = vadd.f32 %v370, %v578
    %v580 = vpop.f32.mrb[0].mxu0
    %v581 = vpop.f32.mrb[0].mxu0
    %v582 = vadd.f32 %v373, %v581
    %v583 = vpop.f32.mrb[0].mxu0
    %584 = vmatprep.mubr.bf16.mxu0 0
    %585 = vmatmul.mubr.bf16.gmra.mrb[0].mxu0 %v440
    %v586 = vpop.f32.mrb[0].mxu0
    %v587 = vadd.f32 %v378, %v586
    %v588 = vpop.f32.mrb[0].mxu0
    %v589 = vpop.f32.mrb[0].mxu0
    %v590 = vadd.f32 %v381, %v589
    %v591 = vpop.f32.mrb[0].mxu0
    %592 = vmatprep.mubr.bf16.mxu0 0
    %593 = vmatmul.mubr.bf16.gmra.mrb[0].mxu0 %v443
    %v594 = vpop.f32.mrb[0].mxu0
    %v595 = vadd.f32 %v386, %v594
    %v596 = vpop.f32.mrb[0].mxu0
    %v597 = vpop.f32.mrb[0].mxu0
    %v598 = vadd.f32 %v389, %v597
    %v599 = vpop.f32.mrb[0].mxu0
    %600 = vmatprep.mubr.bf16.mxu0 0
    %601 = vmatmul.mubr.bf16.gmra.mrb[0].mxu0 %v446
    %v602 = vpop.f32.mrb[0].mxu0
    %v603 = vadd.f32 %v394, %v602
    %v604 = vpop.f32.mrb[0].mxu0
    %v605 = vpop.f32.mrb[0].mxu0
    %v606 = vadd.f32 %v397, %v605
    %v607 = vpop.f32.mrb[0].mxu0
    %608 = vdwg.mxu0
    %v609 = vpack.c.bf16 %v483, %v483
    %v610 = vpack.c.bf16 %v486, %v486
    %v611 = vpack.c.bf16 %v491, %v491
    %v612 = vpack.c.bf16 %v494, %v494
    %v613 = vpack.c.bf16 %v499, %v499
    %v614 = vpack.c.bf16 %v502, %v502
    %v615 = vpack.c.bf16 %v507, %v507
    %v616 = vpack.c.bf16 %v510, %v510
    %v617 = vpack.c.bf16 %v515, %v515
    %v618 = vpack.c.bf16 %v518, %v518
    %v619 = vpack.c.bf16 %v523, %v523
    %v620 = vpack.c.bf16 %v526, %v526
    %v621 = vpack.c.bf16 %v531, %v531
    %v622 = vpack.c.bf16 %v534, %v534
    %v623 = vpack.c.bf16 %v539, %v539
    %v624 = vpack.c.bf16 %v542, %v542
    %v625 = vpack.c.bf16 %v547, %v547
    %v626 = vpack.c.bf16 %v550, %v550
    %v627 = vpack.c.bf16 %v555, %v555
    %v628 = vpack.c.bf16 %v558, %v558
    %v629 = vpack.c.bf16 %v563, %v563
    %v630 = vpack.c.bf16 %v566, %v566
    %v631 = vpack.c.bf16 %v571, %v571
    %v632 = vpack.c.bf16 %v574, %v574
    %v633 = vpack.c.bf16 %v579, %v579
    %v634 = vpack.c.bf16 %v582, %v582
    %v635 = vpack.c.bf16 %v587, %v587
    %v636 = vpack.c.bf16 %v590, %v590
    %v637 = vpack.c.bf16 %v595, %v595
    %v638 = vpack.c.bf16 %v598, %v598
    %v639 = vpack.c.bf16 %v603, %v603
    %v640 = vpack.c.bf16 %v606, %v606
    %v641 = vunpack.c.l.bf16 %v609
    %v642 = vunpack.c.l.bf16 %v610
    %v643 = vunpack.c.l.bf16 %v611
    %v644 = vunpack.c.l.bf16 %v612
    %v645 = vunpack.c.l.bf16 %v613
    %v646 = vunpack.c.l.bf16 %v614
    %v647 = vunpack.c.l.bf16 %v615
    %v648 = vunpack.c.l.bf16 %v616
    %v649 = vunpack.c.l.bf16 %v617
    %v650 = vunpack.c.l.bf16 %v618
    %v651 = vunpack.c.l.bf16 %v619
    %v652 = vunpack.c.l.bf16 %v620
    %v653 = vunpack.c.l.bf16 %v621
    %v654 = vunpack.c.l.bf16 %v622
    %v655 = vunpack.c.l.bf16 %v623
    %v656 = vunpack.c.l.bf16 %v624
    %v657 = vunpack.c.l.bf16 %v625
    %v658 = vunpack.c.l.bf16 %v626
    %v659 = vunpack.c.l.bf16 %v627
    %v660 = vunpack.c.l.bf16 %v628
    %v661 = vunpack.c.l.bf16 %v629
    %v662 = vunpack.c.l.bf16 %v630
    %v663 = vunpack.c.l.bf16 %v631
    %v664 = vunpack.c.l.bf16 %v632
    %v665 = vunpack.c.l.bf16 %v633
    %v666 = vunpack.c.l.bf16 %v634
    %v667 = vunpack.c.l.bf16 %v635
    %v668 = vunpack.c.l.bf16 %v636
    %v669 = vunpack.c.l.bf16 %v637
    %v670 = vunpack.c.l.bf16 %v638
    %v671 = vunpack.c.l.bf16 %v639
    %v672 = vunpack.c.l.bf16 %v640
    %v673 = vsub.f32 %v483, %v641
    %v674 = vsub.f32 %v486, %v642
    %v675 = vsub.f32 %v491, %v643
    %v676 = vsub.f32 %v494, %v644
    %v677 = vsub.f32 %v499, %v645
    %v678 = vsub.f32 %v502, %v646
    %v679 = vsub.f32 %v507, %v647
    %v680 = vsub.f32 %v510, %v648
    %v681 = vsub.f32 %v515, %v649
    %v682 = vsub.f32 %v518, %v650
    %v683 = vsub.f32 %v523, %v651
    %v684 = vsub.f32 %v526, %v652
    %v685 = vsub.f32 %v531, %v653
    %v686 = vsub.f32 %v534, %v654
    %v687 = vsub.f32 %v539, %v655
    %v688 = vsub.f32 %v542, %v656
    %v689 = vsub.f32 %v547, %v657
    %v690 = vsub.f32 %v550, %v658
    %v691 = vsub.f32 %v555, %v659
    %v692 = vsub.f32 %v558, %v660
    %v693 = vsub.f32 %v563, %v661
    %v694 = vsub.f32 %v566, %v662
    %v695 = vsub.f32 %v571, %v663
    %v696 = vsub.f32 %v574, %v664
    %v697 = vsub.f32 %v579, %v665
    %v698 = vsub.f32 %v582, %v666
    %v699 = vsub.f32 %v587, %v667
    %v700 = vsub.f32 %v590, %v668
    %v701 = vsub.f32 %v595, %v669
    %v702 = vsub.f32 %v598, %v670
    %v703 = vsub.f32 %v603, %v671
    %v704 = vsub.f32 %v606, %v672
    %v705 = vpack.c.bf16 %v673, %v673
    %v706 = vpack.c.bf16 %v674, %v674
    %v707 = vpack.c.bf16 %v675, %v675
    %v708 = vpack.c.bf16 %v676, %v676
    %v709 = vpack.c.bf16 %v677, %v677
    %v710 = vpack.c.bf16 %v678, %v678
    %v711 = vpack.c.bf16 %v679, %v679
    %v712 = vpack.c.bf16 %v680, %v680
    %v713 = vpack.c.bf16 %v681, %v681
    %v714 = vpack.c.bf16 %v682, %v682
    %v715 = vpack.c.bf16 %v683, %v683
    %v716 = vpack.c.bf16 %v684, %v684
    %v717 = vpack.c.bf16 %v685, %v685
    %v718 = vpack.c.bf16 %v686, %v686
    %v719 = vpack.c.bf16 %v687, %v687
    %v720 = vpack.c.bf16 %v688, %v688
    %v721 = vpack.c.bf16 %v689, %v689
    %v722 = vpack.c.bf16 %v690, %v690
    %v723 = vpack.c.bf16 %v691, %v691
    %v724 = vpack.c.bf16 %v692, %v692
    %v725 = vpack.c.bf16 %v693, %v693
    %v726 = vpack.c.bf16 %v694, %v694
    %v727 = vpack.c.bf16 %v695, %v695
    %v728 = vpack.c.bf16 %v696, %v696
    %v729 = vpack.c.bf16 %v697, %v697
    %v730 = vpack.c.bf16 %v698, %v698
    %v731 = vpack.c.bf16 %v699, %v699
    %v732 = vpack.c.bf16 %v700, %v700
    %v733 = vpack.c.bf16 %v701, %v701
    %v734 = vpack.c.bf16 %v702, %v702
    %v735 = vpack.c.bf16 %v703, %v703
    %v736 = vpack.c.bf16 %v704, %v704
    %v739 = vunpack.c.l.b16 %v55
    %v740 = vunpack.c.l.b16 %v56
    %v741 = vpack.c.b16 %v740, %v739
    %v743 = vsel %vm186, %v741, 0
    %v746 = vsel %vm235, %v705, 0
    %748 = vmatprep.subr.bf16.mxu0 0
    %749 = vmatpush1.bf16.msra.mxu0 %v746
    %750 = vmatprep.subr.bf16.mxu0 0
    %751 = vmatpush1.bf16.msra.mxu0 0
    %752 = vmatprep.subr.bf16.mxu0 0
    %753 = vmatpush1.bf16.msra.mxu0 0
    %754 = vmatprep.subr.bf16.mxu0 0
    %755 = vmatpush1.bf16.msra.mxu0 0
    %756 = vmatprep.subr.bf16.mxu0 0
    %757 = vmatpush1.bf16.msra.mxu0 0
    %758 = vmatprep.subr.bf16.mxu0 0
    %759 = vmatpush1.bf16.msra.mxu0 0
    %760 = vmatprep.subr.bf16.mxu0 0
    %761 = vmatpush1.bf16.msra.mxu0 0
    %762 = vmatprep.subr.bf16.mxu0 0
    %763 = vmatpush1.bf16.msra.mxu0 0
    %764 = vmatprep.subr.bf16.mxu0 0
    %765 = vmatpush1.bf16.msra.mxu0 0
    %766 = vmatprep.subr.bf16.mxu0 0
    %767 = vmatpush1.bf16.msra.mxu0 0
    %768 = vmatprep.subr.bf16.mxu0 0
    %769 = vmatpush1.bf16.msra.mxu0 0
    %770 = vmatprep.subr.bf16.mxu0 0
    %771 = vmatpush1.bf16.msra.mxu0 0
    %772 = vmatprep.subr.bf16.mxu0 0
    %773 = vmatpush1.bf16.msra.mxu0 0
    %774 = vmatprep.subr.bf16.mxu0 0
    %775 = vmatpush1.bf16.msra.mxu0 0
    %776 = vmatprep.subr.bf16.mxu0 0
    %777 = vmatpush1.bf16.msra.mxu0 0
    %778 = vmatprep.subr.bf16.mxu0 0
    %779 = vmatpush1.bf16.msra.mxu0 0
    %780 = vmatprep.mubr.bf16.mxu0 0
    %781 = vmatmul.mubr.bf16.gmra.mrb[0].mxu0 %v743
    %v782 = vpop.f32.mrb[0].mxu0
    %v783 = vadd.f32 0.0, %v782
    %v784 = vpop.f32.mrb[0].mxu0
    %v785 = vpop.f32.mrb[0].mxu0
    %v786 = vadd.f32 0.0, %v785
    %v787 = vpop.f32.mrb[0].mxu0
    %788 = vdwg.mxu0
    %v790 = vsel %vm235, %v706, 0
    %792 = vmatprep.subr.bf16.mxu0 0
    %793 = vmatpush1.bf16.msra.mxu0 %v790
    %794 = vmatprep.subr.bf16.mxu0 0
    %795 = vmatpush1.bf16.msra.mxu0 0
    %796 = vmatprep.subr.bf16.mxu0 0
    %797 = vmatpush1.bf16.msra.mxu0 0
    %798 = vmatprep.subr.bf16.mxu0 0
    %799 = vmatpush1.bf16.msra.mxu0 0
    %800 = vmatprep.subr.bf16.mxu0 0
    %801 = vmatpush1.bf16.msra.mxu0 0
    %802 = vmatprep.subr.bf16.mxu0 0
    %803 = vmatpush1.bf16.msra.mxu0 0
    %804 = vmatprep.subr.bf16.mxu0 0
    %805 = vmatpush1.bf16.msra.mxu0 0
    %806 = vmatprep.subr.bf16.mxu0 0
    %807 = vmatpush1.bf16.msra.mxu0 0
    %808 = vmatprep.subr.bf16.mxu0 0
    %809 = vmatpush1.bf16.msra.mxu0 0
    %810 = vmatprep.subr.bf16.mxu0 0
    %811 = vmatpush1.bf16.msra.mxu0 0
    %812 = vmatprep.subr.bf16.mxu0 0
    %813 = vmatpush1.bf16.msra.mxu0 0
    %814 = vmatprep.subr.bf16.mxu0 0
    %815 = vmatpush1.bf16.msra.mxu0 0
    %816 = vmatprep.subr.bf16.mxu0 0
    %817 = vmatpush1.bf16.msra.mxu0 0
    %818 = vmatprep.subr.bf16.mxu0 0
    %819 = vmatpush1.bf16.msra.mxu0 0
    %820 = vmatprep.subr.bf16.mxu0 0
    %821 = vmatpush1.bf16.msra.mxu0 0
    %822 = vmatprep.subr.bf16.mxu0 0
    %823 = vmatpush1.bf16.msra.mxu0 0
    %824 = vmatprep.mubr.bf16.mxu0 0
    %825 = vmatmul.mubr.bf16.gmra.mrb[0].mxu0 %v743
    %v826 = vpop.f32.mrb[0].mxu0
    %v827 = vadd.f32 0.0, %v826
    %v828 = vpop.f32.mrb[0].mxu0
    %v829 = vpop.f32.mrb[0].mxu0
    %v830 = vadd.f32 0.0, %v829
    %v831 = vpop.f32.mrb[0].mxu0
    %832 = vdwg.mxu0
    %v834 = vsel %vm235, %v707, 0
    %836 = vmatprep.subr.bf16.mxu0 0
    %837 = vmatpush1.bf16.msra.mxu0 %v834
    %838 = vmatprep.subr.bf16.mxu0 0
    %839 = vmatpush1.bf16.msra.mxu0 0
    %840 = vmatprep.subr.bf16.mxu0 0
    %841 = vmatpush1.bf16.msra.mxu0 0
    %842 = vmatprep.subr.bf16.mxu0 0
    %843 = vmatpush1.bf16.msra.mxu0 0
    %844 = vmatprep.subr.bf16.mxu0 0
    %845 = vmatpush1.bf16.msra.mxu0 0
    %846 = vmatprep.subr.bf16.mxu0 0
    %847 = vmatpush1.bf16.msra.mxu0 0
    %848 = vmatprep.subr.bf16.mxu0 0
    %849 = vmatpush1.bf16.msra.mxu0 0
    %850 = vmatprep.subr.bf16.mxu0 0
    %851 = vmatpush1.bf16.msra.mxu0 0
    %852 = vmatprep.subr.bf16.mxu0 0
    %853 = vmatpush1.bf16.msra.mxu0 0
    %854 = vmatprep.subr.bf16.mxu0 0
    %855 = vmatpush1.bf16.msra.mxu0 0
    %856 = vmatprep.subr.bf16.mxu0 0
    %857 = vmatpush1.bf16.msra.mxu0 0
    %858 = vmatprep.subr.bf16.mxu0 0
    %859 = vmatpush1.bf16.msra.mxu0 0
    %860 = vmatprep.subr.bf16.mxu0 0
    %861 = vmatpush1.bf16.msra.mxu0 0
    %862 = vmatprep.subr.bf16.mxu0 0
    %863 = vmatpush1.bf16.msra.mxu0 0
    %864 = vmatprep.subr.bf16.mxu0 0
    %865 = vmatpush1.bf16.msra.mxu0 0
    %866 = vmatprep.subr.bf16.mxu0 0
    %867 = vmatpush1.bf16.msra.mxu0 0
    %868 = vmatprep.mubr.bf16.mxu0 0
    %869 = vmatmul.mubr.bf16.gmra.mrb[0].mxu0 %v743
    %v870 = vpop.f32.mrb[0].mxu0
    %v871 = vadd.f32 0.0, %v870
    %v872 = vpop.f32.mrb[0].mxu0
    %v873 = vpop.f32.mrb[0].mxu0
    %v874 = vadd.f32 0.0, %v873
    %v875 = vpop.f32.mrb[0].mxu0
    %876 = vdwg.mxu0
    %v878 = vsel %vm235, %v708, 0
    %880 = vmatprep.subr.bf16.mxu0 0
    %881 = vmatpush1.bf16.msra.mxu0 %v878
    %882 = vmatprep.subr.bf16.mxu0 0
    %883 = vmatpush1.bf16.msra.mxu0 0
    %884 = vmatprep.subr.bf16.mxu0 0
    %885 = vmatpush1.bf16.msra.mxu0 0
    %886 = vmatprep.subr.bf16.mxu0 0
    %887 = vmatpush1.bf16.msra.mxu0 0
    %888 = vmatprep.subr.bf16.mxu0 0
    %889 = vmatpush1.bf16.msra.mxu0 0
    %890 = vmatprep.subr.bf16.mxu0 0
    %891 = vmatpush1.bf16.msra.mxu0 0
    %892 = vmatprep.subr.bf16.mxu0 0
    %893 = vmatpush1.bf16.msra.mxu0 0
    %894 = vmatprep.subr.bf16.mxu0 0
    %895 = vmatpush1.bf16.msra.mxu0 0
    %896 = vmatprep.subr.bf16.mxu0 0
    %897 = vmatpush1.bf16.msra.mxu0 0
    %898 = vmatprep.subr.bf16.mxu0 0
    %899 = vmatpush1.bf16.msra.mxu0 0
    %900 = vmatprep.subr.bf16.mxu0 0
    %901 = vmatpush1.bf16.msra.mxu0 0
    %902 = vmatprep.subr.bf16.mxu0 0
    %903 = vmatpush1.bf16.msra.mxu0 0
    %904 = vmatprep.subr.bf16.mxu0 0
    %905 = vmatpush1.bf16.msra.mxu0 0
    %906 = vmatprep.subr.bf16.mxu0 0
    %907 = vmatpush1.bf16.msra.mxu0 0
    %908 = vmatprep.subr.bf16.mxu0 0
    %909 = vmatpush1.bf16.msra.mxu0 0
    %910 = vmatprep.subr.bf16.mxu0 0
    %911 = vmatpush1.bf16.msra.mxu0 0
    %912 = vmatprep.mubr.bf16.mxu0 0
    %913 = vmatmul.mubr.bf16.gmra.mrb[0].mxu0 %v743
    %v914 = vpop.f32.mrb[0].mxu0
    %v915 = vadd.f32 0.0, %v914
    %v916 = vpop.f32.mrb[0].mxu0
    %v917 = vpop.f32.mrb[0].mxu0
    %v918 = vadd.f32 0.0, %v917
    %v919 = vpop.f32.mrb[0].mxu0
    %920 = vdwg.mxu0
    %v922 = vsel %vm235, %v709, 0
    %924 = vmatprep.subr.bf16.mxu0 0
    %925 = vmatpush1.bf16.msra.mxu0 %v922
    %926 = vmatprep.subr.bf16.mxu0 0
    %927 = vmatpush1.bf16.msra.mxu0 0
    %928 = vmatprep.subr.bf16.mxu0 0
    %929 = vmatpush1.bf16.msra.mxu0 0
    %930 = vmatprep.subr.bf16.mxu0 0
    %931 = vmatpush1.bf16.msra.mxu0 0
    %932 = vmatprep.subr.bf16.mxu0 0
    %933 = vmatpush1.bf16.msra.mxu0 0
    %934 = vmatprep.subr.bf16.mxu0 0
    %935 = vmatpush1.bf16.msra.mxu0 0
    %936 = vmatprep.subr.bf16.mxu0 0
    %937 = vmatpush1.bf16.msra.mxu0 0
    %938 = vmatprep.subr.bf16.mxu0 0
    %939 = vmatpush1.bf16.msra.mxu0 0
    %940 = vmatprep.subr.bf16.mxu0 0
    %941 = vmatpush1.bf16.msra.mxu0 0
    %942 = vmatprep.subr.bf16.mxu0 0
    %943 = vmatpush1.bf16.msra.mxu0 0
    %944 = vmatprep.subr.bf16.mxu0 0
    %945 = vmatpush1.bf16.msra.mxu0 0
    %946 = vmatprep.subr.bf16.mxu0 0
    %947 = vmatpush1.bf16.msra.mxu0 0
    %948 = vmatprep.subr.bf16.mxu0 0
    %949 = vmatpush1.bf16.msra.mxu0 0
    %950 = vmatprep.subr.bf16.mxu0 0
    %951 = vmatpush1.bf16.msra.mxu0 0
    %952 = vmatprep.subr.bf16.mxu0 0
    %953 = vmatpush1.bf16.msra.mxu0 0
    %954 = vmatprep.subr.bf16.mxu0 0
    %955 = vmatpush1.bf16.msra.mxu0 0
    %956 = vmatprep.mubr.bf16.mxu0 0
    %957 = vmatmul.mubr.bf16.gmra.mrb[0].mxu0 %v743
    %v958 = vpop.f32.mrb[0].mxu0
    %v959 = vadd.f32 0.0, %v958
    %v960 = vpop.f32.mrb[0].mxu0
    %v961 = vpop.f32.mrb[0].mxu0
    %v962 = vadd.f32 0.0, %v961
    %v963 = vpop.f32.mrb[0].mxu0
    %964 = vdwg.mxu0
    %v966 = vsel %vm235, %v710, 0
    %968 = vmatprep.subr.bf16.mxu0 0
    %969 = vmatpush1.bf16.msra.mxu0 %v966
    %970 = vmatprep.subr.bf16.mxu0 0
    %971 = vmatpush1.bf16.msra.mxu0 0
    %972 = vmatprep.subr.bf16.mxu0 0
    %973 = vmatpush1.bf16.msra.mxu0 0
    %974 = vmatprep.subr.bf16.mxu0 0
    %975 = vmatpush1.bf16.msra.mxu0 0
    %976 = vmatprep.subr.bf16.mxu0 0
    %977 = vmatpush1.bf16.msra.mxu0 0
    %978 = vmatprep.subr.bf16.mxu0 0
    %979 = vmatpush1.bf16.msra.mxu0 0
    %980 = vmatprep.subr.bf16.mxu0 0
    %981 = vmatpush1.bf16.msra.mxu0 0
    %982 = vmatprep.subr.bf16.mxu0 0
    %983 = vmatpush1.bf16.msra.mxu0 0
    %984 = vmatprep.subr.bf16.mxu0 0
    %985 = vmatpush1.bf16.msra.mxu0 0
    %986 = vmatprep.subr.bf16.mxu0 0
    %987 = vmatpush1.bf16.msra.mxu0 0
    %988 = vmatprep.subr.bf16.mxu0 0
    %989 = vmatpush1.bf16.msra.mxu0 0
    %990 = vmatprep.subr.bf16.mxu0 0
    %991 = vmatpush1.bf16.msra.mxu0 0
    %992 = vmatprep.subr.bf16.mxu0 0
    %993 = vmatpush1.bf16.msra.mxu0 0
    %994 = vmatprep.subr.bf16.mxu0 0
    %995 = vmatpush1.bf16.msra.mxu0 0
    %996 = vmatprep.subr.bf16.mxu0 0
    %997 = vmatpush1.bf16.msra.mxu0 0
    %998 = vmatprep.subr.bf16.mxu0 0
    %999 = vmatpush1.bf16.msra.mxu0 0
    %1000 = vmatprep.mubr.bf16.mxu0 0
    %1001 = vmatmul.mubr.bf16.gmra.mrb[0].mxu0 %v743
    %v1002 = vpop.f32.mrb[0].mxu0
    %v1003 = vadd.f32 0.0, %v1002
    %v1004 = vpop.f32.mrb[0].mxu0
    %v1005 = vpop.f32.mrb[0].mxu0
    %v1006 = vadd.f32 0.0, %v1005
    %v1007 = vpop.f32.mrb[0].mxu0
    %1008 = vdwg.mxu0
    %v1010 = vsel %vm235, %v711, 0
    %1012 = vmatprep.subr.bf16.mxu0 0
    %1013 = vmatpush1.bf16.msra.mxu0 %v1010
    %1014 = vmatprep.subr.bf16.mxu0 0
    %1015 = vmatpush1.bf16.msra.mxu0 0
    %1016 = vmatprep.subr.bf16.mxu0 0
    %1017 = vmatpush1.bf16.msra.mxu0 0
    %1018 = vmatprep.subr.bf16.mxu0 0
    %1019 = vmatpush1.bf16.msra.mxu0 0
    %1020 = vmatprep.subr.bf16.mxu0 0
    %1021 = vmatpush1.bf16.msra.mxu0 0
    %1022 = vmatprep.subr.bf16.mxu0 0
    %1023 = vmatpush1.bf16.msra.mxu0 0
    %1024 = vmatprep.subr.bf16.mxu0 0
    %1025 = vmatpush1.bf16.msra.mxu0 0
    %1026 = vmatprep.subr.bf16.mxu0 0
    %1027 = vmatpush1.bf16.msra.mxu0 0
    %1028 = vmatprep.subr.bf16.mxu0 0
    %1029 = vmatpush1.bf16.msra.mxu0 0
    %1030 = vmatprep.subr.bf16.mxu0 0
    %1031 = vmatpush1.bf16.msra.mxu0 0
    %1032 = vmatprep.subr.bf16.mxu0 0
    %1033 = vmatpush1.bf16.msra.mxu0 0
    %1034 = vmatprep.subr.bf16.mxu0 0
    %1035 = vmatpush1.bf16.msra.mxu0 0
    %1036 = vmatprep.subr.bf16.mxu0 0
    %1037 = vmatpush1.bf16.msra.mxu0 0
    %1038 = vmatprep.subr.bf16.mxu0 0
    %1039 = vmatpush1.bf16.msra.mxu0 0
    %1040 = vmatprep.subr.bf16.mxu0 0
    %1041 = vmatpush1.bf16.msra.mxu0 0
    %1042 = vmatprep.subr.bf16.mxu0 0
    %1043 = vmatpush1.bf16.msra.mxu0 0
    %1044 = vmatprep.mubr.bf16.mxu0 0
    %1045 = vmatmul.mubr.bf16.gmra.mrb[0].mxu0 %v743
    %v1046 = vpop.f32.mrb[0].mxu0
    %v1047 = vadd.f32 0.0, %v1046
    %v1048 = vpop.f32.mrb[0].mxu0
    %v1049 = vpop.f32.mrb[0].mxu0
    %v1050 = vadd.f32 0.0, %v1049
    %v1051 = vpop.f32.mrb[0].mxu0
    %1052 = vdwg.mxu0
    %v1054 = vsel %vm235, %v712, 0
    %1056 = vmatprep.subr.bf16.mxu0 0
    %1057 = vmatpush1.bf16.msra.mxu0 %v1054
    %1058 = vmatprep.subr.bf16.mxu0 0
    %1059 = vmatpush1.bf16.msra.mxu0 0
    %1060 = vmatprep.subr.bf16.mxu0 0
    %1061 = vmatpush1.bf16.msra.mxu0 0
    %1062 = vmatprep.subr.bf16.mxu0 0
    %1063 = vmatpush1.bf16.msra.mxu0 0
    %1064 = vmatprep.subr.bf16.mxu0 0
    %1065 = vmatpush1.bf16.msra.mxu0 0
    %1066 = vmatprep.subr.bf16.mxu0 0
    %1067 = vmatpush1.bf16.msra.mxu0 0
    %1068 = vmatprep.subr.bf16.mxu0 0
    %1069 = vmatpush1.bf16.msra.mxu0 0
    %1070 = vmatprep.subr.bf16.mxu0 0
    %1071 = vmatpush1.bf16.msra.mxu0 0
    %1072 = vmatprep.subr.bf16.mxu0 0
    %1073 = vmatpush1.bf16.msra.mxu0 0
    %1074 = vmatprep.subr.bf16.mxu0 0
    %1075 = vmatpush1.bf16.msra.mxu0 0
    %1076 = vmatprep.subr.bf16.mxu0 0
    %1077 = vmatpush1.bf16.msra.mxu0 0
    %1078 = vmatprep.subr.bf16.mxu0 0
    %1079 = vmatpush1.bf16.msra.mxu0 0
    %1080 = vmatprep.subr.bf16.mxu0 0
    %1081 = vmatpush1.bf16.msra.mxu0 0
    %1082 = vmatprep.subr.bf16.mxu0 0
    %1083 = vmatpush1.bf16.msra.mxu0 0
    %1084 = vmatprep.subr.bf16.mxu0 0
    %1085 = vmatpush1.bf16.msra.mxu0 0
    %1086 = vmatprep.subr.bf16.mxu0 0
    %1087 = vmatpush1.bf16.msra.mxu0 0
    %1088 = vmatprep.mubr.bf16.mxu0 0
    %1089 = vmatmul.mubr.bf16.gmra.mrb[0].mxu0 %v743
    %v1090 = vpop.f32.mrb[0].mxu0
    %v1091 = vadd.f32 0.0, %v1090
    %v1092 = vpop.f32.mrb[0].mxu0
    %v1093 = vpop.f32.mrb[0].mxu0
    %v1094 = vadd.f32 0.0, %v1093
    %v1095 = vpop.f32.mrb[0].mxu0
    %1096 = vdwg.mxu0
    %v1098 = vsel %vm235, %v713, 0
    %1100 = vmatprep.subr.bf16.mxu0 0
    %1101 = vmatpush1.bf16.msra.mxu0 %v1098
    %1102 = vmatprep.subr.bf16.mxu0 0
    %1103 = vmatpush1.bf16.msra.mxu0 0
    %1104 = vmatprep.subr.bf16.mxu0 0
    %1105 = vmatpush1.bf16.msra.mxu0 0
    %1106 = vmatprep.subr.bf16.mxu0 0
    %1107 = vmatpush1.bf16.msra.mxu0 0
    %1108 = vmatprep.subr.bf16.mxu0 0
    %1109 = vmatpush1.bf16.msra.mxu0 0
    %1110 = vmatprep.subr.bf16.mxu0 0
    %1111 = vmatpush1.bf16.msra.mxu0 0
    %1112 = vmatprep.subr.bf16.mxu0 0
    %1113 = vmatpush1.bf16.msra.mxu0 0
    %1114 = vmatprep.subr.bf16.mxu0 0
    %1115 = vmatpush1.bf16.msra.mxu0 0
    %1116 = vmatprep.subr.bf16.mxu0 0
    %1117 = vmatpush1.bf16.msra.mxu0 0
    %1118 = vmatprep.subr.bf16.mxu0 0
    %1119 = vmatpush1.bf16.msra.mxu0 0
    %1120 = vmatprep.subr.bf16.mxu0 0
    %1121 = vmatpush1.bf16.msra.mxu0 0
    %1122 = vmatprep.subr.bf16.mxu0 0
    %1123 = vmatpush1.bf16.msra.mxu0 0
    %1124 = vmatprep.subr.bf16.mxu0 0
    %1125 = vmatpush1.bf16.msra.mxu0 0
    %1126 = vmatprep.subr.bf16.mxu0 0
    %1127 = vmatpush1.bf16.msra.mxu0 0
    %1128 = vmatprep.subr.bf16.mxu0 0
    %1129 = vmatpush1.bf16.msra.mxu0 0
    %1130 = vmatprep.subr.bf16.mxu0 0
    %1131 = vmatpush1.bf16.msra.mxu0 0
    %1132 = vmatprep.mubr.bf16.mxu0 0
    %1133 = vmatmul.mubr.bf16.gmra.mrb[0].mxu0 %v743
    %v1134 = vpop.f32.mrb[0].mxu0
    %v1135 = vadd.f32 0.0, %v1134
    %v1136 = vpop.f32.mrb[0].mxu0
    %v1137 = vpop.f32.mrb[0].mxu0
    %v1138 = vadd.f32 0.0, %v1137
    %v1139 = vpop.f32.mrb[0].mxu0
    %1140 = vdwg.mxu0
    %v1142 = vsel %vm235, %v714, 0
    %1144 = vmatprep.subr.bf16.mxu0 0
    %1145 = vmatpush1.bf16.msra.mxu0 %v1142
    %1146 = vmatprep.subr.bf16.mxu0 0
    %1147 = vmatpush1.bf16.msra.mxu0 0
    %1148 = vmatprep.subr.bf16.mxu0 0
    %1149 = vmatpush1.bf16.msra.mxu0 0
    %1150 = vmatprep.subr.bf16.mxu0 0
    %1151 = vmatpush1.bf16.msra.mxu0 0
    %1152 = vmatprep.subr.bf16.mxu0 0
    %1153 = vmatpush1.bf16.msra.mxu0 0
    %1154 = vmatprep.subr.bf16.mxu0 0
    %1155 = vmatpush1.bf16.msra.mxu0 0
    %1156 = vmatprep.subr.bf16.mxu0 0
    %1157 = vmatpush1.bf16.msra.mxu0 0
    %1158 = vmatprep.subr.bf16.mxu0 0
    %1159 = vmatpush1.bf16.msra.mxu0 0
    %1160 = vmatprep.subr.bf16.mxu0 0
    %1161 = vmatpush1.bf16.msra.mxu0 0
    %1162 = vmatprep.subr.bf16.mxu0 0
    %1163 = vmatpush1.bf16.msra.mxu0 0
    %1164 = vmatprep.subr.bf16.mxu0 0
    %1165 = vmatpush1.bf16.msra.mxu0 0
    %1166 = vmatprep.subr.bf16.mxu0 0
    %1167 = vmatpush1.bf16.msra.mxu0 0
    %1168 = vmatprep.subr.bf16.mxu0 0
    %1169 = vmatpush1.bf16.msra.mxu0 0
    %1170 = vmatprep.subr.bf16.mxu0 0
    %1171 = vmatpush1.bf16.msra.mxu0 0
    %1172 = vmatprep.subr.bf16.mxu0 0
    %1173 = vmatpush1.bf16.msra.mxu0 0
    %1174 = vmatprep.subr.bf16.mxu0 0
    %1175 = vmatpush1.bf16.msra.mxu0 0
    %1176 = vmatprep.mubr.bf16.mxu0 0
    %1177 = vmatmul.mubr.bf16.gmra.mrb[0].mxu0 %v743
    %v1178 = vpop.f32.mrb[0].mxu0
    %v1179 = vadd.f32 0.0, %v1178
    %v1180 = vpop.f32.mrb[0].mxu0
    %v1181 = vpop.f32.mrb[0].mxu0
    %v1182 = vadd.f32 0.0, %v1181
    %v1183 = vpop.f32.mrb[0].mxu0
    %1184 = vdwg.mxu0
    %v1186 = vsel %vm235, %v715, 0
    %1188 = vmatprep.subr.bf16.mxu0 0
    %1189 = vmatpush1.bf16.msra.mxu0 %v1186
    %1190 = vmatprep.subr.bf16.mxu0 0
    %1191 = vmatpush1.bf16.msra.mxu0 0
    %1192 = vmatprep.subr.bf16.mxu0 0
    %1193 = vmatpush1.bf16.msra.mxu0 0
    %1194 = vmatprep.subr.bf16.mxu0 0
    %1195 = vmatpush1.bf16.msra.mxu0 0
    %1196 = vmatprep.subr.bf16.mxu0 0
    %1197 = vmatpush1.bf16.msra.mxu0 0
    %1198 = vmatprep.subr.bf16.mxu0 0
    %1199 = vmatpush1.bf16.msra.mxu0 0
    %1200 = vmatprep.subr.bf16.mxu0 0
    %1201 = vmatpush1.bf16.msra.mxu0 0
    %1202 = vmatprep.subr.bf16.mxu0 0
    %1203 = vmatpush1.bf16.msra.mxu0 0
    %1204 = vmatprep.subr.bf16.mxu0 0
    %1205 = vmatpush1.bf16.msra.mxu0 0
    %1206 = vmatprep.subr.bf16.mxu0 0
    %1207 = vmatpush1.bf16.msra.mxu0 0
    %1208 = vmatprep.subr.bf16.mxu0 0
    %1209 = vmatpush1.bf16.msra.mxu0 0
    %1210 = vmatprep.subr.bf16.mxu0 0
    %1211 = vmatpush1.bf16.msra.mxu0 0
    %1212 = vmatprep.subr.bf16.mxu0 0
    %1213 = vmatpush1.bf16.msra.mxu0 0
    %1214 = vmatprep.subr.bf16.mxu0 0
    %1215 = vmatpush1.bf16.msra.mxu0 0
    %1216 = vmatprep.subr.bf16.mxu0 0
    %1217 = vmatpush1.bf16.msra.mxu0 0
    %1218 = vmatprep.subr.bf16.mxu0 0
    %1219 = vmatpush1.bf16.msra.mxu0 0
    %1220 = vmatprep.mubr.bf16.mxu0 0
    %1221 = vmatmul.mubr.bf16.gmra.mrb[0].mxu0 %v743
    %v1222 = vpop.f32.mrb[0].mxu0
    %v1223 = vadd.f32 0.0, %v1222
    %v1224 = vpop.f32.mrb[0].mxu0
    %v1225 = vpop.f32.mrb[0].mxu0
    %v1226 = vadd.f32 0.0, %v1225
    %v1227 = vpop.f32.mrb[0].mxu0
    %1228 = vdwg.mxu0
    %v1230 = vsel %vm235, %v716, 0
    %1232 = vmatprep.subr.bf16.mxu0 0
    %1233 = vmatpush1.bf16.msra.mxu0 %v1230
    %1234 = vmatprep.subr.bf16.mxu0 0
    %1235 = vmatpush1.bf16.msra.mxu0 0
    %1236 = vmatprep.subr.bf16.mxu0 0
    %1237 = vmatpush1.bf16.msra.mxu0 0
    %1238 = vmatprep.subr.bf16.mxu0 0
    %1239 = vmatpush1.bf16.msra.mxu0 0
    %1240 = vmatprep.subr.bf16.mxu0 0
    %1241 = vmatpush1.bf16.msra.mxu0 0
    %1242 = vmatprep.subr.bf16.mxu0 0
    %1243 = vmatpush1.bf16.msra.mxu0 0
    %1244 = vmatprep.subr.bf16.mxu0 0
    %1245 = vmatpush1.bf16.msra.mxu0 0
    %1246 = vmatprep.subr.bf16.mxu0 0
    %1247 = vmatpush1.bf16.msra.mxu0 0
    %1248 = vmatprep.subr.bf16.mxu0 0
    %1249 = vmatpush1.bf16.msra.mxu0 0
    %1250 = vmatprep.subr.bf16.mxu0 0
    %1251 = vmatpush1.bf16.msra.mxu0 0
    %1252 = vmatprep.subr.bf16.mxu0 0
    %1253 = vmatpush1.bf16.msra.mxu0 0
    %1254 = vmatprep.subr.bf16.mxu0 0
    %1255 = vmatpush1.bf16.msra.mxu0 0
    %1256 = vmatprep.subr.bf16.mxu0 0
    %1257 = vmatpush1.bf16.msra.mxu0 0
    %1258 = vmatprep.subr.bf16.mxu0 0
    %1259 = vmatpush1.bf16.msra.mxu0 0
    %1260 = vmatprep.subr.bf16.mxu0 0
    %1261 = vmatpush1.bf16.msra.mxu0 0
    %1262 = vmatprep.subr.bf16.mxu0 0
    %1263 = vmatpush1.bf16.msra.mxu0 0
    %1264 = vmatprep.mubr.bf16.mxu0 0
    %1265 = vmatmul.mubr.bf16.gmra.mrb[0].mxu0 %v743
    %v1266 = vpop.f32.mrb[0].mxu0
    %v1267 = vadd.f32 0.0, %v1266
    %v1268 = vpop.f32.mrb[0].mxu0
    %v1269 = vpop.f32.mrb[0].mxu0
    %v1270 = vadd.f32 0.0, %v1269
    %v1271 = vpop.f32.mrb[0].mxu0
    %1272 = vdwg.mxu0
    %v1274 = vsel %vm235, %v717, 0
    %1276 = vmatprep.subr.bf16.mxu0 0
    %1277 = vmatpush1.bf16.msra.mxu0 %v1274
    %1278 = vmatprep.subr.bf16.mxu0 0
    %1279 = vmatpush1.bf16.msra.mxu0 0
    %1280 = vmatprep.subr.bf16.mxu0 0
    %1281 = vmatpush1.bf16.msra.mxu0 0
    %1282 = vmatprep.subr.bf16.mxu0 0
    %1283 = vmatpush1.bf16.msra.mxu0 0
    %1284 = vmatprep.subr.bf16.mxu0 0
    %1285 = vmatpush1.bf16.msra.mxu0 0
    %1286 = vmatprep.subr.bf16.mxu0 0
    %1287 = vmatpush1.bf16.msra.mxu0 0
    %1288 = vmatprep.subr.bf16.mxu0 0
    %1289 = vmatpush1.bf16.msra.mxu0 0
    %1290 = vmatprep.subr.bf16.mxu0 0
    %1291 = vmatpush1.bf16.msra.mxu0 0
    %1292 = vmatprep.subr.bf16.mxu0 0
    %1293 = vmatpush1.bf16.msra.mxu0 0
    %1294 = vmatprep.subr.bf16.mxu0 0
    %1295 = vmatpush1.bf16.msra.mxu0 0
    %1296 = vmatprep.subr.bf16.mxu0 0
    %1297 = vmatpush1.bf16.msra.mxu0 0
    %1298 = vmatprep.subr.bf16.mxu0 0
    %1299 = vmatpush1.bf16.msra.mxu0 0
    %1300 = vmatprep.subr.bf16.mxu0 0
    %1301 = vmatpush1.bf16.msra.mxu0 0
    %1302 = vmatprep.subr.bf16.mxu0 0
    %1303 = vmatpush1.bf16.msra.mxu0 0
    %1304 = vmatprep.subr.bf16.mxu0 0
    %1305 = vmatpush1.bf16.msra.mxu0 0
    %1306 = vmatprep.subr.bf16.mxu0 0
    %1307 = vmatpush1.bf16.msra.mxu0 0
    %1308 = vmatprep.mubr.bf16.mxu0 0
    %1309 = vmatmul.mubr.bf16.gmra.mrb[0].mxu0 %v743
    %v1310 = vpop.f32.mrb[0].mxu0
    %v1311 = vadd.f32 0.0, %v1310
    %v1312 = vpop.f32.mrb[0].mxu0
    %v1313 = vpop.f32.mrb[0].mxu0
    %v1314 = vadd.f32 0.0, %v1313
    %v1315 = vpop.f32.mrb[0].mxu0
    %1316 = vdwg.mxu0
    %v1318 = vsel %vm235, %v718, 0
    %1320 = vmatprep.subr.bf16.mxu0 0
    %1321 = vmatpush1.bf16.msra.mxu0 %v1318
    %1322 = vmatprep.subr.bf16.mxu0 0
    %1323 = vmatpush1.bf16.msra.mxu0 0
    %1324 = vmatprep.subr.bf16.mxu0 0
    %1325 = vmatpush1.bf16.msra.mxu0 0
    %1326 = vmatprep.subr.bf16.mxu0 0
    %1327 = vmatpush1.bf16.msra.mxu0 0
    %1328 = vmatprep.subr.bf16.mxu0 0
    %1329 = vmatpush1.bf16.msra.mxu0 0
    %1330 = vmatprep.subr.bf16.mxu0 0
    %1331 = vmatpush1.bf16.msra.mxu0 0
    %1332 = vmatprep.subr.bf16.mxu0 0
    %1333 = vmatpush1.bf16.msra.mxu0 0
    %1334 = vmatprep.subr.bf16.mxu0 0
    %1335 = vmatpush1.bf16.msra.mxu0 0
    %1336 = vmatprep.subr.bf16.mxu0 0
    %1337 = vmatpush1.bf16.msra.mxu0 0
    %1338 = vmatprep.subr.bf16.mxu0 0
    %1339 = vmatpush1.bf16.msra.mxu0 0
    %1340 = vmatprep.subr.bf16.mxu0 0
    %1341 = vmatpush1.bf16.msra.mxu0 0
    %1342 = vmatprep.subr.bf16.mxu0 0
    %1343 = vmatpush1.bf16.msra.mxu0 0
    %1344 = vmatprep.subr.bf16.mxu0 0
    %1345 = vmatpush1.bf16.msra.mxu0 0
    %1346 = vmatprep.subr.bf16.mxu0 0
    %1347 = vmatpush1.bf16.msra.mxu0 0
    %1348 = vmatprep.subr.bf16.mxu0 0
    %1349 = vmatpush1.bf16.msra.mxu0 0
    %1350 = vmatprep.subr.bf16.mxu0 0
    %1351 = vmatpush1.bf16.msra.mxu0 0
    %1352 = vmatprep.mubr.bf16.mxu0 0
    %1353 = vmatmul.mubr.bf16.gmra.mrb[0].mxu0 %v743
    %v1354 = vpop.f32.mrb[0].mxu0
    %v1355 = vadd.f32 0.0, %v1354
    %v1356 = vpop.f32.mrb[0].mxu0
    %v1357 = vpop.f32.mrb[0].mxu0
    %v1358 = vadd.f32 0.0, %v1357
    %v1359 = vpop.f32.mrb[0].mxu0
    %1360 = vdwg.mxu0
    %v1362 = vsel %vm235, %v719, 0
    %1364 = vmatprep.subr.bf16.mxu0 0
    %1365 = vmatpush1.bf16.msra.mxu0 %v1362
    %1366 = vmatprep.subr.bf16.mxu0 0
    %1367 = vmatpush1.bf16.msra.mxu0 0
    %1368 = vmatprep.subr.bf16.mxu0 0
    %1369 = vmatpush1.bf16.msra.mxu0 0
    %1370 = vmatprep.subr.bf16.mxu0 0
    %1371 = vmatpush1.bf16.msra.mxu0 0
    %1372 = vmatprep.subr.bf16.mxu0 0
    %1373 = vmatpush1.bf16.msra.mxu0 0
    %1374 = vmatprep.subr.bf16.mxu0 0
    %1375 = vmatpush1.bf16.msra.mxu0 0
    %1376 = vmatprep.subr.bf16.mxu0 0
    %1377 = vmatpush1.bf16.msra.mxu0 0
    %1378 = vmatprep.subr.bf16.mxu0 0
    %1379 = vmatpush1.bf16.msra.mxu0 0
    %1380 = vmatprep.subr.bf16.mxu0 0
    %1381 = vmatpush1.bf16.msra.mxu0 0
    %1382 = vmatprep.subr.bf16.mxu0 0
    %1383 = vmatpush1.bf16.msra.mxu0 0
    %1384 = vmatprep.subr.bf16.mxu0 0
    %1385 = vmatpush1.bf16.msra.mxu0 0
    %1386 = vmatprep.subr.bf16.mxu0 0
    %1387 = vmatpush1.bf16.msra.mxu0 0
    %1388 = vmatprep.subr.bf16.mxu0 0
    %1389 = vmatpush1.bf16.msra.mxu0 0
    %1390 = vmatprep.subr.bf16.mxu0 0
    %1391 = vmatpush1.bf16.msra.mxu0 0
    %1392 = vmatprep.subr.bf16.mxu0 0
    %1393 = vmatpush1.bf16.msra.mxu0 0
    %1394 = vmatprep.subr.bf16.mxu0 0
    %1395 = vmatpush1.bf16.msra.mxu0 0
    %1396 = vmatprep.mubr.bf16.mxu0 0
    %1397 = vmatmul.mubr.bf16.gmra.mrb[0].mxu0 %v743
    %v1398 = vpop.f32.mrb[0].mxu0
    %v1399 = vadd.f32 0.0, %v1398
    %v1400 = vpop.f32.mrb[0].mxu0
    %v1401 = vpop.f32.mrb[0].mxu0
    %v1402 = vadd.f32 0.0, %v1401
    %v1403 = vpop.f32.mrb[0].mxu0
    %1404 = vdwg.mxu0
    %v1406 = vsel %vm235, %v720, 0
    %1408 = vmatprep.subr.bf16.mxu0 0
    %1409 = vmatpush1.bf16.msra.mxu0 %v1406
    %1410 = vmatprep.subr.bf16.mxu0 0
    %1411 = vmatpush1.bf16.msra.mxu0 0
    %1412 = vmatprep.subr.bf16.mxu0 0
    %1413 = vmatpush1.bf16.msra.mxu0 0
    %1414 = vmatprep.subr.bf16.mxu0 0
    %1415 = vmatpush1.bf16.msra.mxu0 0
    %1416 = vmatprep.subr.bf16.mxu0 0
    %1417 = vmatpush1.bf16.msra.mxu0 0
    %1418 = vmatprep.subr.bf16.mxu0 0
    %1419 = vmatpush1.bf16.msra.mxu0 0
    %1420 = vmatprep.subr.bf16.mxu0 0
    %1421 = vmatpush1.bf16.msra.mxu0 0
    %1422 = vmatprep.subr.bf16.mxu0 0
    %1423 = vmatpush1.bf16.msra.mxu0 0
    %1424 = vmatprep.subr.bf16.mxu0 0
    %1425 = vmatpush1.bf16.msra.mxu0 0
    %1426 = vmatprep.subr.bf16.mxu0 0
    %1427 = vmatpush1.bf16.msra.mxu0 0
    %1428 = vmatprep.subr.bf16.mxu0 0
    %1429 = vmatpush1.bf16.msra.mxu0 0
    %1430 = vmatprep.subr.bf16.mxu0 0
    %1431 = vmatpush1.bf16.msra.mxu0 0
    %1432 = vmatprep.subr.bf16.mxu0 0
    %1433 = vmatpush1.bf16.msra.mxu0 0
    %1434 = vmatprep.subr.bf16.mxu0 0
    %1435 = vmatpush1.bf16.msra.mxu0 0
    %1436 = vmatprep.subr.bf16.mxu0 0
    %1437 = vmatpush1.bf16.msra.mxu0 0
    %1438 = vmatprep.subr.bf16.mxu0 0
    %1439 = vmatpush1.bf16.msra.mxu0 0
    %1440 = vmatprep.mubr.bf16.mxu0 0
    %1441 = vmatmul.mubr.bf16.gmra.mrb[0].mxu0 %v743
    %v1442 = vpop.f32.mrb[0].mxu0
    %v1443 = vadd.f32 0.0, %v1442
    %v1444 = vpop.f32.mrb[0].mxu0
    %v1445 = vpop.f32.mrb[0].mxu0
    %v1446 = vadd.f32 0.0, %v1445
    %v1447 = vpop.f32.mrb[0].mxu0
    %1448 = vdwg.mxu0
    %v1450 = vsel %vm235, %v721, 0
    %1452 = vmatprep.subr.bf16.mxu0 0
    %1453 = vmatpush1.bf16.msra.mxu0 %v1450
    %1454 = vmatprep.subr.bf16.mxu0 0
    %1455 = vmatpush1.bf16.msra.mxu0 0
    %1456 = vmatprep.subr.bf16.mxu0 0
    %1457 = vmatpush1.bf16.msra.mxu0 0
    %1458 = vmatprep.subr.bf16.mxu0 0
    %1459 = vmatpush1.bf16.msra.mxu0 0
    %1460 = vmatprep.subr.bf16.mxu0 0
    %1461 = vmatpush1.bf16.msra.mxu0 0
    %1462 = vmatprep.subr.bf16.mxu0 0
    %1463 = vmatpush1.bf16.msra.mxu0 0
    %1464 = vmatprep.subr.bf16.mxu0 0
    %1465 = vmatpush1.bf16.msra.mxu0 0
    %1466 = vmatprep.subr.bf16.mxu0 0
    %1467 = vmatpush1.bf16.msra.mxu0 0
    %1468 = vmatprep.subr.bf16.mxu0 0
    %1469 = vmatpush1.bf16.msra.mxu0 0
    %1470 = vmatprep.subr.bf16.mxu0 0
    %1471 = vmatpush1.bf16.msra.mxu0 0
    %1472 = vmatprep.subr.bf16.mxu0 0
    %1473 = vmatpush1.bf16.msra.mxu0 0
    %1474 = vmatprep.subr.bf16.mxu0 0
    %1475 = vmatpush1.bf16.msra.mxu0 0
    %1476 = vmatprep.subr.bf16.mxu0 0
    %1477 = vmatpush1.bf16.msra.mxu0 0
    %1478 = vmatprep.subr.bf16.mxu0 0
    %1479 = vmatpush1.bf16.msra.mxu0 0
    %1480 = vmatprep.subr.bf16.mxu0 0
    %1481 = vmatpush1.bf16.msra.mxu0 0
    %1482 = vmatprep.subr.bf16.mxu0 0
    %1483 = vmatpush1.bf16.msra.mxu0 0
    %1484 = vmatprep.mubr.bf16.mxu0 0
    %1485 = vmatmul.mubr.bf16.gmra.mrb[0].mxu0 %v743
    %v1486 = vpop.f32.mrb[0].mxu0
    %v1487 = vadd.f32 0.0, %v1486
    %v1488 = vpop.f32.mrb[0].mxu0
    %v1489 = vpop.f32.mrb[0].mxu0
    %v1490 = vadd.f32 0.0, %v1489
    %v1491 = vpop.f32.mrb[0].mxu0
    %1492 = vdwg.mxu0
    %v1494 = vsel %vm235, %v722, 0
    %1496 = vmatprep.subr.bf16.mxu0 0
    %1497 = vmatpush1.bf16.msra.mxu0 %v1494
    %1498 = vmatprep.subr.bf16.mxu0 0
    %1499 = vmatpush1.bf16.msra.mxu0 0
    %1500 = vmatprep.subr.bf16.mxu0 0
    %1501 = vmatpush1.bf16.msra.mxu0 0
    %1502 = vmatprep.subr.bf16.mxu0 0
    %1503 = vmatpush1.bf16.msra.mxu0 0
    %1504 = vmatprep.subr.bf16.mxu0 0
    %1505 = vmatpush1.bf16.msra.mxu0 0
    %1506 = vmatprep.subr.bf16.mxu0 0
    %1507 = vmatpush1.bf16.msra.mxu0 0
    %1508 = vmatprep.subr.bf16.mxu0 0
    %1509 = vmatpush1.bf16.msra.mxu0 0
    %1510 = vmatprep.subr.bf16.mxu0 0
    %1511 = vmatpush1.bf16.msra.mxu0 0
    %1512 = vmatprep.subr.bf16.mxu0 0
    %1513 = vmatpush1.bf16.msra.mxu0 0
    %1514 = vmatprep.subr.bf16.mxu0 0
    %1515 = vmatpush1.bf16.msra.mxu0 0
    %1516 = vmatprep.subr.bf16.mxu0 0
    %1517 = vmatpush1.bf16.msra.mxu0 0
    %1518 = vmatprep.subr.bf16.mxu0 0
    %1519 = vmatpush1.bf16.msra.mxu0 0
    %1520 = vmatprep.subr.bf16.mxu0 0
    %1521 = vmatpush1.bf16.msra.mxu0 0
    %1522 = vmatprep.subr.bf16.mxu0 0
    %1523 = vmatpush1.bf16.msra.mxu0 0
    %1524 = vmatprep.subr.bf16.mxu0 0
    %1525 = vmatpush1.bf16.msra.mxu0 0
    %1526 = vmatprep.subr.bf16.mxu0 0
    %1527 = vmatpush1.bf16.msra.mxu0 0
    %1528 = vmatprep.mubr.bf16.mxu0 0
    %1529 = vmatmul.mubr.bf16.gmra.mrb[0].mxu0 %v743
    %v1530 = vpop.f32.mrb[0].mxu0
    %v1531 = vadd.f32 0.0, %v1530
    %v1532 = vpop.f32.mrb[0].mxu0
    %v1533 = vpop.f32.mrb[0].mxu0
    %v1534 = vadd.f32 0.0, %v1533
    %v1535 = vpop.f32.mrb[0].mxu0
    %1536 = vdwg.mxu0
    %v1538 = vsel %vm235, %v723, 0
    %1540 = vmatprep.subr.bf16.mxu0 0
    %1541 = vmatpush1.bf16.msra.mxu0 %v1538
    %1542 = vmatprep.subr.bf16.mxu0 0
    %1543 = vmatpush1.bf16.msra.mxu0 0
    %1544 = vmatprep.subr.bf16.mxu0 0
    %1545 = vmatpush1.bf16.msra.mxu0 0
    %1546 = vmatprep.subr.bf16.mxu0 0
    %1547 = vmatpush1.bf16.msra.mxu0 0
    %1548 = vmatprep.subr.bf16.mxu0 0
    %1549 = vmatpush1.bf16.msra.mxu0 0
    %1550 = vmatprep.subr.bf16.mxu0 0
    %1551 = vmatpush1.bf16.msra.mxu0 0
    %1552 = vmatprep.subr.bf16.mxu0 0
    %1553 = vmatpush1.bf16.msra.mxu0 0
    %1554 = vmatprep.subr.bf16.mxu0 0
    %1555 = vmatpush1.bf16.msra.mxu0 0
    %1556 = vmatprep.subr.bf16.mxu0 0
    %1557 = vmatpush1.bf16.msra.mxu0 0
    %1558 = vmatprep.subr.bf16.mxu0 0
    %1559 = vmatpush1.bf16.msra.mxu0 0
    %1560 = vmatprep.subr.bf16.mxu0 0
    %1561 = vmatpush1.bf16.msra.mxu0 0
    %1562 = vmatprep.subr.bf16.mxu0 0
    %1563 = vmatpush1.bf16.msra.mxu0 0
    %1564 = vmatprep.subr.bf16.mxu0 0
    %1565 = vmatpush1.bf16.msra.mxu0 0
    %1566 = vmatprep.subr.bf16.mxu0 0
    %1567 = vmatpush1.bf16.msra.mxu0 0
    %1568 = vmatprep.subr.bf16.mxu0 0
    %1569 = vmatpush1.bf16.msra.mxu0 0
    %1570 = vmatprep.subr.bf16.mxu0 0
    %1571 = vmatpush1.bf16.msra.mxu0 0
    %1572 = vmatprep.mubr.bf16.mxu0 0
    %1573 = vmatmul.mubr.bf16.gmra.mrb[0].mxu0 %v743
    %v1574 = vpop.f32.mrb[0].mxu0
    %v1575 = vadd.f32 0.0, %v1574
    %v1576 = vpop.f32.mrb[0].mxu0
    %v1577 = vpop.f32.mrb[0].mxu0
    %v1578 = vadd.f32 0.0, %v1577
    %v1579 = vpop.f32.mrb[0].mxu0
    %1580 = vdwg.mxu0
    %v1582 = vsel %vm235, %v724, 0
    %1584 = vmatprep.subr.bf16.mxu0 0
    %1585 = vmatpush1.bf16.msra.mxu0 %v1582
    %1586 = vmatprep.subr.bf16.mxu0 0
    %1587 = vmatpush1.bf16.msra.mxu0 0
    %1588 = vmatprep.subr.bf16.mxu0 0
    %1589 = vmatpush1.bf16.msra.mxu0 0
    %1590 = vmatprep.subr.bf16.mxu0 0
    %1591 = vmatpush1.bf16.msra.mxu0 0
    %1592 = vmatprep.subr.bf16.mxu0 0
    %1593 = vmatpush1.bf16.msra.mxu0 0
    %1594 = vmatprep.subr.bf16.mxu0 0
    %1595 = vmatpush1.bf16.msra.mxu0 0
    %1596 = vmatprep.subr.bf16.mxu0 0
    %1597 = vmatpush1.bf16.msra.mxu0 0
    %1598 = vmatprep.subr.bf16.mxu0 0
    %1599 = vmatpush1.bf16.msra.mxu0 0
    %1600 = vmatprep.subr.bf16.mxu0 0
    %1601 = vmatpush1.bf16.msra.mxu0 0
    %1602 = vmatprep.subr.bf16.mxu0 0
    %1603 = vmatpush1.bf16.msra.mxu0 0
    %1604 = vmatprep.subr.bf16.mxu0 0
    %1605 = vmatpush1.bf16.msra.mxu0 0
    %1606 = vmatprep.subr.bf16.mxu0 0
    %1607 = vmatpush1.bf16.msra.mxu0 0
    %1608 = vmatprep.subr.bf16.mxu0 0
    %1609 = vmatpush1.bf16.msra.mxu0 0
    %1610 = vmatprep.subr.bf16.mxu0 0
    %1611 = vmatpush1.bf16.msra.mxu0 0
    %1612 = vmatprep.subr.bf16.mxu0 0
    %1613 = vmatpush1.bf16.msra.mxu0 0
    %1614 = vmatprep.subr.bf16.mxu0 0
    %1615 = vmatpush1.bf16.msra.mxu0 0
    %1616 = vmatprep.mubr.bf16.mxu0 0
    %1617 = vmatmul.mubr.bf16.gmra.mrb[0].mxu0 %v743
    %v1618 = vpop.f32.mrb[0].mxu0
    %v1619 = vadd.f32 0.0, %v1618
    %v1620 = vpop.f32.mrb[0].mxu0
    %v1621 = vpop.f32.mrb[0].mxu0
    %v1622 = vadd.f32 0.0, %v1621
    %v1623 = vpop.f32.mrb[0].mxu0
    %1624 = vdwg.mxu0
    %v1626 = vsel %vm235, %v725, 0
    %1628 = vmatprep.subr.bf16.mxu0 0
    %1629 = vmatpush1.bf16.msra.mxu0 %v1626
    %1630 = vmatprep.subr.bf16.mxu0 0
    %1631 = vmatpush1.bf16.msra.mxu0 0
    %1632 = vmatprep.subr.bf16.mxu0 0
    %1633 = vmatpush1.bf16.msra.mxu0 0
    %1634 = vmatprep.subr.bf16.mxu0 0
    %1635 = vmatpush1.bf16.msra.mxu0 0
    %1636 = vmatprep.subr.bf16.mxu0 0
    %1637 = vmatpush1.bf16.msra.mxu0 0
    %1638 = vmatprep.subr.bf16.mxu0 0
    %1639 = vmatpush1.bf16.msra.mxu0 0
    %1640 = vmatprep.subr.bf16.mxu0 0
    %1641 = vmatpush1.bf16.msra.mxu0 0
    %1642 = vmatprep.subr.bf16.mxu0 0
    %1643 = vmatpush1.bf16.msra.mxu0 0
    %1644 = vmatprep.subr.bf16.mxu0 0
    %1645 = vmatpush1.bf16.msra.mxu0 0
    %1646 = vmatprep.subr.bf16.mxu0 0
    %1647 = vmatpush1.bf16.msra.mxu0 0
    %1648 = vmatprep.subr.bf16.mxu0 0
    %1649 = vmatpush1.bf16.msra.mxu0 0
    %1650 = vmatprep.subr.bf16.mxu0 0
    %1651 = vmatpush1.bf16.msra.mxu0 0
    %1652 = vmatprep.subr.bf16.mxu0 0
    %1653 = vmatpush1.bf16.msra.mxu0 0
    %1654 = vmatprep.subr.bf16.mxu0 0
    %1655 = vmatpush1.bf16.msra.mxu0 0
    %1656 = vmatprep.subr.bf16.mxu0 0
    %1657 = vmatpush1.bf16.msra.mxu0 0
    %1658 = vmatprep.subr.bf16.mxu0 0
    %1659 = vmatpush1.bf16.msra.mxu0 0
    %1660 = vmatprep.mubr.bf16.mxu0 0
    %1661 = vmatmul.mubr.bf16.gmra.mrb[0].mxu0 %v743
    %v1662 = vpop.f32.mrb[0].mxu0
    %v1663 = vadd.f32 0.0, %v1662
    %v1664 = vpop.f32.mrb[0].mxu0
    %v1665 = vpop.f32.mrb[0].mxu0
    %v1666 = vadd.f32 0.0, %v1665
    %v1667 = vpop.f32.mrb[0].mxu0
    %1668 = vdwg.mxu0
    %v1670 = vsel %vm235, %v726, 0
    %1672 = vmatprep.subr.bf16.mxu0 0
    %1673 = vmatpush1.bf16.msra.mxu0 %v1670
    %1674 = vmatprep.subr.bf16.mxu0 0
    %1675 = vmatpush1.bf16.msra.mxu0 0
    %1676 = vmatprep.subr.bf16.mxu0 0
    %1677 = vmatpush1.bf16.msra.mxu0 0
    %1678 = vmatprep.subr.bf16.mxu0 0
    %1679 = vmatpush1.bf16.msra.mxu0 0
    %1680 = vmatprep.subr.bf16.mxu0 0
    %1681 = vmatpush1.bf16.msra.mxu0 0
    %1682 = vmatprep.subr.bf16.mxu0 0
    %1683 = vmatpush1.bf16.msra.mxu0 0
    %1684 = vmatprep.subr.bf16.mxu0 0
    %1685 = vmatpush1.bf16.msra.mxu0 0
    %1686 = vmatprep.subr.bf16.mxu0 0
    %1687 = vmatpush1.bf16.msra.mxu0 0
    %1688 = vmatprep.subr.bf16.mxu0 0
    %1689 = vmatpush1.bf16.msra.mxu0 0
    %1690 = vmatprep.subr.bf16.mxu0 0
    %1691 = vmatpush1.bf16.msra.mxu0 0
    %1692 = vmatprep.subr.bf16.mxu0 0
    %1693 = vmatpush1.bf16.msra.mxu0 0
    %1694 = vmatprep.subr.bf16.mxu0 0
    %1695 = vmatpush1.bf16.msra.mxu0 0
    %1696 = vmatprep.subr.bf16.mxu0 0
    %1697 = vmatpush1.bf16.msra.mxu0 0
    %1698 = vmatprep.subr.bf16.mxu0 0
    %1699 = vmatpush1.bf16.msra.mxu0 0
    %1700 = vmatprep.subr.bf16.mxu0 0
    %1701 = vmatpush1.bf16.msra.mxu0 0
    %1702 = vmatprep.subr.bf16.mxu0 0
    %1703 = vmatpush1.bf16.msra.mxu0 0
    %1704 = vmatprep.mubr.bf16.mxu0 0
    %1705 = vmatmul.mubr.bf16.gmra.mrb[0].mxu0 %v743
    %v1706 = vpop.f32.mrb[0].mxu0
    %v1707 = vadd.f32 0.0, %v1706
    %v1708 = vpop.f32.mrb[0].mxu0
    %v1709 = vpop.f32.mrb[0].mxu0
    %v1710 = vadd.f32 0.0, %v1709
    %v1711 = vpop.f32.mrb[0].mxu0
    %1712 = vdwg.mxu0
    %v1714 = vsel %vm235, %v727, 0
    %1716 = vmatprep.subr.bf16.mxu0 0
    %1717 = vmatpush1.bf16.msra.mxu0 %v1714
    %1718 = vmatprep.subr.bf16.mxu0 0
    %1719 = vmatpush1.bf16.msra.mxu0 0
    %1720 = vmatprep.subr.bf16.mxu0 0
    %1721 = vmatpush1.bf16.msra.mxu0 0
    %1722 = vmatprep.subr.bf16.mxu0 0
    %1723 = vmatpush1.bf16.msra.mxu0 0
    %1724 = vmatprep.subr.bf16.mxu0 0
    %1725 = vmatpush1.bf16.msra.mxu0 0
    %1726 = vmatprep.subr.bf16.mxu0 0
    %1727 = vmatpush1.bf16.msra.mxu0 0
    %1728 = vmatprep.subr.bf16.mxu0 0
    %1729 = vmatpush1.bf16.msra.mxu0 0
    %1730 = vmatprep.subr.bf16.mxu0 0
    %1731 = vmatpush1.bf16.msra.mxu0 0
    %1732 = vmatprep.subr.bf16.mxu0 0
    %1733 = vmatpush1.bf16.msra.mxu0 0
    %1734 = vmatprep.subr.bf16.mxu0 0
    %1735 = vmatpush1.bf16.msra.mxu0 0
    %1736 = vmatprep.subr.bf16.mxu0 0
    %1737 = vmatpush1.bf16.msra.mxu0 0
    %1738 = vmatprep.subr.bf16.mxu0 0
    %1739 = vmatpush1.bf16.msra.mxu0 0
    %1740 = vmatprep.subr.bf16.mxu0 0
    %1741 = vmatpush1.bf16.msra.mxu0 0
    %1742 = vmatprep.subr.bf16.mxu0 0
    %1743 = vmatpush1.bf16.msra.mxu0 0
    %1744 = vmatprep.subr.bf16.mxu0 0
    %1745 = vmatpush1.bf16.msra.mxu0 0
    %1746 = vmatprep.subr.bf16.mxu0 0
    %1747 = vmatpush1.bf16.msra.mxu0 0
    %1748 = vmatprep.mubr.bf16.mxu0 0
    %1749 = vmatmul.mubr.bf16.gmra.mrb[0].mxu0 %v743
    %v1750 = vpop.f32.mrb[0].mxu0
    %v1751 = vadd.f32 0.0, %v1750
    %v1752 = vpop.f32.mrb[0].mxu0
    %v1753 = vpop.f32.mrb[0].mxu0
    %v1754 = vadd.f32 0.0, %v1753
    %v1755 = vpop.f32.mrb[0].mxu0
    %1756 = vdwg.mxu0
    %v1758 = vsel %vm235, %v728, 0
    %1760 = vmatprep.subr.bf16.mxu0 0
    %1761 = vmatpush1.bf16.msra.mxu0 %v1758
    %1762 = vmatprep.subr.bf16.mxu0 0
    %1763 = vmatpush1.bf16.msra.mxu0 0
    %1764 = vmatprep.subr.bf16.mxu0 0
    %1765 = vmatpush1.bf16.msra.mxu0 0
    %1766 = vmatprep.subr.bf16.mxu0 0
    %1767 = vmatpush1.bf16.msra.mxu0 0
    %1768 = vmatprep.subr.bf16.mxu0 0
    %1769 = vmatpush1.bf16.msra.mxu0 0
    %1770 = vmatprep.subr.bf16.mxu0 0
    %1771 = vmatpush1.bf16.msra.mxu0 0
    %1772 = vmatprep.subr.bf16.mxu0 0
    %1773 = vmatpush1.bf16.msra.mxu0 0
    %1774 = vmatprep.subr.bf16.mxu0 0
    %1775 = vmatpush1.bf16.msra.mxu0 0
    %1776 = vmatprep.subr.bf16.mxu0 0
    %1777 = vmatpush1.bf16.msra.mxu0 0
    %1778 = vmatprep.subr.bf16.mxu0 0
    %1779 = vmatpush1.bf16.msra.mxu0 0
    %1780 = vmatprep.subr.bf16.mxu0 0
    %1781 = vmatpush1.bf16.msra.mxu0 0
    %1782 = vmatprep.subr.bf16.mxu0 0
    %1783 = vmatpush1.bf16.msra.mxu0 0
    %1784 = vmatprep.subr.bf16.mxu0 0
    %1785 = vmatpush1.bf16.msra.mxu0 0
    %1786 = vmatprep.subr.bf16.mxu0 0
    %1787 = vmatpush1.bf16.msra.mxu0 0
    %1788 = vmatprep.subr.bf16.mxu0 0
    %1789 = vmatpush1.bf16.msra.mxu0 0
    %1790 = vmatprep.subr.bf16.mxu0 0
    %1791 = vmatpush1.bf16.msra.mxu0 0
    %1792 = vmatprep.mubr.bf16.mxu0 0
    %1793 = vmatmul.mubr.bf16.gmra.mrb[0].mxu0 %v743
    %v1794 = vpop.f32.mrb[0].mxu0
    %v1795 = vadd.f32 0.0, %v1794
    %v1796 = vpop.f32.mrb[0].mxu0
    %v1797 = vpop.f32.mrb[0].mxu0
    %v1798 = vadd.f32 0.0, %v1797
    %v1799 = vpop.f32.mrb[0].mxu0
    %1800 = vdwg.mxu0
    %v1802 = vsel %vm235, %v729, 0
    %1804 = vmatprep.subr.bf16.mxu0 0
    %1805 = vmatpush1.bf16.msra.mxu0 %v1802
    %1806 = vmatprep.subr.bf16.mxu0 0
    %1807 = vmatpush1.bf16.msra.mxu0 0
    %1808 = vmatprep.subr.bf16.mxu0 0
    %1809 = vmatpush1.bf16.msra.mxu0 0
    %1810 = vmatprep.subr.bf16.mxu0 0
    %1811 = vmatpush1.bf16.msra.mxu0 0
    %1812 = vmatprep.subr.bf16.mxu0 0
    %1813 = vmatpush1.bf16.msra.mxu0 0
    %1814 = vmatprep.subr.bf16.mxu0 0
    %1815 = vmatpush1.bf16.msra.mxu0 0
    %1816 = vmatprep.subr.bf16.mxu0 0
    %1817 = vmatpush1.bf16.msra.mxu0 0
    %1818 = vmatprep.subr.bf16.mxu0 0
    %1819 = vmatpush1.bf16.msra.mxu0 0
    %1820 = vmatprep.subr.bf16.mxu0 0
    %1821 = vmatpush1.bf16.msra.mxu0 0
    %1822 = vmatprep.subr.bf16.mxu0 0
    %1823 = vmatpush1.bf16.msra.mxu0 0
    %1824 = vmatprep.subr.bf16.mxu0 0
    %1825 = vmatpush1.bf16.msra.mxu0 0
    %1826 = vmatprep.subr.bf16.mxu0 0
    %1827 = vmatpush1.bf16.msra.mxu0 0
    %1828 = vmatprep.subr.bf16.mxu0 0
    %1829 = vmatpush1.bf16.msra.mxu0 0
    %1830 = vmatprep.subr.bf16.mxu0 0
    %1831 = vmatpush1.bf16.msra.mxu0 0
    %1832 = vmatprep.subr.bf16.mxu0 0
    %1833 = vmatpush1.bf16.msra.mxu0 0
    %1834 = vmatprep.subr.bf16.mxu0 0
    %1835 = vmatpush1.bf16.msra.mxu0 0
    %1836 = vmatprep.mubr.bf16.mxu0 0
    %1837 = vmatmul.mubr.bf16.gmra.mrb[0].mxu0 %v743
    %v1838 = vpop.f32.mrb[0].mxu0
    %v1839 = vadd.f32 0.0, %v1838
    %v1840 = vpop.f32.mrb[0].mxu0
    %v1841 = vpop.f32.mrb[0].mxu0
    %v1842 = vadd.f32 0.0, %v1841
    %v1843 = vpop.f32.mrb[0].mxu0
    %1844 = vdwg.mxu0
    %v1846 = vsel %vm235, %v730, 0
    %1848 = vmatprep.subr.bf16.mxu0 0
    %1849 = vmatpush1.bf16.msra.mxu0 %v1846
    %1850 = vmatprep.subr.bf16.mxu0 0
    %1851 = vmatpush1.bf16.msra.mxu0 0
    %1852 = vmatprep.subr.bf16.mxu0 0
    %1853 = vmatpush1.bf16.msra.mxu0 0
    %1854 = vmatprep.subr.bf16.mxu0 0
    %1855 = vmatpush1.bf16.msra.mxu0 0
    %1856 = vmatprep.subr.bf16.mxu0 0
    %1857 = vmatpush1.bf16.msra.mxu0 0
    %1858 = vmatprep.subr.bf16.mxu0 0
    %1859 = vmatpush1.bf16.msra.mxu0 0
    %1860 = vmatprep.subr.bf16.mxu0 0
    %1861 = vmatpush1.bf16.msra.mxu0 0
    %1862 = vmatprep.subr.bf16.mxu0 0
    %1863 = vmatpush1.bf16.msra.mxu0 0
    %1864 = vmatprep.subr.bf16.mxu0 0
    %1865 = vmatpush1.bf16.msra.mxu0 0
    %1866 = vmatprep.subr.bf16.mxu0 0
    %1867 = vmatpush1.bf16.msra.mxu0 0
    %1868 = vmatprep.subr.bf16.mxu0 0
    %1869 = vmatpush1.bf16.msra.mxu0 0
    %1870 = vmatprep.subr.bf16.mxu0 0
    %1871 = vmatpush1.bf16.msra.mxu0 0
    %1872 = vmatprep.subr.bf16.mxu0 0
    %1873 = vmatpush1.bf16.msra.mxu0 0
    %1874 = vmatprep.subr.bf16.mxu0 0
    %1875 = vmatpush1.bf16.msra.mxu0 0
    %1876 = vmatprep.subr.bf16.mxu0 0
    %1877 = vmatpush1.bf16.msra.mxu0 0
    %1878 = vmatprep.subr.bf16.mxu0 0
    %1879 = vmatpush1.bf16.msra.mxu0 0
    %1880 = vmatprep.mubr.bf16.mxu0 0
    %1881 = vmatmul.mubr.bf16.gmra.mrb[0].mxu0 %v743
    %v1882 = vpop.f32.mrb[0].mxu0
    %v1883 = vadd.f32 0.0, %v1882
    %v1884 = vpop.f32.mrb[0].mxu0
    %v1885 = vpop.f32.mrb[0].mxu0
    %v1886 = vadd.f32 0.0, %v1885
    %v1887 = vpop.f32.mrb[0].mxu0
    %1888 = vdwg.mxu0
    %v1890 = vsel %vm235, %v731, 0
    %1892 = vmatprep.subr.bf16.mxu0 0
    %1893 = vmatpush1.bf16.msra.mxu0 %v1890
    %1894 = vmatprep.subr.bf16.mxu0 0
    %1895 = vmatpush1.bf16.msra.mxu0 0
    %1896 = vmatprep.subr.bf16.mxu0 0
    %1897 = vmatpush1.bf16.msra.mxu0 0
    %1898 = vmatprep.subr.bf16.mxu0 0
    %1899 = vmatpush1.bf16.msra.mxu0 0
    %1900 = vmatprep.subr.bf16.mxu0 0
    %1901 = vmatpush1.bf16.msra.mxu0 0
    %1902 = vmatprep.subr.bf16.mxu0 0
    %1903 = vmatpush1.bf16.msra.mxu0 0
    %1904 = vmatprep.subr.bf16.mxu0 0
    %1905 = vmatpush1.bf16.msra.mxu0 0
    %1906 = vmatprep.subr.bf16.mxu0 0
    %1907 = vmatpush1.bf16.msra.mxu0 0
    %1908 = vmatprep.subr.bf16.mxu0 0
    %1909 = vmatpush1.bf16.msra.mxu0 0
    %1910 = vmatprep.subr.bf16.mxu0 0
    %1911 = vmatpush1.bf16.msra.mxu0 0
    %1912 = vmatprep.subr.bf16.mxu0 0
    %1913 = vmatpush1.bf16.msra.mxu0 0
    %1914 = vmatprep.subr.bf16.mxu0 0
    %1915 = vmatpush1.bf16.msra.mxu0 0
    %1916 = vmatprep.subr.bf16.mxu0 0
    %1917 = vmatpush1.bf16.msra.mxu0 0
    %1918 = vmatprep.subr.bf16.mxu0 0
    %1919 = vmatpush1.bf16.msra.mxu0 0
    %1920 = vmatprep.subr.bf16.mxu0 0
    %1921 = vmatpush1.bf16.msra.mxu0 0
    %1922 = vmatprep.subr.bf16.mxu0 0
    %1923 = vmatpush1.bf16.msra.mxu0 0
    %1924 = vmatprep.mubr.bf16.mxu0 0
    %1925 = vmatmul.mubr.bf16.gmra.mrb[0].mxu0 %v743
    %v1926 = vpop.f32.mrb[0].mxu0
    %v1927 = vadd.f32 0.0, %v1926
    %v1928 = vpop.f32.mrb[0].mxu0
    %v1929 = vpop.f32.mrb[0].mxu0
    %v1930 = vadd.f32 0.0, %v1929
    %v1931 = vpop.f32.mrb[0].mxu0
    %1932 = vdwg.mxu0
    %v1934 = vsel %vm235, %v732, 0
    %1936 = vmatprep.subr.bf16.mxu0 0
    %1937 = vmatpush1.bf16.msra.mxu0 %v1934
    %1938 = vmatprep.subr.bf16.mxu0 0
    %1939 = vmatpush1.bf16.msra.mxu0 0
    %1940 = vmatprep.subr.bf16.mxu0 0
    %1941 = vmatpush1.bf16.msra.mxu0 0
    %1942 = vmatprep.subr.bf16.mxu0 0
    %1943 = vmatpush1.bf16.msra.mxu0 0
    %1944 = vmatprep.subr.bf16.mxu0 0
    %1945 = vmatpush1.bf16.msra.mxu0 0
    %1946 = vmatprep.subr.bf16.mxu0 0
    %1947 = vmatpush1.bf16.msra.mxu0 0
    %1948 = vmatprep.subr.bf16.mxu0 0
    %1949 = vmatpush1.bf16.msra.mxu0 0
    %1950 = vmatprep.subr.bf16.mxu0 0
    %1951 = vmatpush1.bf16.msra.mxu0 0
    %1952 = vmatprep.subr.bf16.mxu0 0
    %1953 = vmatpush1.bf16.msra.mxu0 0
    %1954 = vmatprep.subr.bf16.mxu0 0
    %1955 = vmatpush1.bf16.msra.mxu0 0
    %1956 = vmatprep.subr.bf16.mxu0 0
    %1957 = vmatpush1.bf16.msra.mxu0 0
    %1958 = vmatprep.subr.bf16.mxu0 0
    %1959 = vmatpush1.bf16.msra.mxu0 0
    %1960 = vmatprep.subr.bf16.mxu0 0
    %1961 = vmatpush1.bf16.msra.mxu0 0
    %1962 = vmatprep.subr.bf16.mxu0 0
    %1963 = vmatpush1.bf16.msra.mxu0 0
    %1964 = vmatprep.subr.bf16.mxu0 0
    %1965 = vmatpush1.bf16.msra.mxu0 0
    %1966 = vmatprep.subr.bf16.mxu0 0
    %1967 = vmatpush1.bf16.msra.mxu0 0
    %1968 = vmatprep.mubr.bf16.mxu0 0
    %1969 = vmatmul.mubr.bf16.gmra.mrb[0].mxu0 %v743
    %v1970 = vpop.f32.mrb[0].mxu0
    %v1971 = vadd.f32 0.0, %v1970
    %v1972 = vpop.f32.mrb[0].mxu0
    %v1973 = vpop.f32.mrb[0].mxu0
    %v1974 = vadd.f32 0.0, %v1973
    %v1975 = vpop.f32.mrb[0].mxu0
    %1976 = vdwg.mxu0
    %v1978 = vsel %vm235, %v733, 0
    %1980 = vmatprep.subr.bf16.mxu0 0
    %1981 = vmatpush1.bf16.msra.mxu0 %v1978
    %1982 = vmatprep.subr.bf16.mxu0 0
    %1983 = vmatpush1.bf16.msra.mxu0 0
    %1984 = vmatprep.subr.bf16.mxu0 0
    %1985 = vmatpush1.bf16.msra.mxu0 0
    %1986 = vmatprep.subr.bf16.mxu0 0
    %1987 = vmatpush1.bf16.msra.mxu0 0
    %1988 = vmatprep.subr.bf16.mxu0 0
    %1989 = vmatpush1.bf16.msra.mxu0 0
    %1990 = vmatprep.subr.bf16.mxu0 0
    %1991 = vmatpush1.bf16.msra.mxu0 0
    %1992 = vmatprep.subr.bf16.mxu0 0
    %1993 = vmatpush1.bf16.msra.mxu0 0
    %1994 = vmatprep.subr.bf16.mxu0 0
    %1995 = vmatpush1.bf16.msra.mxu0 0
    %1996 = vmatprep.subr.bf16.mxu0 0
    %1997 = vmatpush1.bf16.msra.mxu0 0
    %1998 = vmatprep.subr.bf16.mxu0 0
    %1999 = vmatpush1.bf16.msra.mxu0 0
    %2000 = vmatprep.subr.bf16.mxu0 0
    %2001 = vmatpush1.bf16.msra.mxu0 0
    %2002 = vmatprep.subr.bf16.mxu0 0
    %2003 = vmatpush1.bf16.msra.mxu0 0
    %2004 = vmatprep.subr.bf16.mxu0 0
    %2005 = vmatpush1.bf16.msra.mxu0 0
    %2006 = vmatprep.subr.bf16.mxu0 0
    %2007 = vmatpush1.bf16.msra.mxu0 0
    %2008 = vmatprep.subr.bf16.mxu0 0
    %2009 = vmatpush1.bf16.msra.mxu0 0
    %2010 = vmatprep.subr.bf16.mxu0 0
    %2011 = vmatpush1.bf16.msra.mxu0 0
    %2012 = vmatprep.mubr.bf16.mxu0 0
    %2013 = vmatmul.mubr.bf16.gmra.mrb[0].mxu0 %v743
    %v2014 = vpop.f32.mrb[0].mxu0
    %v2015 = vadd.f32 0.0, %v2014
    %v2016 = vpop.f32.mrb[0].mxu0
    %v2017 = vpop.f32.mrb[0].mxu0
    %v2018 = vadd.f32 0.0, %v2017
    %v2019 = vpop.f32.mrb[0].mxu0
    %2020 = vdwg.mxu0
    %v2022 = vsel %vm235, %v734, 0
    %2024 = vmatprep.subr.bf16.mxu0 0
    %2025 = vmatpush1.bf16.msra.mxu0 %v2022
    %2026 = vmatprep.subr.bf16.mxu0 0
    %2027 = vmatpush1.bf16.msra.mxu0 0
    %2028 = vmatprep.subr.bf16.mxu0 0
    %2029 = vmatpush1.bf16.msra.mxu0 0
    %2030 = vmatprep.subr.bf16.mxu0 0
    %2031 = vmatpush1.bf16.msra.mxu0 0
    %2032 = vmatprep.subr.bf16.mxu0 0
    %2033 = vmatpush1.bf16.msra.mxu0 0
    %2034 = vmatprep.subr.bf16.mxu0 0
    %2035 = vmatpush1.bf16.msra.mxu0 0
    %2036 = vmatprep.subr.bf16.mxu0 0
    %2037 = vmatpush1.bf16.msra.mxu0 0
    %2038 = vmatprep.subr.bf16.mxu0 0
    %2039 = vmatpush1.bf16.msra.mxu0 0
    %2040 = vmatprep.subr.bf16.mxu0 0
    %2041 = vmatpush1.bf16.msra.mxu0 0
    %2042 = vmatprep.subr.bf16.mxu0 0
    %2043 = vmatpush1.bf16.msra.mxu0 0
    %2044 = vmatprep.subr.bf16.mxu0 0
    %2045 = vmatpush1.bf16.msra.mxu0 0
    %2046 = vmatprep.subr.bf16.mxu0 0
    %2047 = vmatpush1.bf16.msra.mxu0 0
    %2048 = vmatprep.subr.bf16.mxu0 0
    %2049 = vmatpush1.bf16.msra.mxu0 0
    %2050 = vmatprep.subr.bf16.mxu0 0
    %2051 = vmatpush1.bf16.msra.mxu0 0
    %2052 = vmatprep.subr.bf16.mxu0 0
    %2053 = vmatpush1.bf16.msra.mxu0 0
    %2054 = vmatprep.subr.bf16.mxu0 0
    %2055 = vmatpush1.bf16.msra.mxu0 0
    %2056 = vmatprep.mubr.bf16.mxu0 0
    %2057 = vmatmul.mubr.bf16.gmra.mrb[0].mxu0 %v743
    %v2058 = vpop.f32.mrb[0].mxu0
    %v2059 = vadd.f32 0.0, %v2058
    %v2060 = vpop.f32.mrb[0].mxu0
    %v2061 = vpop.f32.mrb[0].mxu0
    %v2062 = vadd.f32 0.0, %v2061
    %v2063 = vpop.f32.mrb[0].mxu0
    %2064 = vdwg.mxu0
    %v2066 = vsel %vm235, %v735, 0
    %2068 = vmatprep.subr.bf16.mxu0 0
    %2069 = vmatpush1.bf16.msra.mxu0 %v2066
    %2070 = vmatprep.subr.bf16.mxu0 0
    %2071 = vmatpush1.bf16.msra.mxu0 0
    %2072 = vmatprep.subr.bf16.mxu0 0
    %2073 = vmatpush1.bf16.msra.mxu0 0
    %2074 = vmatprep.subr.bf16.mxu0 0
    %2075 = vmatpush1.bf16.msra.mxu0 0
    %2076 = vmatprep.subr.bf16.mxu0 0
    %2077 = vmatpush1.bf16.msra.mxu0 0
    %2078 = vmatprep.subr.bf16.mxu0 0
    %2079 = vmatpush1.bf16.msra.mxu0 0
    %2080 = vmatprep.subr.bf16.mxu0 0
    %2081 = vmatpush1.bf16.msra.mxu0 0
    %2082 = vmatprep.subr.bf16.mxu0 0
    %2083 = vmatpush1.bf16.msra.mxu0 0
    %2084 = vmatprep.subr.bf16.mxu0 0
    %2085 = vmatpush1.bf16.msra.mxu0 0
    %2086 = vmatprep.subr.bf16.mxu0 0
    %2087 = vmatpush1.bf16.msra.mxu0 0
    %2088 = vmatprep.subr.bf16.mxu0 0
    %2089 = vmatpush1.bf16.msra.mxu0 0
    %2090 = vmatprep.subr.bf16.mxu0 0
    %2091 = vmatpush1.bf16.msra.mxu0 0
    %2092 = vmatprep.subr.bf16.mxu0 0
    %2093 = vmatpush1.bf16.msra.mxu0 0
    %2094 = vmatprep.subr.bf16.mxu0 0
    %2095 = vmatpush1.bf16.msra.mxu0 0
    %2096 = vmatprep.subr.bf16.mxu0 0
    %2097 = vmatpush1.bf16.msra.mxu0 0
    %2098 = vmatprep.subr.bf16.mxu0 0
    %2099 = vmatpush1.bf16.msra.mxu0 0
    %2100 = vmatprep.mubr.bf16.mxu0 0
    %2101 = vmatmul.mubr.bf16.gmra.mrb[0].mxu0 %v743
    %v2102 = vpop.f32.mrb[0].mxu0
    %v2103 = vadd.f32 0.0, %v2102
    %v2104 = vpop.f32.mrb[0].mxu0
    %v2105 = vpop.f32.mrb[0].mxu0
    %v2106 = vadd.f32 0.0, %v2105
    %v2107 = vpop.f32.mrb[0].mxu0
    %2108 = vdwg.mxu0
    %v2110 = vsel %vm235, %v736, 0
    %2112 = vmatprep.subr.bf16.mxu0 0
    %2113 = vmatpush1.bf16.msra.mxu0 %v2110
    %2114 = vmatprep.subr.bf16.mxu0 0
    %2115 = vmatpush1.bf16.msra.mxu0 0
    %2116 = vmatprep.subr.bf16.mxu0 0
    %2117 = vmatpush1.bf16.msra.mxu0 0
    %2118 = vmatprep.subr.bf16.mxu0 0
    %2119 = vmatpush1.bf16.msra.mxu0 0
    %2120 = vmatprep.subr.bf16.mxu0 0
    %2121 = vmatpush1.bf16.msra.mxu0 0
    %2122 = vmatprep.subr.bf16.mxu0 0
    %2123 = vmatpush1.bf16.msra.mxu0 0
    %2124 = vmatprep.subr.bf16.mxu0 0
    %2125 = vmatpush1.bf16.msra.mxu0 0
    %2126 = vmatprep.subr.bf16.mxu0 0
    %2127 = vmatpush1.bf16.msra.mxu0 0
    %2128 = vmatprep.subr.bf16.mxu0 0
    %2129 = vmatpush1.bf16.msra.mxu0 0
    %2130 = vmatprep.subr.bf16.mxu0 0
    %2131 = vmatpush1.bf16.msra.mxu0 0
    %2132 = vmatprep.subr.bf16.mxu0 0
    %2133 = vmatpush1.bf16.msra.mxu0 0
    %2134 = vmatprep.subr.bf16.mxu0 0
    %2135 = vmatpush1.bf16.msra.mxu0 0
    %2136 = vmatprep.subr.bf16.mxu0 0
    %2137 = vmatpush1.bf16.msra.mxu0 0
    %2138 = vmatprep.subr.bf16.mxu0 0
    %2139 = vmatpush1.bf16.msra.mxu0 0
    %2140 = vmatprep.subr.bf16.mxu0 0
    %2141 = vmatpush1.bf16.msra.mxu0 0
    %2142 = vmatprep.subr.bf16.mxu0 0
    %2143 = vmatpush1.bf16.msra.mxu0 0
    %2144 = vmatprep.mubr.bf16.mxu0 0
    %2145 = vmatmul.mubr.bf16.gmra.mrb[0].mxu0 %v743
    %v2146 = vpop.f32.mrb[0].mxu0
    %v2147 = vadd.f32 0.0, %v2146
    %v2148 = vpop.f32.mrb[0].mxu0
    %v2149 = vpop.f32.mrb[0].mxu0
    %v2150 = vadd.f32 0.0, %v2149
    %v2151 = vpop.f32.mrb[0].mxu0
    %2152 = vdwg.mxu0
    %v2154 = vsel %vm235, %v609, 0
    %2156 = vmatprep.subr.bf16.mxu0 0
    %2157 = vmatpush1.bf16.msra.mxu0 %v2154
    %2158 = vmatprep.subr.bf16.mxu0 0
    %2159 = vmatpush1.bf16.msra.mxu0 0
    %2160 = vmatprep.subr.bf16.mxu0 0
    %2161 = vmatpush1.bf16.msra.mxu0 0
    %2162 = vmatprep.subr.bf16.mxu0 0
    %2163 = vmatpush1.bf16.msra.mxu0 0
    %2164 = vmatprep.subr.bf16.mxu0 0
    %2165 = vmatpush1.bf16.msra.mxu0 0
    %2166 = vmatprep.subr.bf16.mxu0 0
    %2167 = vmatpush1.bf16.msra.mxu0 0
    %2168 = vmatprep.subr.bf16.mxu0 0
    %2169 = vmatpush1.bf16.msra.mxu0 0
    %2170 = vmatprep.subr.bf16.mxu0 0
    %2171 = vmatpush1.bf16.msra.mxu0 0
    %2172 = vmatprep.subr.bf16.mxu0 0
    %2173 = vmatpush1.bf16.msra.mxu0 0
    %2174 = vmatprep.subr.bf16.mxu0 0
    %2175 = vmatpush1.bf16.msra.mxu0 0
    %2176 = vmatprep.subr.bf16.mxu0 0
    %2177 = vmatpush1.bf16.msra.mxu0 0
    %2178 = vmatprep.subr.bf16.mxu0 0
    %2179 = vmatpush1.bf16.msra.mxu0 0
    %2180 = vmatprep.subr.bf16.mxu0 0
    %2181 = vmatpush1.bf16.msra.mxu0 0
    %2182 = vmatprep.subr.bf16.mxu0 0
    %2183 = vmatpush1.bf16.msra.mxu0 0
    %2184 = vmatprep.subr.bf16.mxu0 0
    %2185 = vmatpush1.bf16.msra.mxu0 0
    %2186 = vmatprep.subr.bf16.mxu0 0
    %2187 = vmatpush1.bf16.msra.mxu0 0
    %2188 = vmatprep.mubr.bf16.mxu0 0
    %2189 = vmatmul.mubr.bf16.gmra.mrb[0].mxu0 %v743
    %v2190 = vpop.f32.mrb[0].mxu0
    %v2191 = vadd.f32 %v783, %v2190
    %v2192 = vpop.f32.mrb[0].mxu0
    %v2193 = vpop.f32.mrb[0].mxu0
    %v2194 = vadd.f32 %v786, %v2193
    %v2195 = vpop.f32.mrb[0].mxu0
    %2196 = vdwg.mxu0
    %v2198 = vsel %vm235, %v610, 0
    %2200 = vmatprep.subr.bf16.mxu0 0
    %2201 = vmatpush1.bf16.msra.mxu0 %v2198
    %2202 = vmatprep.subr.bf16.mxu0 0
    %2203 = vmatpush1.bf16.msra.mxu0 0
    %2204 = vmatprep.subr.bf16.mxu0 0
    %2205 = vmatpush1.bf16.msra.mxu0 0
    %2206 = vmatprep.subr.bf16.mxu0 0
    %2207 = vmatpush1.bf16.msra.mxu0 0
    %2208 = vmatprep.subr.bf16.mxu0 0
    %2209 = vmatpush1.bf16.msra.mxu0 0
    %2210 = vmatprep.subr.bf16.mxu0 0
    %2211 = vmatpush1.bf16.msra.mxu0 0
    %2212 = vmatprep.subr.bf16.mxu0 0
    %2213 = vmatpush1.bf16.msra.mxu0 0
    %2214 = vmatprep.subr.bf16.mxu0 0
    %2215 = vmatpush1.bf16.msra.mxu0 0
    %2216 = vmatprep.subr.bf16.mxu0 0
    %2217 = vmatpush1.bf16.msra.mxu0 0
    %2218 = vmatprep.subr.bf16.mxu0 0
    %2219 = vmatpush1.bf16.msra.mxu0 0
    %2220 = vmatprep.subr.bf16.mxu0 0
    %2221 = vmatpush1.bf16.msra.mxu0 0
    %2222 = vmatprep.subr.bf16.mxu0 0
    %2223 = vmatpush1.bf16.msra.mxu0 0
    %2224 = vmatprep.subr.bf16.mxu0 0
    %2225 = vmatpush1.bf16.msra.mxu0 0
    %2226 = vmatprep.subr.bf16.mxu0 0
    %2227 = vmatpush1.bf16.msra.mxu0 0
    %2228 = vmatprep.subr.bf16.mxu0 0
    %2229 = vmatpush1.bf16.msra.mxu0 0
    %2230 = vmatprep.subr.bf16.mxu0 0
    %2231 = vmatpush1.bf16.msra.mxu0 0
    %2232 = vmatprep.mubr.bf16.mxu0 0
    %2233 = vmatmul.mubr.bf16.gmra.mrb[0].mxu0 %v743
    %v2234 = vpop.f32.mrb[0].mxu0
    %v2235 = vadd.f32 %v827, %v2234
    %v2236 = vpop.f32.mrb[0].mxu0
    %v2237 = vpop.f32.mrb[0].mxu0
    %v2238 = vadd.f32 %v830, %v2237
    %v2239 = vpop.f32.mrb[0].mxu0
    %2240 = vdwg.mxu0
    %v2242 = vsel %vm235, %v611, 0
    %2244 = vmatprep.subr.bf16.mxu0 0
    %2245 = vmatpush1.bf16.msra.mxu0 %v2242
    %2246 = vmatprep.subr.bf16.mxu0 0
    %2247 = vmatpush1.bf16.msra.mxu0 0
    %2248 = vmatprep.subr.bf16.mxu0 0
    %2249 = vmatpush1.bf16.msra.mxu0 0
    %2250 = vmatprep.subr.bf16.mxu0 0
    %2251 = vmatpush1.bf16.msra.mxu0 0
    %2252 = vmatprep.subr.bf16.mxu0 0
    %2253 = vmatpush1.bf16.msra.mxu0 0
    %2254 = vmatprep.subr.bf16.mxu0 0
    %2255 = vmatpush1.bf16.msra.mxu0 0
    %2256 = vmatprep.subr.bf16.mxu0 0
    %2257 = vmatpush1.bf16.msra.mxu0 0
    %2258 = vmatprep.subr.bf16.mxu0 0
    %2259 = vmatpush1.bf16.msra.mxu0 0
    %2260 = vmatprep.subr.bf16.mxu0 0
    %2261 = vmatpush1.bf16.msra.mxu0 0
    %2262 = vmatprep.subr.bf16.mxu0 0
    %2263 = vmatpush1.bf16.msra.mxu0 0
    %2264 = vmatprep.subr.bf16.mxu0 0
    %2265 = vmatpush1.bf16.msra.mxu0 0
    %2266 = vmatprep.subr.bf16.mxu0 0
    %2267 = vmatpush1.bf16.msra.mxu0 0
    %2268 = vmatprep.subr.bf16.mxu0 0
    %2269 = vmatpush1.bf16.msra.mxu0 0
    %2270 = vmatprep.subr.bf16.mxu0 0
    %2271 = vmatpush1.bf16.msra.mxu0 0
    %2272 = vmatprep.subr.bf16.mxu0 0
    %2273 = vmatpush1.bf16.msra.mxu0 0
    %2274 = vmatprep.subr.bf16.mxu0 0
    %2275 = vmatpush1.bf16.msra.mxu0 0
    %2276 = vmatprep.mubr.bf16.mxu0 0
    %2277 = vmatmul.mubr.bf16.gmra.mrb[0].mxu0 %v743
    %v2278 = vpop.f32.mrb[0].mxu0
    %v2279 = vadd.f32 %v871, %v2278
    %v2280 = vpop.f32.mrb[0].mxu0
    %v2281 = vpop.f32.mrb[0].mxu0
    %v2282 = vadd.f32 %v874, %v2281
    %v2283 = vpop.f32.mrb[0].mxu0
    %2284 = vdwg.mxu0
    %v2286 = vsel %vm235, %v612, 0
    %2288 = vmatprep.subr.bf16.mxu0 0
    %2289 = vmatpush1.bf16.msra.mxu0 %v2286
    %2290 = vmatprep.subr.bf16.mxu0 0
    %2291 = vmatpush1.bf16.msra.mxu0 0
    %2292 = vmatprep.subr.bf16.mxu0 0
    %2293 = vmatpush1.bf16.msra.mxu0 0
    %2294 = vmatprep.subr.bf16.mxu0 0
    %2295 = vmatpush1.bf16.msra.mxu0 0
    %2296 = vmatprep.subr.bf16.mxu0 0
    %2297 = vmatpush1.bf16.msra.mxu0 0
    %2298 = vmatprep.subr.bf16.mxu0 0
    %2299 = vmatpush1.bf16.msra.mxu0 0
    %2300 = vmatprep.subr.bf16.mxu0 0
    %2301 = vmatpush1.bf16.msra.mxu0 0
    %2302 = vmatprep.subr.bf16.mxu0 0
    %2303 = vmatpush1.bf16.msra.mxu0 0
    %2304 = vmatprep.subr.bf16.mxu0 0
    %2305 = vmatpush1.bf16.msra.mxu0 0
    %2306 = vmatprep.subr.bf16.mxu0 0
    %2307 = vmatpush1.bf16.msra.mxu0 0
    %2308 = vmatprep.subr.bf16.mxu0 0
    %2309 = vmatpush1.bf16.msra.mxu0 0
    %2310 = vmatprep.subr.bf16.mxu0 0
    %2311 = vmatpush1.bf16.msra.mxu0 0
    %2312 = vmatprep.subr.bf16.mxu0 0
    %2313 = vmatpush1.bf16.msra.mxu0 0
    %2314 = vmatprep.subr.bf16.mxu0 0
    %2315 = vmatpush1.bf16.msra.mxu0 0
    %2316 = vmatprep.subr.bf16.mxu0 0
    %2317 = vmatpush1.bf16.msra.mxu0 0
    %2318 = vmatprep.subr.bf16.mxu0 0
    %2319 = vmatpush1.bf16.msra.mxu0 0
    %2320 = vmatprep.mubr.bf16.mxu0 0
    %2321 = vmatmul.mubr.bf16.gmra.mrb[0].mxu0 %v743
    %v2322 = vpop.f32.mrb[0].mxu0
    %v2323 = vadd.f32 %v915, %v2322
    %v2324 = vpop.f32.mrb[0].mxu0
    %v2325 = vpop.f32.mrb[0].mxu0
    %v2326 = vadd.f32 %v918, %v2325
    %v2327 = vpop.f32.mrb[0].mxu0
    %2328 = vdwg.mxu0
    %v2330 = vsel %vm235, %v613, 0
    %2332 = vmatprep.subr.bf16.mxu0 0
    %2333 = vmatpush1.bf16.msra.mxu0 %v2330
    %2334 = vmatprep.subr.bf16.mxu0 0
    %2335 = vmatpush1.bf16.msra.mxu0 0
    %2336 = vmatprep.subr.bf16.mxu0 0
    %2337 = vmatpush1.bf16.msra.mxu0 0
    %2338 = vmatprep.subr.bf16.mxu0 0
    %2339 = vmatpush1.bf16.msra.mxu0 0
    %2340 = vmatprep.subr.bf16.mxu0 0
    %2341 = vmatpush1.bf16.msra.mxu0 0
    %2342 = vmatprep.subr.bf16.mxu0 0
    %2343 = vmatpush1.bf16.msra.mxu0 0
    %2344 = vmatprep.subr.bf16.mxu0 0
    %2345 = vmatpush1.bf16.msra.mxu0 0
    %2346 = vmatprep.subr.bf16.mxu0 0
    %2347 = vmatpush1.bf16.msra.mxu0 0
    %2348 = vmatprep.subr.bf16.mxu0 0
    %2349 = vmatpush1.bf16.msra.mxu0 0
    %2350 = vmatprep.subr.bf16.mxu0 0
    %2351 = vmatpush1.bf16.msra.mxu0 0
    %2352 = vmatprep.subr.bf16.mxu0 0
    %2353 = vmatpush1.bf16.msra.mxu0 0
    %2354 = vmatprep.subr.bf16.mxu0 0
    %2355 = vmatpush1.bf16.msra.mxu0 0
    %2356 = vmatprep.subr.bf16.mxu0 0
    %2357 = vmatpush1.bf16.msra.mxu0 0
    %2358 = vmatprep.subr.bf16.mxu0 0
    %2359 = vmatpush1.bf16.msra.mxu0 0
    %2360 = vmatprep.subr.bf16.mxu0 0
    %2361 = vmatpush1.bf16.msra.mxu0 0
    %2362 = vmatprep.subr.bf16.mxu0 0
    %2363 = vmatpush1.bf16.msra.mxu0 0
    %2364 = vmatprep.mubr.bf16.mxu0 0
    %2365 = vmatmul.mubr.bf16.gmra.mrb[0].mxu0 %v743
    %v2366 = vpop.f32.mrb[0].mxu0
    %v2367 = vadd.f32 %v959, %v2366
    %v2368 = vpop.f32.mrb[0].mxu0
    %v2369 = vpop.f32.mrb[0].mxu0
    %v2370 = vadd.f32 %v962, %v2369
    %v2371 = vpop.f32.mrb[0].mxu0
    %2372 = vdwg.mxu0
    %v2374 = vsel %vm235, %v614, 0
    %2376 = vmatprep.subr.bf16.mxu0 0
    %2377 = vmatpush1.bf16.msra.mxu0 %v2374
    %2378 = vmatprep.subr.bf16.mxu0 0
    %2379 = vmatpush1.bf16.msra.mxu0 0
    %2380 = vmatprep.subr.bf16.mxu0 0
    %2381 = vmatpush1.bf16.msra.mxu0 0
    %2382 = vmatprep.subr.bf16.mxu0 0
    %2383 = vmatpush1.bf16.msra.mxu0 0
    %2384 = vmatprep.subr.bf16.mxu0 0
    %2385 = vmatpush1.bf16.msra.mxu0 0
    %2386 = vmatprep.subr.bf16.mxu0 0
    %2387 = vmatpush1.bf16.msra.mxu0 0
    %2388 = vmatprep.subr.bf16.mxu0 0
    %2389 = vmatpush1.bf16.msra.mxu0 0
    %2390 = vmatprep.subr.bf16.mxu0 0
    %2391 = vmatpush1.bf16.msra.mxu0 0
    %2392 = vmatprep.subr.bf16.mxu0 0
    %2393 = vmatpush1.bf16.msra.mxu0 0
    %2394 = vmatprep.subr.bf16.mxu0 0
    %2395 = vmatpush1.bf16.msra.mxu0 0
    %2396 = vmatprep.subr.bf16.mxu0 0
    %2397 = vmatpush1.bf16.msra.mxu0 0
    %2398 = vmatprep.subr.bf16.mxu0 0
    %2399 = vmatpush1.bf16.msra.mxu0 0
    %2400 = vmatprep.subr.bf16.mxu0 0
    %2401 = vmatpush1.bf16.msra.mxu0 0
    %2402 = vmatprep.subr.bf16.mxu0 0
    %2403 = vmatpush1.bf16.msra.mxu0 0
    %2404 = vmatprep.subr.bf16.mxu0 0
    %2405 = vmatpush1.bf16.msra.mxu0 0
    %2406 = vmatprep.subr.bf16.mxu0 0
    %2407 = vmatpush1.bf16.msra.mxu0 0
    %2408 = vmatprep.mubr.bf16.mxu0 0
    %2409 = vmatmul.mubr.bf16.gmra.mrb[0].mxu0 %v743
    %v2410 = vpop.f32.mrb[0].mxu0
    %v2411 = vadd.f32 %v1003, %v2410
    %v2412 = vpop.f32.mrb[0].mxu0
    %v2413 = vpop.f32.mrb[0].mxu0
    %v2414 = vadd.f32 %v1006, %v2413
    %v2415 = vpop.f32.mrb[0].mxu0
    %2416 = vdwg.mxu0
    %v2418 = vsel %vm235, %v615, 0
    %2420 = vmatprep.subr.bf16.mxu0 0
    %2421 = vmatpush1.bf16.msra.mxu0 %v2418
    %2422 = vmatprep.subr.bf16.mxu0 0
    %2423 = vmatpush1.bf16.msra.mxu0 0
    %2424 = vmatprep.subr.bf16.mxu0 0
    %2425 = vmatpush1.bf16.msra.mxu0 0
    %2426 = vmatprep.subr.bf16.mxu0 0
    %2427 = vmatpush1.bf16.msra.mxu0 0
    %2428 = vmatprep.subr.bf16.mxu0 0
    %2429 = vmatpush1.bf16.msra.mxu0 0
    %2430 = vmatprep.subr.bf16.mxu0 0
    %2431 = vmatpush1.bf16.msra.mxu0 0
    %2432 = vmatprep.subr.bf16.mxu0 0
    %2433 = vmatpush1.bf16.msra.mxu0 0
    %2434 = vmatprep.subr.bf16.mxu0 0
    %2435 = vmatpush1.bf16.msra.mxu0 0
    %2436 = vmatprep.subr.bf16.mxu0 0
    %2437 = vmatpush1.bf16.msra.mxu0 0
    %2438 = vmatprep.subr.bf16.mxu0 0
    %2439 = vmatpush1.bf16.msra.mxu0 0
    %2440 = vmatprep.subr.bf16.mxu0 0
    %2441 = vmatpush1.bf16.msra.mxu0 0
    %2442 = vmatprep.subr.bf16.mxu0 0
    %2443 = vmatpush1.bf16.msra.mxu0 0
    %2444 = vmatprep.subr.bf16.mxu0 0
    %2445 = vmatpush1.bf16.msra.mxu0 0
    %2446 = vmatprep.subr.bf16.mxu0 0
    %2447 = vmatpush1.bf16.msra.mxu0 0
    %2448 = vmatprep.subr.bf16.mxu0 0
    %2449 = vmatpush1.bf16.msra.mxu0 0
    %2450 = vmatprep.subr.bf16.mxu0 0
    %2451 = vmatpush1.bf16.msra.mxu0 0
    %2452 = vmatprep.mubr.bf16.mxu0 0
    %2453 = vmatmul.mubr.bf16.gmra.mrb[0].mxu0 %v743
    %v2454 = vpop.f32.mrb[0].mxu0
    %v2455 = vadd.f32 %v1047, %v2454
    %v2456 = vpop.f32.mrb[0].mxu0
    %v2457 = vpop.f32.mrb[0].mxu0
    %v2458 = vadd.f32 %v1050, %v2457
    %v2459 = vpop.f32.mrb[0].mxu0
    %2460 = vdwg.mxu0
    %v2462 = vsel %vm235, %v616, 0
    %2464 = vmatprep.subr.bf16.mxu0 0
    %2465 = vmatpush1.bf16.msra.mxu0 %v2462
    %2466 = vmatprep.subr.bf16.mxu0 0
    %2467 = vmatpush1.bf16.msra.mxu0 0
    %2468 = vmatprep.subr.bf16.mxu0 0
    %2469 = vmatpush1.bf16.msra.mxu0 0
    %2470 = vmatprep.subr.bf16.mxu0 0
    %2471 = vmatpush1.bf16.msra.mxu0 0
    %2472 = vmatprep.subr.bf16.mxu0 0
    %2473 = vmatpush1.bf16.msra.mxu0 0
    %2474 = vmatprep.subr.bf16.mxu0 0
    %2475 = vmatpush1.bf16.msra.mxu0 0
    %2476 = vmatprep.subr.bf16.mxu0 0
    %2477 = vmatpush1.bf16.msra.mxu0 0
    %2478 = vmatprep.subr.bf16.mxu0 0
    %2479 = vmatpush1.bf16.msra.mxu0 0
    %2480 = vmatprep.subr.bf16.mxu0 0
    %2481 = vmatpush1.bf16.msra.mxu0 0
    %2482 = vmatprep.subr.bf16.mxu0 0
    %2483 = vmatpush1.bf16.msra.mxu0 0
    %2484 = vmatprep.subr.bf16.mxu0 0
    %2485 = vmatpush1.bf16.msra.mxu0 0
    %2486 = vmatprep.subr.bf16.mxu0 0
    %2487 = vmatpush1.bf16.msra.mxu0 0
    %2488 = vmatprep.subr.bf16.mxu0 0
    %2489 = vmatpush1.bf16.msra.mxu0 0
    %2490 = vmatprep.subr.bf16.mxu0 0
    %2491 = vmatpush1.bf16.msra.mxu0 0
    %2492 = vmatprep.subr.bf16.mxu0 0
    %2493 = vmatpush1.bf16.msra.mxu0 0
    %2494 = vmatprep.subr.bf16.mxu0 0
    %2495 = vmatpush1.bf16.msra.mxu0 0
    %2496 = vmatprep.mubr.bf16.mxu0 0
    %2497 = vmatmul.mubr.bf16.gmra.mrb[0].mxu0 %v743
    %v2498 = vpop.f32.mrb[0].mxu0
    %v2499 = vadd.f32 %v1091, %v2498
    %v2500 = vpop.f32.mrb[0].mxu0
    %v2501 = vpop.f32.mrb[0].mxu0
    %v2502 = vadd.f32 %v1094, %v2501
    %v2503 = vpop.f32.mrb[0].mxu0
    %2504 = vdwg.mxu0
    %v2506 = vsel %vm235, %v617, 0
    %2508 = vmatprep.subr.bf16.mxu0 0
    %2509 = vmatpush1.bf16.msra.mxu0 %v2506
    %2510 = vmatprep.subr.bf16.mxu0 0
    %2511 = vmatpush1.bf16.msra.mxu0 0
    %2512 = vmatprep.subr.bf16.mxu0 0
    %2513 = vmatpush1.bf16.msra.mxu0 0
    %2514 = vmatprep.subr.bf16.mxu0 0
    %2515 = vmatpush1.bf16.msra.mxu0 0
    %2516 = vmatprep.subr.bf16.mxu0 0
    %2517 = vmatpush1.bf16.msra.mxu0 0
    %2518 = vmatprep.subr.bf16.mxu0 0
    %2519 = vmatpush1.bf16.msra.mxu0 0
    %2520 = vmatprep.subr.bf16.mxu0 0
    %2521 = vmatpush1.bf16.msra.mxu0 0
    %2522 = vmatprep.subr.bf16.mxu0 0
    %2523 = vmatpush1.bf16.msra.mxu0 0
    %2524 = vmatprep.subr.bf16.mxu0 0
    %2525 = vmatpush1.bf16.msra.mxu0 0
    %2526 = vmatprep.subr.bf16.mxu0 0
    %2527 = vmatpush1.bf16.msra.mxu0 0
    %2528 = vmatprep.subr.bf16.mxu0 0
    %2529 = vmatpush1.bf16.msra.mxu0 0
    %2530 = vmatprep.subr.bf16.mxu0 0
    %2531 = vmatpush1.bf16.msra.mxu0 0
    %2532 = vmatprep.subr.bf16.mxu0 0
    %2533 = vmatpush1.bf16.msra.mxu0 0
    %2534 = vmatprep.subr.bf16.mxu0 0
    %2535 = vmatpush1.bf16.msra.mxu0 0
    %2536 = vmatprep.subr.bf16.mxu0 0
    %2537 = vmatpush1.bf16.msra.mxu0 0
    %2538 = vmatprep.subr.bf16.mxu0 0
    %2539 = vmatpush1.bf16.msra.mxu0 0
    %2540 = vmatprep.mubr.bf16.mxu0 0
    %2541 = vmatmul.mubr.bf16.gmra.mrb[0].mxu0 %v743
    %v2542 = vpop.f32.mrb[0].mxu0
    %v2543 = vadd.f32 %v1135, %v2542
    %v2544 = vpop.f32.mrb[0].mxu0
    %v2545 = vpop.f32.mrb[0].mxu0
    %v2546 = vadd.f32 %v1138, %v2545
    %v2547 = vpop.f32.mrb[0].mxu0
    %2548 = vdwg.mxu0
    %v2550 = vsel %vm235, %v618, 0
    %2552 = vmatprep.subr.bf16.mxu0 0
    %2553 = vmatpush1.bf16.msra.mxu0 %v2550
    %2554 = vmatprep.subr.bf16.mxu0 0
    %2555 = vmatpush1.bf16.msra.mxu0 0
    %2556 = vmatprep.subr.bf16.mxu0 0
    %2557 = vmatpush1.bf16.msra.mxu0 0
    %2558 = vmatprep.subr.bf16.mxu0 0
    %2559 = vmatpush1.bf16.msra.mxu0 0
    %2560 = vmatprep.subr.bf16.mxu0 0
    %2561 = vmatpush1.bf16.msra.mxu0 0
    %2562 = vmatprep.subr.bf16.mxu0 0
    %2563 = vmatpush1.bf16.msra.mxu0 0
    %2564 = vmatprep.subr.bf16.mxu0 0
    %2565 = vmatpush1.bf16.msra.mxu0 0
    %2566 = vmatprep.subr.bf16.mxu0 0
    %2567 = vmatpush1.bf16.msra.mxu0 0
    %2568 = vmatprep.subr.bf16.mxu0 0
    %2569 = vmatpush1.bf16.msra.mxu0 0
    %2570 = vmatprep.subr.bf16.mxu0 0
    %2571 = vmatpush1.bf16.msra.mxu0 0
    %2572 = vmatprep.subr.bf16.mxu0 0
    %2573 = vmatpush1.bf16.msra.mxu0 0
    %2574 = vmatprep.subr.bf16.mxu0 0
    %2575 = vmatpush1.bf16.msra.mxu0 0
    %2576 = vmatprep.subr.bf16.mxu0 0
    %2577 = vmatpush1.bf16.msra.mxu0 0
    %2578 = vmatprep.subr.bf16.mxu0 0
    %2579 = vmatpush1.bf16.msra.mxu0 0
    %2580 = vmatprep.subr.bf16.mxu0 0
    %2581 = vmatpush1.bf16.msra.mxu0 0
    %2582 = vmatprep.subr.bf16.mxu0 0
    %2583 = vmatpush1.bf16.msra.mxu0 0
    %2584 = vmatprep.mubr.bf16.mxu0 0
    %2585 = vmatmul.mubr.bf16.gmra.mrb[0].mxu0 %v743
    %v2586 = vpop.f32.mrb[0].mxu0
    %v2587 = vadd.f32 %v1179, %v2586
    %v2588 = vpop.f32.mrb[0].mxu0
    %v2589 = vpop.f32.mrb[0].mxu0
    %v2590 = vadd.f32 %v1182, %v2589
    %v2591 = vpop.f32.mrb[0].mxu0
    %2592 = vdwg.mxu0
    %v2594 = vsel %vm235, %v619, 0
    %2596 = vmatprep.subr.bf16.mxu0 0
    %2597 = vmatpush1.bf16.msra.mxu0 %v2594
    %2598 = vmatprep.subr.bf16.mxu0 0
    %2599 = vmatpush1.bf16.msra.mxu0 0
    %2600 = vmatprep.subr.bf16.mxu0 0
    %2601 = vmatpush1.bf16.msra.mxu0 0
    %2602 = vmatprep.subr.bf16.mxu0 0
    %2603 = vmatpush1.bf16.msra.mxu0 0
    %2604 = vmatprep.subr.bf16.mxu0 0
    %2605 = vmatpush1.bf16.msra.mxu0 0
    %2606 = vmatprep.subr.bf16.mxu0 0
    %2607 = vmatpush1.bf16.msra.mxu0 0
    %2608 = vmatprep.subr.bf16.mxu0 0
    %2609 = vmatpush1.bf16.msra.mxu0 0
    %2610 = vmatprep.subr.bf16.mxu0 0
    %2611 = vmatpush1.bf16.msra.mxu0 0
    %2612 = vmatprep.subr.bf16.mxu0 0
    %2613 = vmatpush1.bf16.msra.mxu0 0
    %2614 = vmatprep.subr.bf16.mxu0 0
    %2615 = vmatpush1.bf16.msra.mxu0 0
    %2616 = vmatprep.subr.bf16.mxu0 0
    %2617 = vmatpush1.bf16.msra.mxu0 0
    %2618 = vmatprep.subr.bf16.mxu0 0
    %2619 = vmatpush1.bf16.msra.mxu0 0
    %2620 = vmatprep.subr.bf16.mxu0 0
    %2621 = vmatpush1.bf16.msra.mxu0 0
    %2622 = vmatprep.subr.bf16.mxu0 0
    %2623 = vmatpush1.bf16.msra.mxu0 0
    %2624 = vmatprep.subr.bf16.mxu0 0
    %2625 = vmatpush1.bf16.msra.mxu0 0
    %2626 = vmatprep.subr.bf16.mxu0 0
    %2627 = vmatpush1.bf16.msra.mxu0 0
    %2628 = vmatprep.mubr.bf16.mxu0 0
    %2629 = vmatmul.mubr.bf16.gmra.mrb[0].mxu0 %v743
    %v2630 = vpop.f32.mrb[0].mxu0
    %v2631 = vadd.f32 %v1223, %v2630
    %v2632 = vpop.f32.mrb[0].mxu0
    %v2633 = vpop.f32.mrb[0].mxu0
    %v2634 = vadd.f32 %v1226, %v2633
    %v2635 = vpop.f32.mrb[0].mxu0
    %2636 = vdwg.mxu0
    %v2638 = vsel %vm235, %v620, 0
    %2640 = vmatprep.subr.bf16.mxu0 0
    %2641 = vmatpush1.bf16.msra.mxu0 %v2638
    %2642 = vmatprep.subr.bf16.mxu0 0
    %2643 = vmatpush1.bf16.msra.mxu0 0
    %2644 = vmatprep.subr.bf16.mxu0 0
    %2645 = vmatpush1.bf16.msra.mxu0 0
    %2646 = vmatprep.subr.bf16.mxu0 0
    %2647 = vmatpush1.bf16.msra.mxu0 0
    %2648 = vmatprep.subr.bf16.mxu0 0
    %2649 = vmatpush1.bf16.msra.mxu0 0
    %2650 = vmatprep.subr.bf16.mxu0 0
    %2651 = vmatpush1.bf16.msra.mxu0 0
    %2652 = vmatprep.subr.bf16.mxu0 0
    %2653 = vmatpush1.bf16.msra.mxu0 0
    %2654 = vmatprep.subr.bf16.mxu0 0
    %2655 = vmatpush1.bf16.msra.mxu0 0
    %2656 = vmatprep.subr.bf16.mxu0 0
    %2657 = vmatpush1.bf16.msra.mxu0 0
    %2658 = vmatprep.subr.bf16.mxu0 0
    %2659 = vmatpush1.bf16.msra.mxu0 0
    %2660 = vmatprep.subr.bf16.mxu0 0
    %2661 = vmatpush1.bf16.msra.mxu0 0
    %2662 = vmatprep.subr.bf16.mxu0 0
    %2663 = vmatpush1.bf16.msra.mxu0 0
    %2664 = vmatprep.subr.bf16.mxu0 0
    %2665 = vmatpush1.bf16.msra.mxu0 0
    %2666 = vmatprep.subr.bf16.mxu0 0
    %2667 = vmatpush1.bf16.msra.mxu0 0
    %2668 = vmatprep.subr.bf16.mxu0 0
    %2669 = vmatpush1.bf16.msra.mxu0 0
    %2670 = vmatprep.subr.bf16.mxu0 0
    %2671 = vmatpush1.bf16.msra.mxu0 0
    %2672 = vmatprep.mubr.bf16.mxu0 0
    %2673 = vmatmul.mubr.bf16.gmra.mrb[0].mxu0 %v743
    %v2674 = vpop.f32.mrb[0].mxu0
    %v2675 = vadd.f32 %v1267, %v2674
    %v2676 = vpop.f32.mrb[0].mxu0
    %v2677 = vpop.f32.mrb[0].mxu0
    %v2678 = vadd.f32 %v1270, %v2677
    %v2679 = vpop.f32.mrb[0].mxu0
    %2680 = vdwg.mxu0
    %v2682 = vsel %vm235, %v621, 0
    %2684 = vmatprep.subr.bf16.mxu0 0
    %2685 = vmatpush1.bf16.msra.mxu0 %v2682
    %2686 = vmatprep.subr.bf16.mxu0 0
    %2687 = vmatpush1.bf16.msra.mxu0 0
    %2688 = vmatprep.subr.bf16.mxu0 0
    %2689 = vmatpush1.bf16.msra.mxu0 0
    %2690 = vmatprep.subr.bf16.mxu0 0
    %2691 = vmatpush1.bf16.msra.mxu0 0
    %2692 = vmatprep.subr.bf16.mxu0 0
    %2693 = vmatpush1.bf16.msra.mxu0 0
    %2694 = vmatprep.subr.bf16.mxu0 0
    %2695 = vmatpush1.bf16.msra.mxu0 0
    %2696 = vmatprep.subr.bf16.mxu0 0
    %2697 = vmatpush1.bf16.msra.mxu0 0
    %2698 = vmatprep.subr.bf16.mxu0 0
    %2699 = vmatpush1.bf16.msra.mxu0 0
    %2700 = vmatprep.subr.bf16.mxu0 0
    %2701 = vmatpush1.bf16.msra.mxu0 0
    %2702 = vmatprep.subr.bf16.mxu0 0
    %2703 = vmatpush1.bf16.msra.mxu0 0
    %2704 = vmatprep.subr.bf16.mxu0 0
    %2705 = vmatpush1.bf16.msra.mxu0 0
    %2706 = vmatprep.subr.bf16.mxu0 0
    %2707 = vmatpush1.bf16.msra.mxu0 0
    %2708 = vmatprep.subr.bf16.mxu0 0
    %2709 = vmatpush1.bf16.msra.mxu0 0
    %2710 = vmatprep.subr.bf16.mxu0 0
    %2711 = vmatpush1.bf16.msra.mxu0 0
    %2712 = vmatprep.subr.bf16.mxu0 0
    %2713 = vmatpush1.bf16.msra.mxu0 0
    %2714 = vmatprep.subr.bf16.mxu0 0
    %2715 = vmatpush1.bf16.msra.mxu0 0
    %2716 = vmatprep.mubr.bf16.mxu0 0
    %2717 = vmatmul.mubr.bf16.gmra.mrb[0].mxu0 %v743
    %v2718 = vpop.f32.mrb[0].mxu0
    %v2719 = vadd.f32 %v1311, %v2718
    %v2720 = vpop.f32.mrb[0].mxu0
    %v2721 = vpop.f32.mrb[0].mxu0
    %v2722 = vadd.f32 %v1314, %v2721
    %v2723 = vpop.f32.mrb[0].mxu0
    %2724 = vdwg.mxu0
    %v2726 = vsel %vm235, %v622, 0
    %2728 = vmatprep.subr.bf16.mxu0 0
    %2729 = vmatpush1.bf16.msra.mxu0 %v2726
    %2730 = vmatprep.subr.bf16.mxu0 0
    %2731 = vmatpush1.bf16.msra.mxu0 0
    %2732 = vmatprep.subr.bf16.mxu0 0
    %2733 = vmatpush1.bf16.msra.mxu0 0
    %2734 = vmatprep.subr.bf16.mxu0 0
    %2735 = vmatpush1.bf16.msra.mxu0 0
    %2736 = vmatprep.subr.bf16.mxu0 0
    %2737 = vmatpush1.bf16.msra.mxu0 0
    %2738 = vmatprep.subr.bf16.mxu0 0
    %2739 = vmatpush1.bf16.msra.mxu0 0
    %2740 = vmatprep.subr.bf16.mxu0 0
    %2741 = vmatpush1.bf16.msra.mxu0 0
    %2742 = vmatprep.subr.bf16.mxu0 0
    %2743 = vmatpush1.bf16.msra.mxu0 0
    %2744 = vmatprep.subr.bf16.mxu0 0
    %2745 = vmatpush1.bf16.msra.mxu0 0
    %2746 = vmatprep.subr.bf16.mxu0 0
    %2747 = vmatpush1.bf16.msra.mxu0 0
    %2748 = vmatprep.subr.bf16.mxu0 0
    %2749 = vmatpush1.bf16.msra.mxu0 0
    %2750 = vmatprep.subr.bf16.mxu0 0
    %2751 = vmatpush1.bf16.msra.mxu0 0
    %2752 = vmatprep.subr.bf16.mxu0 0
    %2753 = vmatpush1.bf16.msra.mxu0 0
    %2754 = vmatprep.subr.bf16.mxu0 0
    %2755 = vmatpush1.bf16.msra.mxu0 0
    %2756 = vmatprep.subr.bf16.mxu0 0
    %2757 = vmatpush1.bf16.msra.mxu0 0
    %2758 = vmatprep.subr.bf16.mxu0 0
    %2759 = vmatpush1.bf16.msra.mxu0 0
    %2760 = vmatprep.mubr.bf16.mxu0 0
    %2761 = vmatmul.mubr.bf16.gmra.mrb[0].mxu0 %v743
    %v2762 = vpop.f32.mrb[0].mxu0
    %v2763 = vadd.f32 %v1355, %v2762
    %v2764 = vpop.f32.mrb[0].mxu0
    %v2765 = vpop.f32.mrb[0].mxu0
    %v2766 = vadd.f32 %v1358, %v2765
    %v2767 = vpop.f32.mrb[0].mxu0
    %2768 = vdwg.mxu0
    %v2770 = vsel %vm235, %v623, 0
    %2772 = vmatprep.subr.bf16.mxu0 0
    %2773 = vmatpush1.bf16.msra.mxu0 %v2770
    %2774 = vmatprep.subr.bf16.mxu0 0
    %2775 = vmatpush1.bf16.msra.mxu0 0
    %2776 = vmatprep.subr.bf16.mxu0 0
    %2777 = vmatpush1.bf16.msra.mxu0 0
    %2778 = vmatprep.subr.bf16.mxu0 0
    %2779 = vmatpush1.bf16.msra.mxu0 0
    %2780 = vmatprep.subr.bf16.mxu0 0
    %2781 = vmatpush1.bf16.msra.mxu0 0
    %2782 = vmatprep.subr.bf16.mxu0 0
    %2783 = vmatpush1.bf16.msra.mxu0 0
    %2784 = vmatprep.subr.bf16.mxu0 0
    %2785 = vmatpush1.bf16.msra.mxu0 0
    %2786 = vmatprep.subr.bf16.mxu0 0
    %2787 = vmatpush1.bf16.msra.mxu0 0
    %2788 = vmatprep.subr.bf16.mxu0 0
    %2789 = vmatpush1.bf16.msra.mxu0 0
    %2790 = vmatprep.subr.bf16.mxu0 0
    %2791 = vmatpush1.bf16.msra.mxu0 0
    %2792 = vmatprep.subr.bf16.mxu0 0
    %2793 = vmatpush1.bf16.msra.mxu0 0
    %2794 = vmatprep.subr.bf16.mxu0 0
    %2795 = vmatpush1.bf16.msra.mxu0 0
    %2796 = vmatprep.subr.bf16.mxu0 0
    %2797 = vmatpush1.bf16.msra.mxu0 0
    %2798 = vmatprep.subr.bf16.mxu0 0
    %2799 = vmatpush1.bf16.msra.mxu0 0
    %2800 = vmatprep.subr.bf16.mxu0 0
    %2801 = vmatpush1.bf16.msra.mxu0 0
    %2802 = vmatprep.subr.bf16.mxu0 0
    %2803 = vmatpush1.bf16.msra.mxu0 0
    %2804 = vmatprep.mubr.bf16.mxu0 0
    %2805 = vmatmul.mubr.bf16.gmra.mrb[0].mxu0 %v743
    %v2806 = vpop.f32.mrb[0].mxu0
    %v2807 = vadd.f32 %v1399, %v2806
    %v2808 = vpop.f32.mrb[0].mxu0
    %v2809 = vpop.f32.mrb[0].mxu0
    %v2810 = vadd.f32 %v1402, %v2809
    %v2811 = vpop.f32.mrb[0].mxu0
    %2812 = vdwg.mxu0
    %v2814 = vsel %vm235, %v624, 0
    %2816 = vmatprep.subr.bf16.mxu0 0
    %2817 = vmatpush1.bf16.msra.mxu0 %v2814
    %2818 = vmatprep.subr.bf16.mxu0 0
    %2819 = vmatpush1.bf16.msra.mxu0 0
    %2820 = vmatprep.subr.bf16.mxu0 0
    %2821 = vmatpush1.bf16.msra.mxu0 0
    %2822 = vmatprep.subr.bf16.mxu0 0
    %2823 = vmatpush1.bf16.msra.mxu0 0
    %2824 = vmatprep.subr.bf16.mxu0 0
    %2825 = vmatpush1.bf16.msra.mxu0 0
    %2826 = vmatprep.subr.bf16.mxu0 0
    %2827 = vmatpush1.bf16.msra.mxu0 0
    %2828 = vmatprep.subr.bf16.mxu0 0
    %2829 = vmatpush1.bf16.msra.mxu0 0
    %2830 = vmatprep.subr.bf16.mxu0 0
    %2831 = vmatpush1.bf16.msra.mxu0 0
    %2832 = vmatprep.subr.bf16.mxu0 0
    %2833 = vmatpush1.bf16.msra.mxu0 0
    %2834 = vmatprep.subr.bf16.mxu0 0
    %2835 = vmatpush1.bf16.msra.mxu0 0
    %2836 = vmatprep.subr.bf16.mxu0 0
    %2837 = vmatpush1.bf16.msra.mxu0 0
    %2838 = vmatprep.subr.bf16.mxu0 0
    %2839 = vmatpush1.bf16.msra.mxu0 0
    %2840 = vmatprep.subr.bf16.mxu0 0
    %2841 = vmatpush1.bf16.msra.mxu0 0
    %2842 = vmatprep.subr.bf16.mxu0 0
    %2843 = vmatpush1.bf16.msra.mxu0 0
    %2844 = vmatprep.subr.bf16.mxu0 0
    %2845 = vmatpush1.bf16.msra.mxu0 0
    %2846 = vmatprep.subr.bf16.mxu0 0
    %2847 = vmatpush1.bf16.msra.mxu0 0
    %2848 = vmatprep.mubr.bf16.mxu0 0
    %2849 = vmatmul.mubr.bf16.gmra.mrb[0].mxu0 %v743
    %v2850 = vpop.f32.mrb[0].mxu0
    %v2851 = vadd.f32 %v1443, %v2850
    %v2852 = vpop.f32.mrb[0].mxu0
    %v2853 = vpop.f32.mrb[0].mxu0
    %v2854 = vadd.f32 %v1446, %v2853
    %v2855 = vpop.f32.mrb[0].mxu0
    %2856 = vdwg.mxu0
    %v2858 = vsel %vm235, %v625, 0
    %2860 = vmatprep.subr.bf16.mxu0 0
    %2861 = vmatpush1.bf16.msra.mxu0 %v2858
    %2862 = vmatprep.subr.bf16.mxu0 0
    %2863 = vmatpush1.bf16.msra.mxu0 0
    %2864 = vmatprep.subr.bf16.mxu0 0
    %2865 = vmatpush1.bf16.msra.mxu0 0
    %2866 = vmatprep.subr.bf16.mxu0 0
    %2867 = vmatpush1.bf16.msra.mxu0 0
    %2868 = vmatprep.subr.bf16.mxu0 0
    %2869 = vmatpush1.bf16.msra.mxu0 0
    %2870 = vmatprep.subr.bf16.mxu0 0
    %2871 = vmatpush1.bf16.msra.mxu0 0
    %2872 = vmatprep.subr.bf16.mxu0 0
    %2873 = vmatpush1.bf16.msra.mxu0 0
    %2874 = vmatprep.subr.bf16.mxu0 0
    %2875 = vmatpush1.bf16.msra.mxu0 0
    %2876 = vmatprep.subr.bf16.mxu0 0
    %2877 = vmatpush1.bf16.msra.mxu0 0
    %2878 = vmatprep.subr.bf16.mxu0 0
    %2879 = vmatpush1.bf16.msra.mxu0 0
    %2880 = vmatprep.subr.bf16.mxu0 0
    %2881 = vmatpush1.bf16.msra.mxu0 0
    %2882 = vmatprep.subr.bf16.mxu0 0
    %2883 = vmatpush1.bf16.msra.mxu0 0
    %2884 = vmatprep.subr.bf16.mxu0 0
    %2885 = vmatpush1.bf16.msra.mxu0 0
    %2886 = vmatprep.subr.bf16.mxu0 0
    %2887 = vmatpush1.bf16.msra.mxu0 0
    %2888 = vmatprep.subr.bf16.mxu0 0
    %2889 = vmatpush1.bf16.msra.mxu0 0
    %2890 = vmatprep.subr.bf16.mxu0 0
    %2891 = vmatpush1.bf16.msra.mxu0 0
    %2892 = vmatprep.mubr.bf16.mxu0 0
    %2893 = vmatmul.mubr.bf16.gmra.mrb[0].mxu0 %v743
    %v2894 = vpop.f32.mrb[0].mxu0
    %v2895 = vadd.f32 %v1487, %v2894
    %v2896 = vpop.f32.mrb[0].mxu0
    %v2897 = vpop.f32.mrb[0].mxu0
    %v2898 = vadd.f32 %v1490, %v2897
    %v2899 = vpop.f32.mrb[0].mxu0
    %2900 = vdwg.mxu0
    %v2902 = vsel %vm235, %v626, 0
    %2904 = vmatprep.subr.bf16.mxu0 0
    %2905 = vmatpush1.bf16.msra.mxu0 %v2902
    %2906 = vmatprep.subr.bf16.mxu0 0
    %2907 = vmatpush1.bf16.msra.mxu0 0
    %2908 = vmatprep.subr.bf16.mxu0 0
    %2909 = vmatpush1.bf16.msra.mxu0 0
    %2910 = vmatprep.subr.bf16.mxu0 0
    %2911 = vmatpush1.bf16.msra.mxu0 0
    %2912 = vmatprep.subr.bf16.mxu0 0
    %2913 = vmatpush1.bf16.msra.mxu0 0
    %2914 = vmatprep.subr.bf16.mxu0 0
    %2915 = vmatpush1.bf16.msra.mxu0 0
    %2916 = vmatprep.subr.bf16.mxu0 0
    %2917 = vmatpush1.bf16.msra.mxu0 0
    %2918 = vmatprep.subr.bf16.mxu0 0
    %2919 = vmatpush1.bf16.msra.mxu0 0
    %2920 = vmatprep.subr.bf16.mxu0 0
    %2921 = vmatpush1.bf16.msra.mxu0 0
    %2922 = vmatprep.subr.bf16.mxu0 0
    %2923 = vmatpush1.bf16.msra.mxu0 0
    %2924 = vmatprep.subr.bf16.mxu0 0
    %2925 = vmatpush1.bf16.msra.mxu0 0
    %2926 = vmatprep.subr.bf16.mxu0 0
    %2927 = vmatpush1.bf16.msra.mxu0 0
    %2928 = vmatprep.subr.bf16.mxu0 0
    %2929 = vmatpush1.bf16.msra.mxu0 0
    %2930 = vmatprep.subr.bf16.mxu0 0
    %2931 = vmatpush1.bf16.msra.mxu0 0
    %2932 = vmatprep.subr.bf16.mxu0 0
    %2933 = vmatpush1.bf16.msra.mxu0 0
    %2934 = vmatprep.subr.bf16.mxu0 0
    %2935 = vmatpush1.bf16.msra.mxu0 0
    %2936 = vmatprep.mubr.bf16.mxu0 0
    %2937 = vmatmul.mubr.bf16.gmra.mrb[0].mxu0 %v743
    %v2938 = vpop.f32.mrb[0].mxu0
    %v2939 = vadd.f32 %v1531, %v2938
    %v2940 = vpop.f32.mrb[0].mxu0
    %v2941 = vpop.f32.mrb[0].mxu0
    %v2942 = vadd.f32 %v1534, %v2941
    %v2943 = vpop.f32.mrb[0].mxu0
    %2944 = vdwg.mxu0
    %v2946 = vsel %vm235, %v627, 0
    %2948 = vmatprep.subr.bf16.mxu0 0
    %2949 = vmatpush1.bf16.msra.mxu0 %v2946
    %2950 = vmatprep.subr.bf16.mxu0 0
    %2951 = vmatpush1.bf16.msra.mxu0 0
    %2952 = vmatprep.subr.bf16.mxu0 0
    %2953 = vmatpush1.bf16.msra.mxu0 0
    %2954 = vmatprep.subr.bf16.mxu0 0
    %2955 = vmatpush1.bf16.msra.mxu0 0
    %2956 = vmatprep.subr.bf16.mxu0 0
    %2957 = vmatpush1.bf16.msra.mxu0 0
    %2958 = vmatprep.subr.bf16.mxu0 0
    %2959 = vmatpush1.bf16.msra.mxu0 0
    %2960 = vmatprep.subr.bf16.mxu0 0
    %2961 = vmatpush1.bf16.msra.mxu0 0
    %2962 = vmatprep.subr.bf16.mxu0 0
    %2963 = vmatpush1.bf16.msra.mxu0 0
    %2964 = vmatprep.subr.bf16.mxu0 0
    %2965 = vmatpush1.bf16.msra.mxu0 0
    %2966 = vmatprep.subr.bf16.mxu0 0
    %2967 = vmatpush1.bf16.msra.mxu0 0
    %2968 = vmatprep.subr.bf16.mxu0 0
    %2969 = vmatpush1.bf16.msra.mxu0 0
    %2970 = vmatprep.subr.bf16.mxu0 0
    %2971 = vmatpush1.bf16.msra.mxu0 0
    %2972 = vmatprep.subr.bf16.mxu0 0
    %2973 = vmatpush1.bf16.msra.mxu0 0
    %2974 = vmatprep.subr.bf16.mxu0 0
    %2975 = vmatpush1.bf16.msra.mxu0 0
    %2976 = vmatprep.subr.bf16.mxu0 0
    %2977 = vmatpush1.bf16.msra.mxu0 0
    %2978 = vmatprep.subr.bf16.mxu0 0
    %2979 = vmatpush1.bf16.msra.mxu0 0
    %2980 = vmatprep.mubr.bf16.mxu0 0
    %2981 = vmatmul.mubr.bf16.gmra.mrb[0].mxu0 %v743
    %v2982 = vpop.f32.mrb[0].mxu0
    %v2983 = vadd.f32 %v1575, %v2982
    %v2984 = vpop.f32.mrb[0].mxu0
    %v2985 = vpop.f32.mrb[0].mxu0
    %v2986 = vadd.f32 %v1578, %v2985
    %v2987 = vpop.f32.mrb[0].mxu0
    %2988 = vdwg.mxu0
    %v2990 = vsel %vm235, %v628, 0
    %2992 = vmatprep.subr.bf16.mxu0 0
    %2993 = vmatpush1.bf16.msra.mxu0 %v2990
    %2994 = vmatprep.subr.bf16.mxu0 0
    %2995 = vmatpush1.bf16.msra.mxu0 0
    %2996 = vmatprep.subr.bf16.mxu0 0
    %2997 = vmatpush1.bf16.msra.mxu0 0
    %2998 = vmatprep.subr.bf16.mxu0 0
    %2999 = vmatpush1.bf16.msra.mxu0 0
    %3000 = vmatprep.subr.bf16.mxu0 0
    %3001 = vmatpush1.bf16.msra.mxu0 0
    %3002 = vmatprep.subr.bf16.mxu0 0
    %3003 = vmatpush1.bf16.msra.mxu0 0
    %3004 = vmatprep.subr.bf16.mxu0 0
    %3005 = vmatpush1.bf16.msra.mxu0 0
    %3006 = vmatprep.subr.bf16.mxu0 0
    %3007 = vmatpush1.bf16.msra.mxu0 0
    %3008 = vmatprep.subr.bf16.mxu0 0
    %3009 = vmatpush1.bf16.msra.mxu0 0
    %3010 = vmatprep.subr.bf16.mxu0 0
    %3011 = vmatpush1.bf16.msra.mxu0 0
    %3012 = vmatprep.subr.bf16.mxu0 0
    %3013 = vmatpush1.bf16.msra.mxu0 0
    %3014 = vmatprep.subr.bf16.mxu0 0
    %3015 = vmatpush1.bf16.msra.mxu0 0
    %3016 = vmatprep.subr.bf16.mxu0 0
    %3017 = vmatpush1.bf16.msra.mxu0 0
    %3018 = vmatprep.subr.bf16.mxu0 0
    %3019 = vmatpush1.bf16.msra.mxu0 0
    %3020 = vmatprep.subr.bf16.mxu0 0
    %3021 = vmatpush1.bf16.msra.mxu0 0
    %3022 = vmatprep.subr.bf16.mxu0 0
    %3023 = vmatpush1.bf16.msra.mxu0 0
    %3024 = vmatprep.mubr.bf16.mxu0 0
    %3025 = vmatmul.mubr.bf16.gmra.mrb[0].mxu0 %v743
    %v3026 = vpop.f32.mrb[0].mxu0
    %v3027 = vadd.f32 %v1619, %v3026
    %v3028 = vpop.f32.mrb[0].mxu0
    %v3029 = vpop.f32.mrb[0].mxu0
    %v3030 = vadd.f32 %v1622, %v3029
    %v3031 = vpop.f32.mrb[0].mxu0
    %3032 = vdwg.mxu0
    %v3034 = vsel %vm235, %v629, 0
    %3036 = vmatprep.subr.bf16.mxu0 0
    %3037 = vmatpush1.bf16.msra.mxu0 %v3034
    %3038 = vmatprep.subr.bf16.mxu0 0
    %3039 = vmatpush1.bf16.msra.mxu0 0
    %3040 = vmatprep.subr.bf16.mxu0 0
    %3041 = vmatpush1.bf16.msra.mxu0 0
    %3042 = vmatprep.subr.bf16.mxu0 0
    %3043 = vmatpush1.bf16.msra.mxu0 0
    %3044 = vmatprep.subr.bf16.mxu0 0
    %3045 = vmatpush1.bf16.msra.mxu0 0
    %3046 = vmatprep.subr.bf16.mxu0 0
    %3047 = vmatpush1.bf16.msra.mxu0 0
    %3048 = vmatprep.subr.bf16.mxu0 0
    %3049 = vmatpush1.bf16.msra.mxu0 0
    %3050 = vmatprep.subr.bf16.mxu0 0
    %3051 = vmatpush1.bf16.msra.mxu0 0
    %3052 = vmatprep.subr.bf16.mxu0 0
    %3053 = vmatpush1.bf16.msra.mxu0 0
    %3054 = vmatprep.subr.bf16.mxu0 0
    %3055 = vmatpush1.bf16.msra.mxu0 0
    %3056 = vmatprep.subr.bf16.mxu0 0
    %3057 = vmatpush1.bf16.msra.mxu0 0
    %3058 = vmatprep.subr.bf16.mxu0 0
    %3059 = vmatpush1.bf16.msra.mxu0 0
    %3060 = vmatprep.subr.bf16.mxu0 0
    %3061 = vmatpush1.bf16.msra.mxu0 0
    %3062 = vmatprep.subr.bf16.mxu0 0
    %3063 = vmatpush1.bf16.msra.mxu0 0
    %3064 = vmatprep.subr.bf16.mxu0 0
    %3065 = vmatpush1.bf16.msra.mxu0 0
    %3066 = vmatprep.subr.bf16.mxu0 0
    %3067 = vmatpush1.bf16.msra.mxu0 0
    %3068 = vmatprep.mubr.bf16.mxu0 0
    %3069 = vmatmul.mubr.bf16.gmra.mrb[0].mxu0 %v743
    %v3070 = vpop.f32.mrb[0].mxu0
    %v3071 = vadd.f32 %v1663, %v3070
    %v3072 = vpop.f32.mrb[0].mxu0
    %v3073 = vpop.f32.mrb[0].mxu0
    %v3074 = vadd.f32 %v1666, %v3073
    %v3075 = vpop.f32.mrb[0].mxu0
    %3076 = vdwg.mxu0
    %v3078 = vsel %vm235, %v630, 0
    %3080 = vmatprep.subr.bf16.mxu0 0
    %3081 = vmatpush1.bf16.msra.mxu0 %v3078
    %3082 = vmatprep.subr.bf16.mxu0 0
    %3083 = vmatpush1.bf16.msra.mxu0 0
    %3084 = vmatprep.subr.bf16.mxu0 0
    %3085 = vmatpush1.bf16.msra.mxu0 0
    %3086 = vmatprep.subr.bf16.mxu0 0
    %3087 = vmatpush1.bf16.msra.mxu0 0
    %3088 = vmatprep.subr.bf16.mxu0 0
    %3089 = vmatpush1.bf16.msra.mxu0 0
    %3090 = vmatprep.subr.bf16.mxu0 0
    %3091 = vmatpush1.bf16.msra.mxu0 0
    %3092 = vmatprep.subr.bf16.mxu0 0
    %3093 = vmatpush1.bf16.msra.mxu0 0
    %3094 = vmatprep.subr.bf16.mxu0 0
    %3095 = vmatpush1.bf16.msra.mxu0 0
    %3096 = vmatprep.subr.bf16.mxu0 0
    %3097 = vmatpush1.bf16.msra.mxu0 0
    %3098 = vmatprep.subr.bf16.mxu0 0
    %3099 = vmatpush1.bf16.msra.mxu0 0
    %3100 = vmatprep.subr.bf16.mxu0 0
    %3101 = vmatpush1.bf16.msra.mxu0 0
    %3102 = vmatprep.subr.bf16.mxu0 0
    %3103 = vmatpush1.bf16.msra.mxu0 0
    %3104 = vmatprep.subr.bf16.mxu0 0
    %3105 = vmatpush1.bf16.msra.mxu0 0
    %3106 = vmatprep.subr.bf16.mxu0 0
    %3107 = vmatpush1.bf16.msra.mxu0 0
    %3108 = vmatprep.subr.bf16.mxu0 0
    %3109 = vmatpush1.bf16.msra.mxu0 0
    %3110 = vmatprep.subr.bf16.mxu0 0
    %3111 = vmatpush1.bf16.msra.mxu0 0
    %3112 = vmatprep.mubr.bf16.mxu0 0
    %3113 = vmatmul.mubr.bf16.gmra.mrb[0].mxu0 %v743
    %v3114 = vpop.f32.mrb[0].mxu0
    %v3115 = vadd.f32 %v1707, %v3114
    %v3116 = vpop.f32.mrb[0].mxu0
    %v3117 = vpop.f32.mrb[0].mxu0
    %v3118 = vadd.f32 %v1710, %v3117
    %v3119 = vpop.f32.mrb[0].mxu0
    %3120 = vdwg.mxu0
    %v3122 = vsel %vm235, %v631, 0
    %3124 = vmatprep.subr.bf16.mxu0 0
    %3125 = vmatpush1.bf16.msra.mxu0 %v3122
    %3126 = vmatprep.subr.bf16.mxu0 0
    %3127 = vmatpush1.bf16.msra.mxu0 0
    %3128 = vmatprep.subr.bf16.mxu0 0
    %3129 = vmatpush1.bf16.msra.mxu0 0
    %3130 = vmatprep.subr.bf16.mxu0 0
    %3131 = vmatpush1.bf16.msra.mxu0 0
    %3132 = vmatprep.subr.bf16.mxu0 0
    %3133 = vmatpush1.bf16.msra.mxu0 0
    %3134 = vmatprep.subr.bf16.mxu0 0
    %3135 = vmatpush1.bf16.msra.mxu0 0
    %3136 = vmatprep.subr.bf16.mxu0 0
    %3137 = vmatpush1.bf16.msra.mxu0 0
    %3138 = vmatprep.subr.bf16.mxu0 0
    %3139 = vmatpush1.bf16.msra.mxu0 0
    %3140 = vmatprep.subr.bf16.mxu0 0
    %3141 = vmatpush1.bf16.msra.mxu0 0
    %3142 = vmatprep.subr.bf16.mxu0 0
    %3143 = vmatpush1.bf16.msra.mxu0 0
    %3144 = vmatprep.subr.bf16.mxu0 0
    %3145 = vmatpush1.bf16.msra.mxu0 0
    %3146 = vmatprep.subr.bf16.mxu0 0
    %3147 = vmatpush1.bf16.msra.mxu0 0
    %3148 = vmatprep.subr.bf16.mxu0 0
    %3149 = vmatpush1.bf16.msra.mxu0 0
    %3150 = vmatprep.subr.bf16.mxu0 0
    %3151 = vmatpush1.bf16.msra.mxu0 0
    %3152 = vmatprep.subr.bf16.mxu0 0
    %3153 = vmatpush1.bf16.msra.mxu0 0
    %3154 = vmatprep.subr.bf16.mxu0 0
    %3155 = vmatpush1.bf16.msra.mxu0 0
    %3156 = vmatprep.mubr.bf16.mxu0 0
    %3157 = vmatmul.mubr.bf16.gmra.mrb[0].mxu0 %v743
    %v3158 = vpop.f32.mrb[0].mxu0
    %v3159 = vadd.f32 %v1751, %v3158
    %v3160 = vpop.f32.mrb[0].mxu0
    %v3161 = vpop.f32.mrb[0].mxu0
    %v3162 = vadd.f32 %v1754, %v3161
    %v3163 = vpop.f32.mrb[0].mxu0
    %3164 = vdwg.mxu0
    %v3166 = vsel %vm235, %v632, 0
    %3168 = vmatprep.subr.bf16.mxu0 0
    %3169 = vmatpush1.bf16.msra.mxu0 %v3166
    %3170 = vmatprep.subr.bf16.mxu0 0
    %3171 = vmatpush1.bf16.msra.mxu0 0
    %3172 = vmatprep.subr.bf16.mxu0 0
    %3173 = vmatpush1.bf16.msra.mxu0 0
    %3174 = vmatprep.subr.bf16.mxu0 0
    %3175 = vmatpush1.bf16.msra.mxu0 0
    %3176 = vmatprep.subr.bf16.mxu0 0
    %3177 = vmatpush1.bf16.msra.mxu0 0
    %3178 = vmatprep.subr.bf16.mxu0 0
    %3179 = vmatpush1.bf16.msra.mxu0 0
    %3180 = vmatprep.subr.bf16.mxu0 0
    %3181 = vmatpush1.bf16.msra.mxu0 0
    %3182 = vmatprep.subr.bf16.mxu0 0
    %3183 = vmatpush1.bf16.msra.mxu0 0
    %3184 = vmatprep.subr.bf16.mxu0 0
    %3185 = vmatpush1.bf16.msra.mxu0 0
    %3186 = vmatprep.subr.bf16.mxu0 0
    %3187 = vmatpush1.bf16.msra.mxu0 0
    %3188 = vmatprep.subr.bf16.mxu0 0
    %3189 = vmatpush1.bf16.msra.mxu0 0
    %3190 = vmatprep.subr.bf16.mxu0 0
    %3191 = vmatpush1.bf16.msra.mxu0 0
    %3192 = vmatprep.subr.bf16.mxu0 0
    %3193 = vmatpush1.bf16.msra.mxu0 0
    %3194 = vmatprep.subr.bf16.mxu0 0
    %3195 = vmatpush1.bf16.msra.mxu0 0
    %3196 = vmatprep.subr.bf16.mxu0 0
    %3197 = vmatpush1.bf16.msra.mxu0 0
    %3198 = vmatprep.subr.bf16.mxu0 0
    %3199 = vmatpush1.bf16.msra.mxu0 0
    %3200 = vmatprep.mubr.bf16.mxu0 0
    %3201 = vmatmul.mubr.bf16.gmra.mrb[0].mxu0 %v743
    %v3202 = vpop.f32.mrb[0].mxu0
    %v3203 = vadd.f32 %v1795, %v3202
    %v3204 = vpop.f32.mrb[0].mxu0
    %v3205 = vpop.f32.mrb[0].mxu0
    %v3206 = vadd.f32 %v1798, %v3205
    %v3207 = vpop.f32.mrb[0].mxu0
    %3208 = vdwg.mxu0
    %v3210 = vsel %vm235, %v633, 0
    %3212 = vmatprep.subr.bf16.mxu0 0
    %3213 = vmatpush1.bf16.msra.mxu0 %v3210
    %3214 = vmatprep.subr.bf16.mxu0 0
    %3215 = vmatpush1.bf16.msra.mxu0 0
    %3216 = vmatprep.subr.bf16.mxu0 0
    %3217 = vmatpush1.bf16.msra.mxu0 0
    %3218 = vmatprep.subr.bf16.mxu0 0
    %3219 = vmatpush1.bf16.msra.mxu0 0
    %3220 = vmatprep.subr.bf16.mxu0 0
    %3221 = vmatpush1.bf16.msra.mxu0 0
    %3222 = vmatprep.subr.bf16.mxu0 0
    %3223 = vmatpush1.bf16.msra.mxu0 0
    %3224 = vmatprep.subr.bf16.mxu0 0
    %3225 = vmatpush1.bf16.msra.mxu0 0
    %3226 = vmatprep.subr.bf16.mxu0 0
    %3227 = vmatpush1.bf16.msra.mxu0 0
    %3228 = vmatprep.subr.bf16.mxu0 0
    %3229 = vmatpush1.bf16.msra.mxu0 0
    %3230 = vmatprep.subr.bf16.mxu0 0
    %3231 = vmatpush1.bf16.msra.mxu0 0
    %3232 = vmatprep.subr.bf16.mxu0 0
    %3233 = vmatpush1.bf16.msra.mxu0 0
    %3234 = vmatprep.subr.bf16.mxu0 0
    %3235 = vmatpush1.bf16.msra.mxu0 0
    %3236 = vmatprep.subr.bf16.mxu0 0
    %3237 = vmatpush1.bf16.msra.mxu0 0
    %3238 = vmatprep.subr.bf16.mxu0 0
    %3239 = vmatpush1.bf16.msra.mxu0 0
    %3240 = vmatprep.subr.bf16.mxu0 0
    %3241 = vmatpush1.bf16.msra.mxu0 0
    %3242 = vmatprep.subr.bf16.mxu0 0
    %3243 = vmatpush1.bf16.msra.mxu0 0
    %3244 = vmatprep.mubr.bf16.mxu0 0
    %3245 = vmatmul.mubr.bf16.gmra.mrb[0].mxu0 %v743
    %v3246 = vpop.f32.mrb[0].mxu0
    %v3247 = vadd.f32 %v1839, %v3246
    %v3248 = vpop.f32.mrb[0].mxu0
    %v3249 = vpop.f32.mrb[0].mxu0
    %v3250 = vadd.f32 %v1842, %v3249
    %v3251 = vpop.f32.mrb[0].mxu0
    %3252 = vdwg.mxu0
    %v3254 = vsel %vm235, %v634, 0
    %3256 = vmatprep.subr.bf16.mxu0 0
    %3257 = vmatpush1.bf16.msra.mxu0 %v3254
    %3258 = vmatprep.subr.bf16.mxu0 0
    %3259 = vmatpush1.bf16.msra.mxu0 0
    %3260 = vmatprep.subr.bf16.mxu0 0
    %3261 = vmatpush1.bf16.msra.mxu0 0
    %3262 = vmatprep.subr.bf16.mxu0 0
    %3263 = vmatpush1.bf16.msra.mxu0 0
    %3264 = vmatprep.subr.bf16.mxu0 0
    %3265 = vmatpush1.bf16.msra.mxu0 0
    %3266 = vmatprep.subr.bf16.mxu0 0
    %3267 = vmatpush1.bf16.msra.mxu0 0
    %3268 = vmatprep.subr.bf16.mxu0 0
    %3269 = vmatpush1.bf16.msra.mxu0 0
    %3270 = vmatprep.subr.bf16.mxu0 0
    %3271 = vmatpush1.bf16.msra.mxu0 0
    %3272 = vmatprep.subr.bf16.mxu0 0
    %3273 = vmatpush1.bf16.msra.mxu0 0
    %3274 = vmatprep.subr.bf16.mxu0 0
    %3275 = vmatpush1.bf16.msra.mxu0 0
    %3276 = vmatprep.subr.bf16.mxu0 0
    %3277 = vmatpush1.bf16.msra.mxu0 0
    %3278 = vmatprep.subr.bf16.mxu0 0
    %3279 = vmatpush1.bf16.msra.mxu0 0
    %3280 = vmatprep.subr.bf16.mxu0 0
    %3281 = vmatpush1.bf16.msra.mxu0 0
    %3282 = vmatprep.subr.bf16.mxu0 0
    %3283 = vmatpush1.bf16.msra.mxu0 0
    %3284 = vmatprep.subr.bf16.mxu0 0
    %3285 = vmatpush1.bf16.msra.mxu0 0
    %3286 = vmatprep.subr.bf16.mxu0 0
    %3287 = vmatpush1.bf16.msra.mxu0 0
    %3288 = vmatprep.mubr.bf16.mxu0 0
    %3289 = vmatmul.mubr.bf16.gmra.mrb[0].mxu0 %v743
    %v3290 = vpop.f32.mrb[0].mxu0
    %v3291 = vadd.f32 %v1883, %v3290
    %v3292 = vpop.f32.mrb[0].mxu0
    %v3293 = vpop.f32.mrb[0].mxu0
    %v3294 = vadd.f32 %v1886, %v3293
    %v3295 = vpop.f32.mrb[0].mxu0
    %3296 = vdwg.mxu0
    %v3298 = vsel %vm235, %v635, 0
    %3300 = vmatprep.subr.bf16.mxu0 0
    %3301 = vmatpush1.bf16.msra.mxu0 %v3298
    %3302 = vmatprep.subr.bf16.mxu0 0
    %3303 = vmatpush1.bf16.msra.mxu0 0
    %3304 = vmatprep.subr.bf16.mxu0 0
    %3305 = vmatpush1.bf16.msra.mxu0 0
    %3306 = vmatprep.subr.bf16.mxu0 0
    %3307 = vmatpush1.bf16.msra.mxu0 0
    %3308 = vmatprep.subr.bf16.mxu0 0
    %3309 = vmatpush1.bf16.msra.mxu0 0
    %3310 = vmatprep.subr.bf16.mxu0 0
    %3311 = vmatpush1.bf16.msra.mxu0 0
    %3312 = vmatprep.subr.bf16.mxu0 0
    %3313 = vmatpush1.bf16.msra.mxu0 0
    %3314 = vmatprep.subr.bf16.mxu0 0
    %3315 = vmatpush1.bf16.msra.mxu0 0
    %3316 = vmatprep.subr.bf16.mxu0 0
    %3317 = vmatpush1.bf16.msra.mxu0 0
    %3318 = vmatprep.subr.bf16.mxu0 0
    %3319 = vmatpush1.bf16.msra.mxu0 0
    %3320 = vmatprep.subr.bf16.mxu0 0
    %3321 = vmatpush1.bf16.msra.mxu0 0
    %3322 = vmatprep.subr.bf16.mxu0 0
    %3323 = vmatpush1.bf16.msra.mxu0 0
    %3324 = vmatprep.subr.bf16.mxu0 0
    %3325 = vmatpush1.bf16.msra.mxu0 0
    %3326 = vmatprep.subr.bf16.mxu0 0
    %3327 = vmatpush1.bf16.msra.mxu0 0
    %3328 = vmatprep.subr.bf16.mxu0 0
    %3329 = vmatpush1.bf16.msra.mxu0 0
    %3330 = vmatprep.subr.bf16.mxu0 0
    %3331 = vmatpush1.bf16.msra.mxu0 0
    %3332 = vmatprep.mubr.bf16.mxu0 0
    %3333 = vmatmul.mubr.bf16.gmra.mrb[0].mxu0 %v743
    %v3334 = vpop.f32.mrb[0].mxu0
    %v3335 = vadd.f32 %v1927, %v3334
    %v3336 = vpop.f32.mrb[0].mxu0
    %v3337 = vpop.f32.mrb[0].mxu0
    %v3338 = vadd.f32 %v1930, %v3337
    %v3339 = vpop.f32.mrb[0].mxu0
    %3340 = vdwg.mxu0
    %v3342 = vsel %vm235, %v636, 0
    %3344 = vmatprep.subr.bf16.mxu0 0
    %3345 = vmatpush1.bf16.msra.mxu0 %v3342
    %3346 = vmatprep.subr.bf16.mxu0 0
    %3347 = vmatpush1.bf16.msra.mxu0 0
    %3348 = vmatprep.subr.bf16.mxu0 0
    %3349 = vmatpush1.bf16.msra.mxu0 0
    %3350 = vmatprep.subr.bf16.mxu0 0
    %3351 = vmatpush1.bf16.msra.mxu0 0
    %3352 = vmatprep.subr.bf16.mxu0 0
    %3353 = vmatpush1.bf16.msra.mxu0 0
    %3354 = vmatprep.subr.bf16.mxu0 0
    %3355 = vmatpush1.bf16.msra.mxu0 0
    %3356 = vmatprep.subr.bf16.mxu0 0
    %3357 = vmatpush1.bf16.msra.mxu0 0
    %3358 = vmatprep.subr.bf16.mxu0 0
    %3359 = vmatpush1.bf16.msra.mxu0 0
    %3360 = vmatprep.subr.bf16.mxu0 0
    %3361 = vmatpush1.bf16.msra.mxu0 0
    %3362 = vmatprep.subr.bf16.mxu0 0
    %3363 = vmatpush1.bf16.msra.mxu0 0
    %3364 = vmatprep.subr.bf16.mxu0 0
    %3365 = vmatpush1.bf16.msra.mxu0 0
    %3366 = vmatprep.subr.bf16.mxu0 0
    %3367 = vmatpush1.bf16.msra.mxu0 0
    %3368 = vmatprep.subr.bf16.mxu0 0
    %3369 = vmatpush1.bf16.msra.mxu0 0
    %3370 = vmatprep.subr.bf16.mxu0 0
    %3371 = vmatpush1.bf16.msra.mxu0 0
    %3372 = vmatprep.subr.bf16.mxu0 0
    %3373 = vmatpush1.bf16.msra.mxu0 0
    %3374 = vmatprep.subr.bf16.mxu0 0
    %3375 = vmatpush1.bf16.msra.mxu0 0
    %3376 = vmatprep.mubr.bf16.mxu0 0
    %3377 = vmatmul.mubr.bf16.gmra.mrb[0].mxu0 %v743
    %v3378 = vpop.f32.mrb[0].mxu0
    %v3379 = vadd.f32 %v1971, %v3378
    %v3380 = vpop.f32.mrb[0].mxu0
    %v3381 = vpop.f32.mrb[0].mxu0
    %v3382 = vadd.f32 %v1974, %v3381
    %v3383 = vpop.f32.mrb[0].mxu0
    %3384 = vdwg.mxu0
    %v3386 = vsel %vm235, %v637, 0
    %3388 = vmatprep.subr.bf16.mxu0 0
    %3389 = vmatpush1.bf16.msra.mxu0 %v3386
    %3390 = vmatprep.subr.bf16.mxu0 0
    %3391 = vmatpush1.bf16.msra.mxu0 0
    %3392 = vmatprep.subr.bf16.mxu0 0
    %3393 = vmatpush1.bf16.msra.mxu0 0
    %3394 = vmatprep.subr.bf16.mxu0 0
    %3395 = vmatpush1.bf16.msra.mxu0 0
    %3396 = vmatprep.subr.bf16.mxu0 0
    %3397 = vmatpush1.bf16.msra.mxu0 0
    %3398 = vmatprep.subr.bf16.mxu0 0
    %3399 = vmatpush1.bf16.msra.mxu0 0
    %3400 = vmatprep.subr.bf16.mxu0 0
    %3401 = vmatpush1.bf16.msra.mxu0 0
    %3402 = vmatprep.subr.bf16.mxu0 0
    %3403 = vmatpush1.bf16.msra.mxu0 0
    %3404 = vmatprep.subr.bf16.mxu0 0
    %3405 = vmatpush1.bf16.msra.mxu0 0
    %3406 = vmatprep.subr.bf16.mxu0 0
    %3407 = vmatpush1.bf16.msra.mxu0 0
    %3408 = vmatprep.subr.bf16.mxu0 0
    %3409 = vmatpush1.bf16.msra.mxu0 0
    %3410 = vmatprep.subr.bf16.mxu0 0
    %3411 = vmatpush1.bf16.msra.mxu0 0
    %3412 = vmatprep.subr.bf16.mxu0 0
    %3413 = vmatpush1.bf16.msra.mxu0 0
    %3414 = vmatprep.subr.bf16.mxu0 0
    %3415 = vmatpush1.bf16.msra.mxu0 0
    %3416 = vmatprep.subr.bf16.mxu0 0
    %3417 = vmatpush1.bf16.msra.mxu0 0
    %3418 = vmatprep.subr.bf16.mxu0 0
    %3419 = vmatpush1.bf16.msra.mxu0 0
    %3420 = vmatprep.mubr.bf16.mxu0 0
    %3421 = vmatmul.mubr.bf16.gmra.mrb[0].mxu0 %v743
    %v3422 = vpop.f32.mrb[0].mxu0
    %v3423 = vadd.f32 %v2015, %v3422
    %v3424 = vpop.f32.mrb[0].mxu0
    %v3425 = vpop.f32.mrb[0].mxu0
    %v3426 = vadd.f32 %v2018, %v3425
    %v3427 = vpop.f32.mrb[0].mxu0
    %3428 = vdwg.mxu0
    %v3430 = vsel %vm235, %v638, 0
    %3432 = vmatprep.subr.bf16.mxu0 0
    %3433 = vmatpush1.bf16.msra.mxu0 %v3430
    %3434 = vmatprep.subr.bf16.mxu0 0
    %3435 = vmatpush1.bf16.msra.mxu0 0
    %3436 = vmatprep.subr.bf16.mxu0 0
    %3437 = vmatpush1.bf16.msra.mxu0 0
    %3438 = vmatprep.subr.bf16.mxu0 0
    %3439 = vmatpush1.bf16.msra.mxu0 0
    %3440 = vmatprep.subr.bf16.mxu0 0
    %3441 = vmatpush1.bf16.msra.mxu0 0
    %3442 = vmatprep.subr.bf16.mxu0 0
    %3443 = vmatpush1.bf16.msra.mxu0 0
    %3444 = vmatprep.subr.bf16.mxu0 0
    %3445 = vmatpush1.bf16.msra.mxu0 0
    %3446 = vmatprep.subr.bf16.mxu0 0
    %3447 = vmatpush1.bf16.msra.mxu0 0
    %3448 = vmatprep.subr.bf16.mxu0 0
    %3449 = vmatpush1.bf16.msra.mxu0 0
    %3450 = vmatprep.subr.bf16.mxu0 0
    %3451 = vmatpush1.bf16.msra.mxu0 0
    %3452 = vmatprep.subr.bf16.mxu0 0
    %3453 = vmatpush1.bf16.msra.mxu0 0
    %3454 = vmatprep.subr.bf16.mxu0 0
    %3455 = vmatpush1.bf16.msra.mxu0 0
    %3456 = vmatprep.subr.bf16.mxu0 0
    %3457 = vmatpush1.bf16.msra.mxu0 0
    %3458 = vmatprep.subr.bf16.mxu0 0
    %3459 = vmatpush1.bf16.msra.mxu0 0
    %3460 = vmatprep.subr.bf16.mxu0 0
    %3461 = vmatpush1.bf16.msra.mxu0 0
    %3462 = vmatprep.subr.bf16.mxu0 0
    %3463 = vmatpush1.bf16.msra.mxu0 0
    %3464 = vmatprep.mubr.bf16.mxu0 0
    %3465 = vmatmul.mubr.bf16.gmra.mrb[0].mxu0 %v743
    %v3466 = vpop.f32.mrb[0].mxu0
    %v3467 = vadd.f32 %v2059, %v3466
    %v3468 = vpop.f32.mrb[0].mxu0
    %v3469 = vpop.f32.mrb[0].mxu0
    %v3470 = vadd.f32 %v2062, %v3469
    %v3471 = vpop.f32.mrb[0].mxu0
    %3472 = vdwg.mxu0
    %v3474 = vsel %vm235, %v639, 0
    %3476 = vmatprep.subr.bf16.mxu0 0
    %3477 = vmatpush1.bf16.msra.mxu0 %v3474
    %3478 = vmatprep.subr.bf16.mxu0 0
    %3479 = vmatpush1.bf16.msra.mxu0 0
    %3480 = vmatprep.subr.bf16.mxu0 0
    %3481 = vmatpush1.bf16.msra.mxu0 0
    %3482 = vmatprep.subr.bf16.mxu0 0
    %3483 = vmatpush1.bf16.msra.mxu0 0
    %3484 = vmatprep.subr.bf16.mxu0 0
    %3485 = vmatpush1.bf16.msra.mxu0 0
    %3486 = vmatprep.subr.bf16.mxu0 0
    %3487 = vmatpush1.bf16.msra.mxu0 0
    %3488 = vmatprep.subr.bf16.mxu0 0
    %3489 = vmatpush1.bf16.msra.mxu0 0
    %3490 = vmatprep.subr.bf16.mxu0 0
    %3491 = vmatpush1.bf16.msra.mxu0 0
    %3492 = vmatprep.subr.bf16.mxu0 0
    %3493 = vmatpush1.bf16.msra.mxu0 0
    %3494 = vmatprep.subr.bf16.mxu0 0
    %3495 = vmatpush1.bf16.msra.mxu0 0
    %3496 = vmatprep.subr.bf16.mxu0 0
    %3497 = vmatpush1.bf16.msra.mxu0 0
    %3498 = vmatprep.subr.bf16.mxu0 0
    %3499 = vmatpush1.bf16.msra.mxu0 0
    %3500 = vmatprep.subr.bf16.mxu0 0
    %3501 = vmatpush1.bf16.msra.mxu0 0
    %3502 = vmatprep.subr.bf16.mxu0 0
    %3503 = vmatpush1.bf16.msra.mxu0 0
    %3504 = vmatprep.subr.bf16.mxu0 0
    %3505 = vmatpush1.bf16.msra.mxu0 0
    %3506 = vmatprep.subr.bf16.mxu0 0
    %3507 = vmatpush1.bf16.msra.mxu0 0
    %3508 = vmatprep.mubr.bf16.mxu0 0
    %3509 = vmatmul.mubr.bf16.gmra.mrb[0].mxu0 %v743
    %v3510 = vpop.f32.mrb[0].mxu0
    %v3511 = vadd.f32 %v2103, %v3510
    %v3512 = vpop.f32.mrb[0].mxu0
    %v3513 = vpop.f32.mrb[0].mxu0
    %v3514 = vadd.f32 %v2106, %v3513
    %v3515 = vpop.f32.mrb[0].mxu0
    %3516 = vdwg.mxu0
    %v3518 = vsel %vm235, %v640, 0
    %3520 = vmatprep.subr.bf16.mxu0 0
    %3521 = vmatpush1.bf16.msra.mxu0 %v3518
    %3522 = vmatprep.subr.bf16.mxu0 0
    %3523 = vmatpush1.bf16.msra.mxu0 0
    %3524 = vmatprep.subr.bf16.mxu0 0
    %3525 = vmatpush1.bf16.msra.mxu0 0
    %3526 = vmatprep.subr.bf16.mxu0 0
    %3527 = vmatpush1.bf16.msra.mxu0 0
    %3528 = vmatprep.subr.bf16.mxu0 0
    %3529 = vmatpush1.bf16.msra.mxu0 0
    %3530 = vmatprep.subr.bf16.mxu0 0
    %3531 = vmatpush1.bf16.msra.mxu0 0
    %3532 = vmatprep.subr.bf16.mxu0 0
    %3533 = vmatpush1.bf16.msra.mxu0 0
    %3534 = vmatprep.subr.bf16.mxu0 0
    %3535 = vmatpush1.bf16.msra.mxu0 0
    %3536 = vmatprep.subr.bf16.mxu0 0
    %3537 = vmatpush1.bf16.msra.mxu0 0
    %3538 = vmatprep.subr.bf16.mxu0 0
    %3539 = vmatpush1.bf16.msra.mxu0 0
    %3540 = vmatprep.subr.bf16.mxu0 0
    %3541 = vmatpush1.bf16.msra.mxu0 0
    %3542 = vmatprep.subr.bf16.mxu0 0
    %3543 = vmatpush1.bf16.msra.mxu0 0
    %3544 = vmatprep.subr.bf16.mxu0 0
    %3545 = vmatpush1.bf16.msra.mxu0 0
    %3546 = vmatprep.subr.bf16.mxu0 0
    %3547 = vmatpush1.bf16.msra.mxu0 0
    %3548 = vmatprep.subr.bf16.mxu0 0
    %3549 = vmatpush1.bf16.msra.mxu0 0
    %3550 = vmatprep.subr.bf16.mxu0 0
    %3551 = vmatpush1.bf16.msra.mxu0 0
    %3552 = vmatprep.mubr.bf16.mxu0 0
    %3553 = vmatmul.mubr.bf16.gmra.mrb[0].mxu0 %v743
    %v3554 = vpop.f32.mrb[0].mxu0
    %v3555 = vadd.f32 %v2147, %v3554
    %v3556 = vpop.f32.mrb[0].mxu0
    %v3557 = vpop.f32.mrb[0].mxu0
    %v3558 = vadd.f32 %v2150, %v3557
    %v3559 = vpop.f32.mrb[0].mxu0
    %3560 = vdwg.mxu0
    %v3561 = vcombine.low %v2191, %v2279
    %v3562 = vcombine.high %v2191, %v2279
    %v3564 = vunpack.c.l.s4 1983009808
    %v3565 = vunpack.c.0.s8 %v3564
    %v3566 = vlaneseq
    %v3567 = vshrl.u32 %v3566, 7
    %v3568 = vsub.s32 %v3565, %v3567
    %v3569 = vrot.slane %v3561, %v3568
    %v3571 = vunpack.c.l.s4 1983009808
    %v3572 = vunpack.c.0.s8 %v3571
    %v3573 = vlaneseq
    %v3574 = vshrl.u32 %v3573, 7
    %v3575 = vsub.s32 %v3572, %v3574
    %v3576 = vrot.slane %v3562, %v3575
    %v3577 = vcombine.low %v2235, %v2323
    %v3578 = vcombine.high %v2235, %v2323
    %v3580 = vunpack.c.l.s4 1983009808
    %v3581 = vunpack.c.0.s8 %v3580
    %v3582 = vlaneseq
    %v3583 = vshrl.u32 %v3582, 7
    %v3584 = vsub.s32 %v3581, %v3583
    %v3585 = vrot.slane %v3577, %v3584
    %v3587 = vunpack.c.l.s4 1983009808
    %v3588 = vunpack.c.0.s8 %v3587
    %v3589 = vlaneseq
    %v3590 = vshrl.u32 %v3589, 7
    %v3591 = vsub.s32 %v3588, %v3590
    %v3592 = vrot.slane %v3578, %v3591
    %v3593 = vcombine.low %v3569, %v3585
    %v3594 = vcombine.high %v3569, %v3585
    %v3596 = vunpack.c.l.s4 1934713408
    %v3597 = vunpack.c.0.s8 %v3596
    %v3598 = vlaneseq
    %v3599 = vshrl.u32 %v3598, 7
    %v3600 = vsub.s32 %v3597, %v3599
    %v3601 = vrot.slane %v3593, %v3600
    %v3603 = vunpack.c.l.s4 1934713408
    %v3604 = vunpack.c.0.s8 %v3603
    %v3605 = vlaneseq
    %v3606 = vshrl.u32 %v3605, 7
    %v3607 = vsub.s32 %v3604, %v3606
    %v3608 = vrot.slane %v3594, %v3607
    %v3609 = vcombine.low %v3576, %v3592
    %v3610 = vcombine.high %v3576, %v3592
    %v3612 = vunpack.c.l.s4 1934713408
    %v3613 = vunpack.c.0.s8 %v3612
    %v3614 = vlaneseq
    %v3615 = vshrl.u32 %v3614, 7
    %v3616 = vsub.s32 %v3613, %v3615
    %v3617 = vrot.slane %v3609, %v3616
    %v3619 = vunpack.c.l.s4 1934713408
    %v3620 = vunpack.c.0.s8 %v3619
    %v3621 = vlaneseq
    %v3622 = vshrl.u32 %v3621, 7
    %v3623 = vsub.s32 %v3620, %v3622
    %v3624 = vrot.slane %v3610, %v3623
    %v3625 = vcombine.high %v3601, 0.0
    %v3626 = vcombine.high %v3608, 0.0
    %v3627 = vcombine.high %v3617, 0.0
    %v3628 = vcombine.high %v3624, 0.0
    %v3629 = vcombine.low %v2194, %v2282
    %v3630 = vcombine.high %v2194, %v2282
    %v3632 = vunpack.c.l.s4 1983009808
    %v3633 = vunpack.c.0.s8 %v3632
    %v3634 = vlaneseq
    %v3635 = vshrl.u32 %v3634, 7
    %v3636 = vsub.s32 %v3633, %v3635
    %v3637 = vrot.slane %v3629, %v3636
    %v3639 = vunpack.c.l.s4 1983009808
    %v3640 = vunpack.c.0.s8 %v3639
    %v3641 = vlaneseq
    %v3642 = vshrl.u32 %v3641, 7
    %v3643 = vsub.s32 %v3640, %v3642
    %v3644 = vrot.slane %v3630, %v3643
    %v3645 = vcombine.low %v2238, %v2326
    %v3646 = vcombine.high %v2238, %v2326
    %v3648 = vunpack.c.l.s4 1983009808
    %v3649 = vunpack.c.0.s8 %v3648
    %v3650 = vlaneseq
    %v3651 = vshrl.u32 %v3650, 7
    %v3652 = vsub.s32 %v3649, %v3651
    %v3653 = vrot.slane %v3645, %v3652
    %v3655 = vunpack.c.l.s4 1983009808
    %v3656 = vunpack.c.0.s8 %v3655
    %v3657 = vlaneseq
    %v3658 = vshrl.u32 %v3657, 7
    %v3659 = vsub.s32 %v3656, %v3658
    %v3660 = vrot.slane %v3646, %v3659
    %v3661 = vcombine.low %v3637, %v3653
    %v3662 = vcombine.high %v3637, %v3653
    %v3664 = vunpack.c.l.s4 1934713408
    %v3665 = vunpack.c.0.s8 %v3664
    %v3666 = vlaneseq
    %v3667 = vshrl.u32 %v3666, 7
    %v3668 = vsub.s32 %v3665, %v3667
    %v3669 = vrot.slane %v3661, %v3668
    %v3671 = vunpack.c.l.s4 1934713408
    %v3672 = vunpack.c.0.s8 %v3671
    %v3673 = vlaneseq
    %v3674 = vshrl.u32 %v3673, 7
    %v3675 = vsub.s32 %v3672, %v3674
    %v3676 = vrot.slane %v3662, %v3675
    %v3677 = vcombine.low %v3644, %v3660
    %v3678 = vcombine.high %v3644, %v3660
    %v3680 = vunpack.c.l.s4 1934713408
    %v3681 = vunpack.c.0.s8 %v3680
    %v3682 = vlaneseq
    %v3683 = vshrl.u32 %v3682, 7
    %v3684 = vsub.s32 %v3681, %v3683
    %v3685 = vrot.slane %v3677, %v3684
    %v3687 = vunpack.c.l.s4 1934713408
    %v3688 = vunpack.c.0.s8 %v3687
    %v3689 = vlaneseq
    %v3690 = vshrl.u32 %v3689, 7
    %v3691 = vsub.s32 %v3688, %v3690
    %v3692 = vrot.slane %v3678, %v3691
    %v3693 = vcombine.high %v3669, 0.0
    %v3694 = vcombine.high %v3676, 0.0
    %v3695 = vcombine.high %v3685, 0.0
    %v3696 = vcombine.high %v3692, 0.0
    %v3697 = vcombine.low %v2367, %v2455
    %v3698 = vcombine.high %v2367, %v2455
    %v3700 = vunpack.c.l.s4 1983009808
    %v3701 = vunpack.c.0.s8 %v3700
    %v3702 = vlaneseq
    %v3703 = vshrl.u32 %v3702, 7
    %v3704 = vsub.s32 %v3701, %v3703
    %v3705 = vrot.slane %v3697, %v3704
    %v3707 = vunpack.c.l.s4 1983009808
    %v3708 = vunpack.c.0.s8 %v3707
    %v3709 = vlaneseq
    %v3710 = vshrl.u32 %v3709, 7
    %v3711 = vsub.s32 %v3708, %v3710
    %v3712 = vrot.slane %v3698, %v3711
    %v3713 = vcombine.low %v2411, %v2499
    %v3714 = vcombine.high %v2411, %v2499
    %v3716 = vunpack.c.l.s4 1983009808
    %v3717 = vunpack.c.0.s8 %v3716
    %v3718 = vlaneseq
    %v3719 = vshrl.u32 %v3718, 7
    %v3720 = vsub.s32 %v3717, %v3719
    %v3721 = vrot.slane %v3713, %v3720
    %v3723 = vunpack.c.l.s4 1983009808
    %v3724 = vunpack.c.0.s8 %v3723
    %v3725 = vlaneseq
    %v3726 = vshrl.u32 %v3725, 7
    %v3727 = vsub.s32 %v3724, %v3726
    %v3728 = vrot.slane %v3714, %v3727
    %v3729 = vcombine.low %v3705, %v3721
    %v3730 = vcombine.high %v3705, %v3721
    %v3732 = vunpack.c.l.s4 1934713408
    %v3733 = vunpack.c.0.s8 %v3732
    %v3734 = vlaneseq
    %v3735 = vshrl.u32 %v3734, 7
    %v3736 = vsub.s32 %v3733, %v3735
    %v3737 = vrot.slane %v3729, %v3736
    %v3739 = vunpack.c.l.s4 1934713408
    %v3740 = vunpack.c.0.s8 %v3739
    %v3741 = vlaneseq
    %v3742 = vshrl.u32 %v3741, 7
    %v3743 = vsub.s32 %v3740, %v3742
    %v3744 = vrot.slane %v3730, %v3743
    %v3745 = vcombine.low %v3712, %v3728
    %v3746 = vcombine.high %v3712, %v3728
    %v3748 = vunpack.c.l.s4 1934713408
    %v3749 = vunpack.c.0.s8 %v3748
    %v3750 = vlaneseq
    %v3751 = vshrl.u32 %v3750, 7
    %v3752 = vsub.s32 %v3749, %v3751
    %v3753 = vrot.slane %v3745, %v3752
    %v3755 = vunpack.c.l.s4 1934713408
    %v3756 = vunpack.c.0.s8 %v3755
    %v3757 = vlaneseq
    %v3758 = vshrl.u32 %v3757, 7
    %v3759 = vsub.s32 %v3756, %v3758
    %v3760 = vrot.slane %v3746, %v3759
    %v3761 = vcombine.high %v3737, 0.0
    %v3762 = vcombine.high %v3744, 0.0
    %v3763 = vcombine.high %v3753, 0.0
    %v3764 = vcombine.high %v3760, 0.0
    %v3765 = vcombine.low %v2370, %v2458
    %v3766 = vcombine.high %v2370, %v2458
    %v3768 = vunpack.c.l.s4 1983009808
    %v3769 = vunpack.c.0.s8 %v3768
    %v3770 = vlaneseq
    %v3771 = vshrl.u32 %v3770, 7
    %v3772 = vsub.s32 %v3769, %v3771
    %v3773 = vrot.slane %v3765, %v3772
    %v3775 = vunpack.c.l.s4 1983009808
    %v3776 = vunpack.c.0.s8 %v3775
    %v3777 = vlaneseq
    %v3778 = vshrl.u32 %v3777, 7
    %v3779 = vsub.s32 %v3776, %v3778
    %v3780 = vrot.slane %v3766, %v3779
    %v3781 = vcombine.low %v2414, %v2502
    %v3782 = vcombine.high %v2414, %v2502
    %v3784 = vunpack.c.l.s4 1983009808
    %v3785 = vunpack.c.0.s8 %v3784
    %v3786 = vlaneseq
    %v3787 = vshrl.u32 %v3786, 7
    %v3788 = vsub.s32 %v3785, %v3787
    %v3789 = vrot.slane %v3781, %v3788
    %v3791 = vunpack.c.l.s4 1983009808
    %v3792 = vunpack.c.0.s8 %v3791
    %v3793 = vlaneseq
    %v3794 = vshrl.u32 %v3793, 7
    %v3795 = vsub.s32 %v3792, %v3794
    %v3796 = vrot.slane %v3782, %v3795
    %v3797 = vcombine.low %v3773, %v3789
    %v3798 = vcombine.high %v3773, %v3789
    %v3800 = vunpack.c.l.s4 1934713408
    %v3801 = vunpack.c.0.s8 %v3800
    %v3802 = vlaneseq
    %v3803 = vshrl.u32 %v3802, 7
    %v3804 = vsub.s32 %v3801, %v3803
    %v3805 = vrot.slane %v3797, %v3804
    %v3807 = vunpack.c.l.s4 1934713408
    %v3808 = vunpack.c.0.s8 %v3807
    %v3809 = vlaneseq
    %v3810 = vshrl.u32 %v3809, 7
    %v3811 = vsub.s32 %v3808, %v3810
    %v3812 = vrot.slane %v3798, %v3811
    %v3813 = vcombine.low %v3780, %v3796
    %v3814 = vcombine.high %v3780, %v3796
    %v3816 = vunpack.c.l.s4 1934713408
    %v3817 = vunpack.c.0.s8 %v3816
    %v3818 = vlaneseq
    %v3819 = vshrl.u32 %v3818, 7
    %v3820 = vsub.s32 %v3817, %v3819
    %v3821 = vrot.slane %v3813, %v3820
    %v3823 = vunpack.c.l.s4 1934713408
    %v3824 = vunpack.c.0.s8 %v3823
    %v3825 = vlaneseq
    %v3826 = vshrl.u32 %v3825, 7
    %v3827 = vsub.s32 %v3824, %v3826
    %v3828 = vrot.slane %v3814, %v3827
    %v3829 = vcombine.high %v3805, 0.0
    %v3830 = vcombine.high %v3812, 0.0
    %v3831 = vcombine.high %v3821, 0.0
    %v3832 = vcombine.high %v3828, 0.0
    %v3833 = vcombine.low %v2543, %v2631
    %v3834 = vcombine.high %v2543, %v2631
    %v3836 = vunpack.c.l.s4 1983009808
    %v3837 = vunpack.c.0.s8 %v3836
    %v3838 = vlaneseq
    %v3839 = vshrl.u32 %v3838, 7
    %v3840 = vsub.s32 %v3837, %v3839
    %v3841 = vrot.slane %v3833, %v3840
    %v3843 = vunpack.c.l.s4 1983009808
    %v3844 = vunpack.c.0.s8 %v3843
    %v3845 = vlaneseq
    %v3846 = vshrl.u32 %v3845, 7
    %v3847 = vsub.s32 %v3844, %v3846
    %v3848 = vrot.slane %v3834, %v3847
    %v3849 = vcombine.low %v2587, %v2675
    %v3850 = vcombine.high %v2587, %v2675
    %v3852 = vunpack.c.l.s4 1983009808
    %v3853 = vunpack.c.0.s8 %v3852
    %v3854 = vlaneseq
    %v3855 = vshrl.u32 %v3854, 7
    %v3856 = vsub.s32 %v3853, %v3855
    %v3857 = vrot.slane %v3849, %v3856
    %v3859 = vunpack.c.l.s4 1983009808
    %v3860 = vunpack.c.0.s8 %v3859
    %v3861 = vlaneseq
    %v3862 = vshrl.u32 %v3861, 7
    %v3863 = vsub.s32 %v3860, %v3862
    %v3864 = vrot.slane %v3850, %v3863
    %v3865 = vcombine.low %v3841, %v3857
    %v3866 = vcombine.high %v3841, %v3857
    %v3868 = vunpack.c.l.s4 1934713408
    %v3869 = vunpack.c.0.s8 %v3868
    %v3870 = vlaneseq
    %v3871 = vshrl.u32 %v3870, 7
    %v3872 = vsub.s32 %v3869, %v3871
    %v3873 = vrot.slane %v3865, %v3872
    %v3875 = vunpack.c.l.s4 1934713408
    %v3876 = vunpack.c.0.s8 %v3875
    %v3877 = vlaneseq
    %v3878 = vshrl.u32 %v3877, 7
    %v3879 = vsub.s32 %v3876, %v3878
    %v3880 = vrot.slane %v3866, %v3879
    %v3881 = vcombine.low %v3848, %v3864
    %v3882 = vcombine.high %v3848, %v3864
    %v3884 = vunpack.c.l.s4 1934713408
    %v3885 = vunpack.c.0.s8 %v3884
    %v3886 = vlaneseq
    %v3887 = vshrl.u32 %v3886, 7
    %v3888 = vsub.s32 %v3885, %v3887
    %v3889 = vrot.slane %v3881, %v3888
    %v3891 = vunpack.c.l.s4 1934713408
    %v3892 = vunpack.c.0.s8 %v3891
    %v3893 = vlaneseq
    %v3894 = vshrl.u32 %v3893, 7
    %v3895 = vsub.s32 %v3892, %v3894
    %v3896 = vrot.slane %v3882, %v3895
    %v3897 = vcombine.high %v3873, 0.0
    %v3898 = vcombine.high %v3880, 0.0
    %v3899 = vcombine.high %v3889, 0.0
    %v3900 = vcombine.high %v3896, 0.0
    %v3901 = vcombine.low %v2546, %v2634
    %v3902 = vcombine.high %v2546, %v2634
    %v3904 = vunpack.c.l.s4 1983009808
    %v3905 = vunpack.c.0.s8 %v3904
    %v3906 = vlaneseq
    %v3907 = vshrl.u32 %v3906, 7
    %v3908 = vsub.s32 %v3905, %v3907
    %v3909 = vrot.slane %v3901, %v3908
    %v3911 = vunpack.c.l.s4 1983009808
    %v3912 = vunpack.c.0.s8 %v3911
    %v3913 = vlaneseq
    %v3914 = vshrl.u32 %v3913, 7
    %v3915 = vsub.s32 %v3912, %v3914
    %v3916 = vrot.slane %v3902, %v3915
    %v3917 = vcombine.low %v2590, %v2678
    %v3918 = vcombine.high %v2590, %v2678
    %v3920 = vunpack.c.l.s4 1983009808
    %v3921 = vunpack.c.0.s8 %v3920
    %v3922 = vlaneseq
    %v3923 = vshrl.u32 %v3922, 7
    %v3924 = vsub.s32 %v3921, %v3923
    %v3925 = vrot.slane %v3917, %v3924
    %v3927 = vunpack.c.l.s4 1983009808
    %v3928 = vunpack.c.0.s8 %v3927
    %v3929 = vlaneseq
    %v3930 = vshrl.u32 %v3929, 7
    %v3931 = vsub.s32 %v3928, %v3930
    %v3932 = vrot.slane %v3918, %v3931
    %v3933 = vcombine.low %v3909, %v3925
    %v3934 = vcombine.high %v3909, %v3925
    %v3936 = vunpack.c.l.s4 1934713408
    %v3937 = vunpack.c.0.s8 %v3936
    %v3938 = vlaneseq
    %v3939 = vshrl.u32 %v3938, 7
    %v3940 = vsub.s32 %v3937, %v3939
    %v3941 = vrot.slane %v3933, %v3940
    %v3943 = vunpack.c.l.s4 1934713408
    %v3944 = vunpack.c.0.s8 %v3943
    %v3945 = vlaneseq
    %v3946 = vshrl.u32 %v3945, 7
    %v3947 = vsub.s32 %v3944, %v3946
    %v3948 = vrot.slane %v3934, %v3947
    %v3949 = vcombine.low %v3916, %v3932
    %v3950 = vcombine.high %v3916, %v3932
    %v3952 = vunpack.c.l.s4 1934713408
    %v3953 = vunpack.c.0.s8 %v3952
    %v3954 = vlaneseq
    %v3955 = vshrl.u32 %v3954, 7
    %v3956 = vsub.s32 %v3953, %v3955
    %v3957 = vrot.slane %v3949, %v3956
    %v3959 = vunpack.c.l.s4 1934713408
    %v3960 = vunpack.c.0.s8 %v3959
    %v3961 = vlaneseq
    %v3962 = vshrl.u32 %v3961, 7
    %v3963 = vsub.s32 %v3960, %v3962
    %v3964 = vrot.slane %v3950, %v3963
    %v3965 = vcombine.high %v3941, 0.0
    %v3966 = vcombine.high %v3948, 0.0
    %v3967 = vcombine.high %v3957, 0.0
    %v3968 = vcombine.high %v3964, 0.0
    %v3969 = vcombine.low %v2719, %v2807
    %v3970 = vcombine.high %v2719, %v2807
    %v3972 = vunpack.c.l.s4 1983009808
    %v3973 = vunpack.c.0.s8 %v3972
    %v3974 = vlaneseq
    %v3975 = vshrl.u32 %v3974, 7
    %v3976 = vsub.s32 %v3973, %v3975
    %v3977 = vrot.slane %v3969, %v3976
    %v3979 = vunpack.c.l.s4 1983009808
    %v3980 = vunpack.c.0.s8 %v3979
    %v3981 = vlaneseq
    %v3982 = vshrl.u32 %v3981, 7
    %v3983 = vsub.s32 %v3980, %v3982
    %v3984 = vrot.slane %v3970, %v3983
    %v3985 = vcombine.low %v2763, %v2851
    %v3986 = vcombine.high %v2763, %v2851
    %v3988 = vunpack.c.l.s4 1983009808
    %v3989 = vunpack.c.0.s8 %v3988
    %v3990 = vlaneseq
    %v3991 = vshrl.u32 %v3990, 7
    %v3992 = vsub.s32 %v3989, %v3991
    %v3993 = vrot.slane %v3985, %v3992
    %v3995 = vunpack.c.l.s4 1983009808
    %v3996 = vunpack.c.0.s8 %v3995
    %v3997 = vlaneseq
    %v3998 = vshrl.u32 %v3997, 7
    %v3999 = vsub.s32 %v3996, %v3998
    %v4000 = vrot.slane %v3986, %v3999
    %v4001 = vcombine.low %v3977, %v3993
    %v4002 = vcombine.high %v3977, %v3993
    %v4004 = vunpack.c.l.s4 1934713408
    %v4005 = vunpack.c.0.s8 %v4004
    %v4006 = vlaneseq
    %v4007 = vshrl.u32 %v4006, 7
    %v4008 = vsub.s32 %v4005, %v4007
    %v4009 = vrot.slane %v4001, %v4008
    %v4011 = vunpack.c.l.s4 1934713408
    %v4012 = vunpack.c.0.s8 %v4011
    %v4013 = vlaneseq
    %v4014 = vshrl.u32 %v4013, 7
    %v4015 = vsub.s32 %v4012, %v4014
    %v4016 = vrot.slane %v4002, %v4015
    %v4017 = vcombine.low %v3984, %v4000
    %v4018 = vcombine.high %v3984, %v4000
    %v4020 = vunpack.c.l.s4 1934713408
    %v4021 = vunpack.c.0.s8 %v4020
    %v4022 = vlaneseq
    %v4023 = vshrl.u32 %v4022, 7
    %v4024 = vsub.s32 %v4021, %v4023
    %v4025 = vrot.slane %v4017, %v4024
    %v4027 = vunpack.c.l.s4 1934713408
    %v4028 = vunpack.c.0.s8 %v4027
    %v4029 = vlaneseq
    %v4030 = vshrl.u32 %v4029, 7
    %v4031 = vsub.s32 %v4028, %v4030
    %v4032 = vrot.slane %v4018, %v4031
    %v4033 = vcombine.high %v4009, 0.0
    %v4034 = vcombine.high %v4016, 0.0
    %v4035 = vcombine.high %v4025, 0.0
    %v4036 = vcombine.high %v4032, 0.0
    %v4037 = vcombine.low %v2722, %v2810
    %v4038 = vcombine.high %v2722, %v2810
    %v4040 = vunpack.c.l.s4 1983009808
    %v4041 = vunpack.c.0.s8 %v4040
    %v4042 = vlaneseq
    %v4043 = vshrl.u32 %v4042, 7
    %v4044 = vsub.s32 %v4041, %v4043
    %v4045 = vrot.slane %v4037, %v4044
    %v4047 = vunpack.c.l.s4 1983009808
    %v4048 = vunpack.c.0.s8 %v4047
    %v4049 = vlaneseq
    %v4050 = vshrl.u32 %v4049, 7
    %v4051 = vsub.s32 %v4048, %v4050
    %v4052 = vrot.slane %v4038, %v4051
    %v4053 = vcombine.low %v2766, %v2854
    %v4054 = vcombine.high %v2766, %v2854
    %v4056 = vunpack.c.l.s4 1983009808
    %v4057 = vunpack.c.0.s8 %v4056
    %v4058 = vlaneseq
    %v4059 = vshrl.u32 %v4058, 7
    %v4060 = vsub.s32 %v4057, %v4059
    %v4061 = vrot.slane %v4053, %v4060
    %v4063 = vunpack.c.l.s4 1983009808
    %v4064 = vunpack.c.0.s8 %v4063
    %v4065 = vlaneseq
    %v4066 = vshrl.u32 %v4065, 7
    %v4067 = vsub.s32 %v4064, %v4066
    %v4068 = vrot.slane %v4054, %v4067
    %v4069 = vcombine.low %v4045, %v4061
    %v4070 = vcombine.high %v4045, %v4061
    %v4072 = vunpack.c.l.s4 1934713408
    %v4073 = vunpack.c.0.s8 %v4072
    %v4074 = vlaneseq
    %v4075 = vshrl.u32 %v4074, 7
    %v4076 = vsub.s32 %v4073, %v4075
    %v4077 = vrot.slane %v4069, %v4076
    %v4079 = vunpack.c.l.s4 1934713408
    %v4080 = vunpack.c.0.s8 %v4079
    %v4081 = vlaneseq
    %v4082 = vshrl.u32 %v4081, 7
    %v4083 = vsub.s32 %v4080, %v4082
    %v4084 = vrot.slane %v4070, %v4083
    %v4085 = vcombine.low %v4052, %v4068
    %v4086 = vcombine.high %v4052, %v4068
    %v4088 = vunpack.c.l.s4 1934713408
    %v4089 = vunpack.c.0.s8 %v4088
    %v4090 = vlaneseq
    %v4091 = vshrl.u32 %v4090, 7
    %v4092 = vsub.s32 %v4089, %v4091
    %v4093 = vrot.slane %v4085, %v4092
    %v4095 = vunpack.c.l.s4 1934713408
    %v4096 = vunpack.c.0.s8 %v4095
    %v4097 = vlaneseq
    %v4098 = vshrl.u32 %v4097, 7
    %v4099 = vsub.s32 %v4096, %v4098
    %v4100 = vrot.slane %v4086, %v4099
    %v4101 = vcombine.high %v4077, 0.0
    %v4102 = vcombine.high %v4084, 0.0
    %v4103 = vcombine.high %v4093, 0.0
    %v4104 = vcombine.high %v4100, 0.0
    %v4105 = vcombine.low %v2895, %v2983
    %v4106 = vcombine.high %v2895, %v2983
    %v4108 = vunpack.c.l.s4 1983009808
    %v4109 = vunpack.c.0.s8 %v4108
    %v4110 = vlaneseq
    %v4111 = vshrl.u32 %v4110, 7
    %v4112 = vsub.s32 %v4109, %v4111
    %v4113 = vrot.slane %v4105, %v4112
    %v4115 = vunpack.c.l.s4 1983009808
    %v4116 = vunpack.c.0.s8 %v4115
    %v4117 = vlaneseq
    %v4118 = vshrl.u32 %v4117, 7
    %v4119 = vsub.s32 %v4116, %v4118
    %v4120 = vrot.slane %v4106, %v4119
    %v4121 = vcombine.low %v2939, %v3027
    %v4122 = vcombine.high %v2939, %v3027
    %v4124 = vunpack.c.l.s4 1983009808
    %v4125 = vunpack.c.0.s8 %v4124
    %v4126 = vlaneseq
    %v4127 = vshrl.u32 %v4126, 7
    %v4128 = vsub.s32 %v4125, %v4127
    %v4129 = vrot.slane %v4121, %v4128
    %v4131 = vunpack.c.l.s4 1983009808
    %v4132 = vunpack.c.0.s8 %v4131
    %v4133 = vlaneseq
    %v4134 = vshrl.u32 %v4133, 7
    %v4135 = vsub.s32 %v4132, %v4134
    %v4136 = vrot.slane %v4122, %v4135
    %v4137 = vcombine.low %v4113, %v4129
    %v4138 = vcombine.high %v4113, %v4129
    %v4140 = vunpack.c.l.s4 1934713408
    %v4141 = vunpack.c.0.s8 %v4140
    %v4142 = vlaneseq
    %v4143 = vshrl.u32 %v4142, 7
    %v4144 = vsub.s32 %v4141, %v4143
    %v4145 = vrot.slane %v4137, %v4144
    %v4147 = vunpack.c.l.s4 1934713408
    %v4148 = vunpack.c.0.s8 %v4147
    %v4149 = vlaneseq
    %v4150 = vshrl.u32 %v4149, 7
    %v4151 = vsub.s32 %v4148, %v4150
    %v4152 = vrot.slane %v4138, %v4151
    %v4153 = vcombine.low %v4120, %v4136
    %v4154 = vcombine.high %v4120, %v4136
    %v4156 = vunpack.c.l.s4 1934713408
    %v4157 = vunpack.c.0.s8 %v4156
    %v4158 = vlaneseq
    %v4159 = vshrl.u32 %v4158, 7
    %v4160 = vsub.s32 %v4157, %v4159
    %v4161 = vrot.slane %v4153, %v4160
    %v4163 = vunpack.c.l.s4 1934713408
    %v4164 = vunpack.c.0.s8 %v4163
    %v4165 = vlaneseq
    %v4166 = vshrl.u32 %v4165, 7
    %v4167 = vsub.s32 %v4164, %v4166
    %v4168 = vrot.slane %v4154, %v4167
    %v4169 = vcombine.high %v4145, 0.0
    %v4170 = vcombine.high %v4152, 0.0
    %v4171 = vcombine.high %v4161, 0.0
    %v4172 = vcombine.high %v4168, 0.0
    %v4173 = vcombine.low %v2898, %v2986
    %v4174 = vcombine.high %v2898, %v2986
    %v4176 = vunpack.c.l.s4 1983009808
    %v4177 = vunpack.c.0.s8 %v4176
    %v4178 = vlaneseq
    %v4179 = vshrl.u32 %v4178, 7
    %v4180 = vsub.s32 %v4177, %v4179
    %v4181 = vrot.slane %v4173, %v4180
    %v4183 = vunpack.c.l.s4 1983009808
    %v4184 = vunpack.c.0.s8 %v4183
    %v4185 = vlaneseq
    %v4186 = vshrl.u32 %v4185, 7
    %v4187 = vsub.s32 %v4184, %v4186
    %v4188 = vrot.slane %v4174, %v4187
    %v4189 = vcombine.low %v2942, %v3030
    %v4190 = vcombine.high %v2942, %v3030
    %v4192 = vunpack.c.l.s4 1983009808
    %v4193 = vunpack.c.0.s8 %v4192
    %v4194 = vlaneseq
    %v4195 = vshrl.u32 %v4194, 7
    %v4196 = vsub.s32 %v4193, %v4195
    %v4197 = vrot.slane %v4189, %v4196
    %v4199 = vunpack.c.l.s4 1983009808
    %v4200 = vunpack.c.0.s8 %v4199
    %v4201 = vlaneseq
    %v4202 = vshrl.u32 %v4201, 7
    %v4203 = vsub.s32 %v4200, %v4202
    %v4204 = vrot.slane %v4190, %v4203
    %v4205 = vcombine.low %v4181, %v4197
    %v4206 = vcombine.high %v4181, %v4197
    %v4208 = vunpack.c.l.s4 1934713408
    %v4209 = vunpack.c.0.s8 %v4208
    %v4210 = vlaneseq
    %v4211 = vshrl.u32 %v4210, 7
    %v4212 = vsub.s32 %v4209, %v4211
    %v4213 = vrot.slane %v4205, %v4212
    %v4215 = vunpack.c.l.s4 1934713408
    %v4216 = vunpack.c.0.s8 %v4215
    %v4217 = vlaneseq
    %v4218 = vshrl.u32 %v4217, 7
    %v4219 = vsub.s32 %v4216, %v4218
    %v4220 = vrot.slane %v4206, %v4219
    %v4221 = vcombine.low %v4188, %v4204
    %v4222 = vcombine.high %v4188, %v4204
    %v4224 = vunpack.c.l.s4 1934713408
    %v4225 = vunpack.c.0.s8 %v4224
    %v4226 = vlaneseq
    %v4227 = vshrl.u32 %v4226, 7
    %v4228 = vsub.s32 %v4225, %v4227
    %v4229 = vrot.slane %v4221, %v4228
    %v4231 = vunpack.c.l.s4 1934713408
    %v4232 = vunpack.c.0.s8 %v4231
    %v4233 = vlaneseq
    %v4234 = vshrl.u32 %v4233, 7
    %v4235 = vsub.s32 %v4232, %v4234
    %v4236 = vrot.slane %v4222, %v4235
    %v4237 = vcombine.high %v4213, 0.0
    %v4238 = vcombine.high %v4220, 0.0
    %v4239 = vcombine.high %v4229, 0.0
    %v4240 = vcombine.high %v4236, 0.0
    %v4241 = vcombine.low %v3071, %v3159
    %v4242 = vcombine.high %v3071, %v3159
    %v4244 = vunpack.c.l.s4 1983009808
    %v4245 = vunpack.c.0.s8 %v4244
    %v4246 = vlaneseq
    %v4247 = vshrl.u32 %v4246, 7
    %v4248 = vsub.s32 %v4245, %v4247
    %v4249 = vrot.slane %v4241, %v4248
    %v4251 = vunpack.c.l.s4 1983009808
    %v4252 = vunpack.c.0.s8 %v4251
    %v4253 = vlaneseq
    %v4254 = vshrl.u32 %v4253, 7
    %v4255 = vsub.s32 %v4252, %v4254
    %v4256 = vrot.slane %v4242, %v4255
    %v4257 = vcombine.low %v3115, %v3203
    %v4258 = vcombine.high %v3115, %v3203
    %v4260 = vunpack.c.l.s4 1983009808
    %v4261 = vunpack.c.0.s8 %v4260
    %v4262 = vlaneseq
    %v4263 = vshrl.u32 %v4262, 7
    %v4264 = vsub.s32 %v4261, %v4263
    %v4265 = vrot.slane %v4257, %v4264
    %v4267 = vunpack.c.l.s4 1983009808
    %v4268 = vunpack.c.0.s8 %v4267
    %v4269 = vlaneseq
    %v4270 = vshrl.u32 %v4269, 7
    %v4271 = vsub.s32 %v4268, %v4270
    %v4272 = vrot.slane %v4258, %v4271
    %v4273 = vcombine.low %v4249, %v4265
    %v4274 = vcombine.high %v4249, %v4265
    %v4276 = vunpack.c.l.s4 1934713408
    %v4277 = vunpack.c.0.s8 %v4276
    %v4278 = vlaneseq
    %v4279 = vshrl.u32 %v4278, 7
    %v4280 = vsub.s32 %v4277, %v4279
    %v4281 = vrot.slane %v4273, %v4280
    %v4283 = vunpack.c.l.s4 1934713408
    %v4284 = vunpack.c.0.s8 %v4283
    %v4285 = vlaneseq
    %v4286 = vshrl.u32 %v4285, 7
    %v4287 = vsub.s32 %v4284, %v4286
    %v4288 = vrot.slane %v4274, %v4287
    %v4289 = vcombine.low %v4256, %v4272
    %v4290 = vcombine.high %v4256, %v4272
    %v4292 = vunpack.c.l.s4 1934713408
    %v4293 = vunpack.c.0.s8 %v4292
    %v4294 = vlaneseq
    %v4295 = vshrl.u32 %v4294, 7
    %v4296 = vsub.s32 %v4293, %v4295
    %v4297 = vrot.slane %v4289, %v4296
    %v4299 = vunpack.c.l.s4 1934713408
    %v4300 = vunpack.c.0.s8 %v4299
    %v4301 = vlaneseq
    %v4302 = vshrl.u32 %v4301, 7
    %v4303 = vsub.s32 %v4300, %v4302
    %v4304 = vrot.slane %v4290, %v4303
    %v4305 = vcombine.high %v4281, 0.0
    %v4306 = vcombine.high %v4288, 0.0
    %v4307 = vcombine.high %v4297, 0.0
    %v4308 = vcombine.high %v4304, 0.0
    %v4309 = vcombine.low %v3074, %v3162
    %v4310 = vcombine.high %v3074, %v3162
    %v4312 = vunpack.c.l.s4 1983009808
    %v4313 = vunpack.c.0.s8 %v4312
    %v4314 = vlaneseq
    %v4315 = vshrl.u32 %v4314, 7
    %v4316 = vsub.s32 %v4313, %v4315
    %v4317 = vrot.slane %v4309, %v4316
    %v4319 = vunpack.c.l.s4 1983009808
    %v4320 = vunpack.c.0.s8 %v4319
    %v4321 = vlaneseq
    %v4322 = vshrl.u32 %v4321, 7
    %v4323 = vsub.s32 %v4320, %v4322
    %v4324 = vrot.slane %v4310, %v4323
    %v4325 = vcombine.low %v3118, %v3206
    %v4326 = vcombine.high %v3118, %v3206
    %v4328 = vunpack.c.l.s4 1983009808
    %v4329 = vunpack.c.0.s8 %v4328
    %v4330 = vlaneseq
    %v4331 = vshrl.u32 %v4330, 7
    %v4332 = vsub.s32 %v4329, %v4331
    %v4333 = vrot.slane %v4325, %v4332
    %v4335 = vunpack.c.l.s4 1983009808
    %v4336 = vunpack.c.0.s8 %v4335
    %v4337 = vlaneseq
    %v4338 = vshrl.u32 %v4337, 7
    %v4339 = vsub.s32 %v4336, %v4338
    %v4340 = vrot.slane %v4326, %v4339
    %v4341 = vcombine.low %v4317, %v4333
    %v4342 = vcombine.high %v4317, %v4333
    %v4344 = vunpack.c.l.s4 1934713408
    %v4345 = vunpack.c.0.s8 %v4344
    %v4346 = vlaneseq
    %v4347 = vshrl.u32 %v4346, 7
    %v4348 = vsub.s32 %v4345, %v4347
    %v4349 = vrot.slane %v4341, %v4348
    %v4351 = vunpack.c.l.s4 1934713408
    %v4352 = vunpack.c.0.s8 %v4351
    %v4353 = vlaneseq
    %v4354 = vshrl.u32 %v4353, 7
    %v4355 = vsub.s32 %v4352, %v4354
    %v4356 = vrot.slane %v4342, %v4355
    %v4357 = vcombine.low %v4324, %v4340
    %v4358 = vcombine.high %v4324, %v4340
    %v4360 = vunpack.c.l.s4 1934713408
    %v4361 = vunpack.c.0.s8 %v4360
    %v4362 = vlaneseq
    %v4363 = vshrl.u32 %v4362, 7
    %v4364 = vsub.s32 %v4361, %v4363
    %v4365 = vrot.slane %v4357, %v4364
    %v4367 = vunpack.c.l.s4 1934713408
    %v4368 = vunpack.c.0.s8 %v4367
    %v4369 = vlaneseq
    %v4370 = vshrl.u32 %v4369, 7
    %v4371 = vsub.s32 %v4368, %v4370
    %v4372 = vrot.slane %v4358, %v4371
    %v4373 = vcombine.high %v4349, 0.0
    %v4374 = vcombine.high %v4356, 0.0
    %v4375 = vcombine.high %v4365, 0.0
    %v4376 = vcombine.high %v4372, 0.0
    %v4377 = vcombine.low %v3247, %v3335
    %v4378 = vcombine.high %v3247, %v3335
    %v4380 = vunpack.c.l.s4 1983009808
    %v4381 = vunpack.c.0.s8 %v4380
    %v4382 = vlaneseq
    %v4383 = vshrl.u32 %v4382, 7
    %v4384 = vsub.s32 %v4381, %v4383
    %v4385 = vrot.slane %v4377, %v4384
    %v4387 = vunpack.c.l.s4 1983009808
    %v4388 = vunpack.c.0.s8 %v4387
    %v4389 = vlaneseq
    %v4390 = vshrl.u32 %v4389, 7
    %v4391 = vsub.s32 %v4388, %v4390
    %v4392 = vrot.slane %v4378, %v4391
    %v4393 = vcombine.low %v3291, %v3379
    %v4394 = vcombine.high %v3291, %v3379
    %v4396 = vunpack.c.l.s4 1983009808
    %v4397 = vunpack.c.0.s8 %v4396
    %v4398 = vlaneseq
    %v4399 = vshrl.u32 %v4398, 7
    %v4400 = vsub.s32 %v4397, %v4399
    %v4401 = vrot.slane %v4393, %v4400
    %v4403 = vunpack.c.l.s4 1983009808
    %v4404 = vunpack.c.0.s8 %v4403
    %v4405 = vlaneseq
    %v4406 = vshrl.u32 %v4405, 7
    %v4407 = vsub.s32 %v4404, %v4406
    %v4408 = vrot.slane %v4394, %v4407
    %v4409 = vcombine.low %v4385, %v4401
    %v4410 = vcombine.high %v4385, %v4401
    %v4412 = vunpack.c.l.s4 1934713408
    %v4413 = vunpack.c.0.s8 %v4412
    %v4414 = vlaneseq
    %v4415 = vshrl.u32 %v4414, 7
    %v4416 = vsub.s32 %v4413, %v4415
    %v4417 = vrot.slane %v4409, %v4416
    %v4419 = vunpack.c.l.s4 1934713408
    %v4420 = vunpack.c.0.s8 %v4419
    %v4421 = vlaneseq
    %v4422 = vshrl.u32 %v4421, 7
    %v4423 = vsub.s32 %v4420, %v4422
    %v4424 = vrot.slane %v4410, %v4423
    %v4425 = vcombine.low %v4392, %v4408
    %v4426 = vcombine.high %v4392, %v4408
    %v4428 = vunpack.c.l.s4 1934713408
    %v4429 = vunpack.c.0.s8 %v4428
    %v4430 = vlaneseq
    %v4431 = vshrl.u32 %v4430, 7
    %v4432 = vsub.s32 %v4429, %v4431
    %v4433 = vrot.slane %v4425, %v4432
    %v4435 = vunpack.c.l.s4 1934713408
    %v4436 = vunpack.c.0.s8 %v4435
    %v4437 = vlaneseq
    %v4438 = vshrl.u32 %v4437, 7
    %v4439 = vsub.s32 %v4436, %v4438
    %v4440 = vrot.slane %v4426, %v4439
    %v4441 = vcombine.high %v4417, 0.0
    %v4442 = vcombine.high %v4424, 0.0
    %v4443 = vcombine.high %v4433, 0.0
    %v4444 = vcombine.high %v4440, 0.0
    %v4445 = vcombine.low %v3250, %v3338
    %v4446 = vcombine.high %v3250, %v3338
    %v4448 = vunpack.c.l.s4 1983009808
    %v4449 = vunpack.c.0.s8 %v4448
    %v4450 = vlaneseq
    %v4451 = vshrl.u32 %v4450, 7
    %v4452 = vsub.s32 %v4449, %v4451
    %v4453 = vrot.slane %v4445, %v4452
    %v4455 = vunpack.c.l.s4 1983009808
    %v4456 = vunpack.c.0.s8 %v4455
    %v4457 = vlaneseq
    %v4458 = vshrl.u32 %v4457, 7
    %v4459 = vsub.s32 %v4456, %v4458
    %v4460 = vrot.slane %v4446, %v4459
    %v4461 = vcombine.low %v3294, %v3382
    %v4462 = vcombine.high %v3294, %v3382
    %v4464 = vunpack.c.l.s4 1983009808
    %v4465 = vunpack.c.0.s8 %v4464
    %v4466 = vlaneseq
    %v4467 = vshrl.u32 %v4466, 7
    %v4468 = vsub.s32 %v4465, %v4467
    %v4469 = vrot.slane %v4461, %v4468
    %v4471 = vunpack.c.l.s4 1983009808
    %v4472 = vunpack.c.0.s8 %v4471
    %v4473 = vlaneseq
    %v4474 = vshrl.u32 %v4473, 7
    %v4475 = vsub.s32 %v4472, %v4474
    %v4476 = vrot.slane %v4462, %v4475
    %v4477 = vcombine.low %v4453, %v4469
    %v4478 = vcombine.high %v4453, %v4469
    %v4480 = vunpack.c.l.s4 1934713408
    %v4481 = vunpack.c.0.s8 %v4480
    %v4482 = vlaneseq
    %v4483 = vshrl.u32 %v4482, 7
    %v4484 = vsub.s32 %v4481, %v4483
    %v4485 = vrot.slane %v4477, %v4484
    %v4487 = vunpack.c.l.s4 1934713408
    %v4488 = vunpack.c.0.s8 %v4487
    %v4489 = vlaneseq
    %v4490 = vshrl.u32 %v4489, 7
    %v4491 = vsub.s32 %v4488, %v4490
    %v4492 = vrot.slane %v4478, %v4491
    %v4493 = vcombine.low %v4460, %v4476
    %v4494 = vcombine.high %v4460, %v4476
    %v4496 = vunpack.c.l.s4 1934713408
    %v4497 = vunpack.c.0.s8 %v4496
    %v4498 = vlaneseq
    %v4499 = vshrl.u32 %v4498, 7
    %v4500 = vsub.s32 %v4497, %v4499
    %v4501 = vrot.slane %v4493, %v4500
    %v4503 = vunpack.c.l.s4 1934713408
    %v4504 = vunpack.c.0.s8 %v4503
    %v4505 = vlaneseq
    %v4506 = vshrl.u32 %v4505, 7
    %v4507 = vsub.s32 %v4504, %v4506
    %v4508 = vrot.slane %v4494, %v4507
    %v4509 = vcombine.high %v4485, 0.0
    %v4510 = vcombine.high %v4492, 0.0
    %v4511 = vcombine.high %v4501, 0.0
    %v4512 = vcombine.high %v4508, 0.0
    %v4513 = vcombine.low %v3423, %v3511
    %v4514 = vcombine.high %v3423, %v3511
    %v4516 = vunpack.c.l.s4 1983009808
    %v4517 = vunpack.c.0.s8 %v4516
    %v4518 = vlaneseq
    %v4519 = vshrl.u32 %v4518, 7
    %v4520 = vsub.s32 %v4517, %v4519
    %v4521 = vrot.slane %v4513, %v4520
    %v4523 = vunpack.c.l.s4 1983009808
    %v4524 = vunpack.c.0.s8 %v4523
    %v4525 = vlaneseq
    %v4526 = vshrl.u32 %v4525, 7
    %v4527 = vsub.s32 %v4524, %v4526
    %v4528 = vrot.slane %v4514, %v4527
    %v4529 = vcombine.low %v3467, %v3555
    %v4530 = vcombine.high %v3467, %v3555
    %v4532 = vunpack.c.l.s4 1983009808
    %v4533 = vunpack.c.0.s8 %v4532
    %v4534 = vlaneseq
    %v4535 = vshrl.u32 %v4534, 7
    %v4536 = vsub.s32 %v4533, %v4535
    %v4537 = vrot.slane %v4529, %v4536
    %v4539 = vunpack.c.l.s4 1983009808
    %v4540 = vunpack.c.0.s8 %v4539
    %v4541 = vlaneseq
    %v4542 = vshrl.u32 %v4541, 7
    %v4543 = vsub.s32 %v4540, %v4542
    %v4544 = vrot.slane %v4530, %v4543
    %v4545 = vcombine.low %v4521, %v4537
    %v4546 = vcombine.high %v4521, %v4537
    %v4548 = vunpack.c.l.s4 1934713408
    %v4549 = vunpack.c.0.s8 %v4548
    %v4550 = vlaneseq
    %v4551 = vshrl.u32 %v4550, 7
    %v4552 = vsub.s32 %v4549, %v4551
    %v4553 = vrot.slane %v4545, %v4552
    %v4555 = vunpack.c.l.s4 1934713408
    %v4556 = vunpack.c.0.s8 %v4555
    %v4557 = vlaneseq
    %v4558 = vshrl.u32 %v4557, 7
    %v4559 = vsub.s32 %v4556, %v4558
    %v4560 = vrot.slane %v4546, %v4559
    %v4561 = vcombine.low %v4528, %v4544
    %v4562 = vcombine.high %v4528, %v4544
    %v4564 = vunpack.c.l.s4 1934713408
    %v4565 = vunpack.c.0.s8 %v4564
    %v4566 = vlaneseq
    %v4567 = vshrl.u32 %v4566, 7
    %v4568 = vsub.s32 %v4565, %v4567
    %v4569 = vrot.slane %v4561, %v4568
    %v4571 = vunpack.c.l.s4 1934713408
    %v4572 = vunpack.c.0.s8 %v4571
    %v4573 = vlaneseq
    %v4574 = vshrl.u32 %v4573, 7
    %v4575 = vsub.s32 %v4572, %v4574
    %v4576 = vrot.slane %v4562, %v4575
    %v4577 = vcombine.high %v4553, 0.0
    %v4578 = vcombine.high %v4560, 0.0
    %v4579 = vcombine.high %v4569, 0.0
    %v4580 = vcombine.high %v4576, 0.0
    %v4581 = vcombine.low %v3426, %v3514
    %v4582 = vcombine.high %v3426, %v3514
    %v4584 = vunpack.c.l.s4 1983009808
    %v4585 = vunpack.c.0.s8 %v4584
    %v4586 = vlaneseq
    %v4587 = vshrl.u32 %v4586, 7
    %v4588 = vsub.s32 %v4585, %v4587
    %v4589 = vrot.slane %v4581, %v4588
    %v4591 = vunpack.c.l.s4 1983009808
    %v4592 = vunpack.c.0.s8 %v4591
    %v4593 = vlaneseq
    %v4594 = vshrl.u32 %v4593, 7
    %v4595 = vsub.s32 %v4592, %v4594
    %v4596 = vrot.slane %v4582, %v4595
    %v4597 = vcombine.low %v3470, %v3558
    %v4598 = vcombine.high %v3470, %v3558
    %v4600 = vunpack.c.l.s4 1983009808
    %v4601 = vunpack.c.0.s8 %v4600
    %v4602 = vlaneseq
    %v4603 = vshrl.u32 %v4602, 7
    %v4604 = vsub.s32 %v4601, %v4603
    %v4605 = vrot.slane %v4597, %v4604
    %v4607 = vunpack.c.l.s4 1983009808
    %v4608 = vunpack.c.0.s8 %v4607
    %v4609 = vlaneseq
    %v4610 = vshrl.u32 %v4609, 7
    %v4611 = vsub.s32 %v4608, %v4610
    %v4612 = vrot.slane %v4598, %v4611
    %v4613 = vcombine.low %v4589, %v4605
    %v4614 = vcombine.high %v4589, %v4605
    %v4616 = vunpack.c.l.s4 1934713408
    %v4617 = vunpack.c.0.s8 %v4616
    %v4618 = vlaneseq
    %v4619 = vshrl.u32 %v4618, 7
    %v4620 = vsub.s32 %v4617, %v4619
    %v4621 = vrot.slane %v4613, %v4620
    %v4623 = vunpack.c.l.s4 1934713408
    %v4624 = vunpack.c.0.s8 %v4623
    %v4625 = vlaneseq
    %v4626 = vshrl.u32 %v4625, 7
    %v4627 = vsub.s32 %v4624, %v4626
    %v4628 = vrot.slane %v4614, %v4627
    %v4629 = vcombine.low %v4596, %v4612
    %v4630 = vcombine.high %v4596, %v4612
    %v4632 = vunpack.c.l.s4 1934713408
    %v4633 = vunpack.c.0.s8 %v4632
    %v4634 = vlaneseq
    %v4635 = vshrl.u32 %v4634, 7
    %v4636 = vsub.s32 %v4633, %v4635
    %v4637 = vrot.slane %v4629, %v4636
    %v4639 = vunpack.c.l.s4 1934713408
    %v4640 = vunpack.c.0.s8 %v4639
    %v4641 = vlaneseq
    %v4642 = vshrl.u32 %v4641, 7
    %v4643 = vsub.s32 %v4640, %v4642
    %v4644 = vrot.slane %v4630, %v4643
    %v4645 = vcombine.high %v4621, 0.0
    %v4646 = vcombine.high %v4628, 0.0
    %v4647 = vcombine.high %v4637, 0.0
    %v4648 = vcombine.high %v4644, 0.0
    %4657 = vrot.lane.b32.xlu0 %v3625, 16
    %v4658 = vpop.permute.xlu0 %4657
    %4659 = vrot.lane.b32.xlu0 %v3761, 16
    %v4660 = vpop.permute.xlu0 %4659
    %4661 = vrot.lane.b32.xlu0 %v3897, 16
    %v4662 = vpop.permute.xlu0 %4661
    %4663 = vrot.lane.b32.xlu0 %v4033, 16
    %v4664 = vpop.permute.xlu0 %4663
    %4665 = vrot.lane.b32.xlu0 %v4169, 16
    %v4666 = vpop.permute.xlu0 %4665
    %4667 = vrot.lane.b32.xlu0 %v4305, 16
    %v4668 = vpop.permute.xlu0 %4667
    %4669 = vrot.lane.b32.xlu0 %v4441, 16
    %v4670 = vpop.permute.xlu0 %4669
    %4671 = vrot.lane.b32.xlu0 %v4577, 16
    %v4672 = vpop.permute.xlu0 %4671
    %4689 = vrot.lane.b32.xlu0 %v3608, 32
    %v4690 = vpop.permute.xlu0 %4689
    %4691 = vrot.lane.b32.xlu0 %v3744, 32
    %v4692 = vpop.permute.xlu0 %4691
    %4693 = vrot.lane.b32.xlu0 %v3880, 32
    %v4694 = vpop.permute.xlu0 %4693
    %4695 = vrot.lane.b32.xlu0 %v4016, 32
    %v4696 = vpop.permute.xlu0 %4695
    %4697 = vrot.lane.b32.xlu0 %v4152, 32
    %v4698 = vpop.permute.xlu0 %4697
    %4699 = vrot.lane.b32.xlu0 %v4288, 32
    %v4700 = vpop.permute.xlu0 %4699
    %4701 = vrot.lane.b32.xlu0 %v4424, 32
    %v4702 = vpop.permute.xlu0 %4701
    %4703 = vrot.lane.b32.xlu0 %v4560, 32
    %v4704 = vpop.permute.xlu0 %4703
    %4721 = vrot.lane.b32.xlu0 %v3626, 48
    %v4722 = vpop.permute.xlu0 %4721
    %4723 = vrot.lane.b32.xlu0 %v3762, 48
    %v4724 = vpop.permute.xlu0 %4723
    %4725 = vrot.lane.b32.xlu0 %v3898, 48
    %v4726 = vpop.permute.xlu0 %4725
    %4727 = vrot.lane.b32.xlu0 %v4034, 48
    %v4728 = vpop.permute.xlu0 %4727
    %4729 = vrot.lane.b32.xlu0 %v4170, 48
    %v4730 = vpop.permute.xlu0 %4729
    %4731 = vrot.lane.b32.xlu0 %v4306, 48
    %v4732 = vpop.permute.xlu0 %4731
    %4733 = vrot.lane.b32.xlu0 %v4442, 48
    %v4734 = vpop.permute.xlu0 %4733
    %4735 = vrot.lane.b32.xlu0 %v4578, 48
    %v4736 = vpop.permute.xlu0 %4735
    %4753 = vrot.lane.b32.xlu0 %v3617, 64
    %v4754 = vpop.permute.xlu0 %4753
    %4755 = vrot.lane.b32.xlu0 %v3753, 64
    %v4756 = vpop.permute.xlu0 %4755
    %4757 = vrot.lane.b32.xlu0 %v3889, 64
    %v4758 = vpop.permute.xlu0 %4757
    %4759 = vrot.lane.b32.xlu0 %v4025, 64
    %v4760 = vpop.permute.xlu0 %4759
    %4761 = vrot.lane.b32.xlu0 %v4161, 64
    %v4762 = vpop.permute.xlu0 %4761
    %4763 = vrot.lane.b32.xlu0 %v4297, 64
    %v4764 = vpop.permute.xlu0 %4763
    %4765 = vrot.lane.b32.xlu0 %v4433, 64
    %v4766 = vpop.permute.xlu0 %4765
    %4767 = vrot.lane.b32.xlu0 %v4569, 64
    %v4768 = vpop.permute.xlu0 %4767
    %4785 = vrot.lane.b32.xlu0 %v3627, 80
    %v4786 = vpop.permute.xlu0 %4785
    %4787 = vrot.lane.b32.xlu0 %v3763, 80
    %v4788 = vpop.permute.xlu0 %4787
    %4789 = vrot.lane.b32.xlu0 %v3899, 80
    %v4790 = vpop.permute.xlu0 %4789
    %4791 = vrot.lane.b32.xlu0 %v4035, 80
    %v4792 = vpop.permute.xlu0 %4791
    %4793 = vrot.lane.b32.xlu0 %v4171, 80
    %v4794 = vpop.permute.xlu0 %4793
    %4795 = vrot.lane.b32.xlu0 %v4307, 80
    %v4796 = vpop.permute.xlu0 %4795
    %4797 = vrot.lane.b32.xlu0 %v4443, 80
    %v4798 = vpop.permute.xlu0 %4797
    %4799 = vrot.lane.b32.xlu0 %v4579, 80
    %v4800 = vpop.permute.xlu0 %4799
    %4817 = vrot.lane.b32.xlu0 %v3624, 96
    %v4818 = vpop.permute.xlu0 %4817
    %4819 = vrot.lane.b32.xlu0 %v3760, 96
    %v4820 = vpop.permute.xlu0 %4819
    %4821 = vrot.lane.b32.xlu0 %v3896, 96
    %v4822 = vpop.permute.xlu0 %4821
    %4823 = vrot.lane.b32.xlu0 %v4032, 96
    %v4824 = vpop.permute.xlu0 %4823
    %4825 = vrot.lane.b32.xlu0 %v4168, 96
    %v4826 = vpop.permute.xlu0 %4825
    %4827 = vrot.lane.b32.xlu0 %v4304, 96
    %v4828 = vpop.permute.xlu0 %4827
    %4829 = vrot.lane.b32.xlu0 %v4440, 96
    %v4830 = vpop.permute.xlu0 %4829
    %4831 = vrot.lane.b32.xlu0 %v4576, 96
    %v4832 = vpop.permute.xlu0 %4831
    %4849 = vrot.lane.b32.xlu0 %v3628, 112
    %v4850 = vpop.permute.xlu0 %4849
    %4851 = vrot.lane.b32.xlu0 %v3764, 112
    %v4852 = vpop.permute.xlu0 %4851
    %4853 = vrot.lane.b32.xlu0 %v3900, 112
    %v4854 = vpop.permute.xlu0 %4853
    %4855 = vrot.lane.b32.xlu0 %v4036, 112
    %v4856 = vpop.permute.xlu0 %4855
    %4857 = vrot.lane.b32.xlu0 %v4172, 112
    %v4858 = vpop.permute.xlu0 %4857
    %4859 = vrot.lane.b32.xlu0 %v4308, 112
    %v4860 = vpop.permute.xlu0 %4859
    %4861 = vrot.lane.b32.xlu0 %v4444, 112
    %v4862 = vpop.permute.xlu0 %4861
    %4863 = vrot.lane.b32.xlu0 %v4580, 112
    %v4864 = vpop.permute.xlu0 %4863
    %4881 = vrot.lane.b32.xlu0 %v3693, 16
    %v4882 = vpop.permute.xlu0 %4881
    %4883 = vrot.lane.b32.xlu0 %v3829, 16
    %v4884 = vpop.permute.xlu0 %4883
    %4885 = vrot.lane.b32.xlu0 %v3965, 16
    %v4886 = vpop.permute.xlu0 %4885
    %4887 = vrot.lane.b32.xlu0 %v4101, 16
    %v4888 = vpop.permute.xlu0 %4887
    %4889 = vrot.lane.b32.xlu0 %v4237, 16
    %v4890 = vpop.permute.xlu0 %4889
    %4891 = vrot.lane.b32.xlu0 %v4373, 16
    %v4892 = vpop.permute.xlu0 %4891
    %4893 = vrot.lane.b32.xlu0 %v4509, 16
    %v4894 = vpop.permute.xlu0 %4893
    %4895 = vrot.lane.b32.xlu0 %v4645, 16
    %v4896 = vpop.permute.xlu0 %4895
    %4913 = vrot.lane.b32.xlu0 %v3676, 32
    %v4914 = vpop.permute.xlu0 %4913
    %4915 = vrot.lane.b32.xlu0 %v3812, 32
    %v4916 = vpop.permute.xlu0 %4915
    %4917 = vrot.lane.b32.xlu0 %v3948, 32
    %v4918 = vpop.permute.xlu0 %4917
    %4919 = vrot.lane.b32.xlu0 %v4084, 32
    %v4920 = vpop.permute.xlu0 %4919
    %4921 = vrot.lane.b32.xlu0 %v4220, 32
    %v4922 = vpop.permute.xlu0 %4921
    %4923 = vrot.lane.b32.xlu0 %v4356, 32
    %v4924 = vpop.permute.xlu0 %4923
    %4925 = vrot.lane.b32.xlu0 %v4492, 32
    %v4926 = vpop.permute.xlu0 %4925
    %4927 = vrot.lane.b32.xlu0 %v4628, 32
    %v4928 = vpop.permute.xlu0 %4927
    %4945 = vrot.lane.b32.xlu0 %v3694, 48
    %v4946 = vpop.permute.xlu0 %4945
    %4947 = vrot.lane.b32.xlu0 %v3830, 48
    %v4948 = vpop.permute.xlu0 %4947
    %4949 = vrot.lane.b32.xlu0 %v3966, 48
    %v4950 = vpop.permute.xlu0 %4949
    %4951 = vrot.lane.b32.xlu0 %v4102, 48
    %v4952 = vpop.permute.xlu0 %4951
    %4953 = vrot.lane.b32.xlu0 %v4238, 48
    %v4954 = vpop.permute.xlu0 %4953
    %4955 = vrot.lane.b32.xlu0 %v4374, 48
    %v4956 = vpop.permute.xlu0 %4955
    %4957 = vrot.lane.b32.xlu0 %v4510, 48
    %v4958 = vpop.permute.xlu0 %4957
    %4959 = vrot.lane.b32.xlu0 %v4646, 48
    %v4960 = vpop.permute.xlu0 %4959
    %4977 = vrot.lane.b32.xlu0 %v3685, 64
    %v4978 = vpop.permute.xlu0 %4977
    %4979 = vrot.lane.b32.xlu0 %v3821, 64
    %v4980 = vpop.permute.xlu0 %4979
    %4981 = vrot.lane.b32.xlu0 %v3957, 64
    %v4982 = vpop.permute.xlu0 %4981
    %4983 = vrot.lane.b32.xlu0 %v4093, 64
    %v4984 = vpop.permute.xlu0 %4983
    %4985 = vrot.lane.b32.xlu0 %v4229, 64
    %v4986 = vpop.permute.xlu0 %4985
    %4987 = vrot.lane.b32.xlu0 %v4365, 64
    %v4988 = vpop.permute.xlu0 %4987
    %4989 = vrot.lane.b32.xlu0 %v4501, 64
    %v4990 = vpop.permute.xlu0 %4989
    %4991 = vrot.lane.b32.xlu0 %v4637, 64
    %v4992 = vpop.permute.xlu0 %4991
    %5009 = vrot.lane.b32.xlu0 %v3695, 80
    %v5010 = vpop.permute.xlu0 %5009
    %5011 = vrot.lane.b32.xlu0 %v3831, 80
    %v5012 = vpop.permute.xlu0 %5011
    %5013 = vrot.lane.b32.xlu0 %v3967, 80
    %v5014 = vpop.permute.xlu0 %5013
    %5015 = vrot.lane.b32.xlu0 %v4103, 80
    %v5016 = vpop.permute.xlu0 %5015
    %5017 = vrot.lane.b32.xlu0 %v4239, 80
    %v5018 = vpop.permute.xlu0 %5017
    %5019 = vrot.lane.b32.xlu0 %v4375, 80
    %v5020 = vpop.permute.xlu0 %5019
    %5021 = vrot.lane.b32.xlu0 %v4511, 80
    %v5022 = vpop.permute.xlu0 %5021
    %5023 = vrot.lane.b32.xlu0 %v4647, 80
    %v5024 = vpop.permute.xlu0 %5023
    %5041 = vrot.lane.b32.xlu0 %v3692, 96
    %v5042 = vpop.permute.xlu0 %5041
    %5043 = vrot.lane.b32.xlu0 %v3828, 96
    %v5044 = vpop.permute.xlu0 %5043
    %5045 = vrot.lane.b32.xlu0 %v3964, 96
    %v5046 = vpop.permute.xlu0 %5045
    %5047 = vrot.lane.b32.xlu0 %v4100, 96
    %v5048 = vpop.permute.xlu0 %5047
    %5049 = vrot.lane.b32.xlu0 %v4236, 96
    %v5050 = vpop.permute.xlu0 %5049
    %5051 = vrot.lane.b32.xlu0 %v4372, 96
    %v5052 = vpop.permute.xlu0 %5051
    %5053 = vrot.lane.b32.xlu0 %v4508, 96
    %v5054 = vpop.permute.xlu0 %5053
    %5055 = vrot.lane.b32.xlu0 %v4644, 96
    %v5056 = vpop.permute.xlu0 %5055
    %5073 = vrot.lane.b32.xlu0 %v3696, 112
    %v5074 = vpop.permute.xlu0 %5073
    %5075 = vrot.lane.b32.xlu0 %v3832, 112
    %v5076 = vpop.permute.xlu0 %5075
    %5077 = vrot.lane.b32.xlu0 %v3968, 112
    %v5078 = vpop.permute.xlu0 %5077
    %5079 = vrot.lane.b32.xlu0 %v4104, 112
    %v5080 = vpop.permute.xlu0 %5079
    %5081 = vrot.lane.b32.xlu0 %v4240, 112
    %v5082 = vpop.permute.xlu0 %5081
    %5083 = vrot.lane.b32.xlu0 %v4376, 112
    %v5084 = vpop.permute.xlu0 %5083
    %5085 = vrot.lane.b32.xlu0 %v4512, 112
    %v5086 = vpop.permute.xlu0 %5085
    %5087 = vrot.lane.b32.xlu0 %v4648, 112
    %v5088 = vpop.permute.xlu0 %5087
    %vm5097 = vcmask 130048
    %v5098 = vsel %vm5097, %v3601, %v4658
    %v5099 = vsel %vm5097, %v3737, %v4660
    %v5100 = vsel %vm5097, %v3873, %v4662
    %v5101 = vsel %vm5097, %v4009, %v4664
    %v5102 = vsel %vm5097, %v4145, %v4666
    %v5103 = vsel %vm5097, %v4281, %v4668
    %v5104 = vsel %vm5097, %v4417, %v4670
    %v5105 = vsel %vm5097, %v4553, %v4672
    %vm5106 = vcmask 261120
    %v5107 = vsel %vm5106, %v5098, %v4690
    %v5108 = vsel %vm5106, %v5099, %v4692
    %v5109 = vsel %vm5106, %v5100, %v4694
    %v5110 = vsel %vm5106, %v5101, %v4696
    %v5111 = vsel %vm5106, %v5102, %v4698
    %v5112 = vsel %vm5106, %v5103, %v4700
    %v5113 = vsel %vm5106, %v5104, %v4702
    %v5114 = vsel %vm5106, %v5105, %v4704
    %vm5115 = vcmask 392192
    %v5116 = vsel %vm5115, %v5107, %v4722
    %v5117 = vsel %vm5115, %v5108, %v4724
    %v5118 = vsel %vm5115, %v5109, %v4726
    %v5119 = vsel %vm5115, %v5110, %v4728
    %v5120 = vsel %vm5115, %v5111, %v4730
    %v5121 = vsel %vm5115, %v5112, %v4732
    %v5122 = vsel %vm5115, %v5113, %v4734
    %v5123 = vsel %vm5115, %v5114, %v4736
    %vm5124 = vcmask 523264
    %v5125 = vsel %vm5124, %v5116, %v4754
    %v5126 = vsel %vm5124, %v5117, %v4756
    %v5127 = vsel %vm5124, %v5118, %v4758
    %v5128 = vsel %vm5124, %v5119, %v4760
    %v5129 = vsel %vm5124, %v5120, %v4762
    %v5130 = vsel %vm5124, %v5121, %v4764
    %v5131 = vsel %vm5124, %v5122, %v4766
    %v5132 = vsel %vm5124, %v5123, %v4768
    %vm5133 = vcmask 654336
    %v5134 = vsel %vm5133, %v5125, %v4786
    %v5135 = vsel %vm5133, %v5126, %v4788
    %v5136 = vsel %vm5133, %v5127, %v4790
    %v5137 = vsel %vm5133, %v5128, %v4792
    %v5138 = vsel %vm5133, %v5129, %v4794
    %v5139 = vsel %vm5133, %v5130, %v4796
    %v5140 = vsel %vm5133, %v5131, %v4798
    %v5141 = vsel %vm5133, %v5132, %v4800
    %vm5142 = vcmask 785408
    %v5143 = vsel %vm5142, %v5134, %v4818
    %v5144 = vsel %vm5142, %v5135, %v4820
    %v5145 = vsel %vm5142, %v5136, %v4822
    %v5146 = vsel %vm5142, %v5137, %v4824
    %v5147 = vsel %vm5142, %v5138, %v4826
    %v5148 = vsel %vm5142, %v5139, %v4828
    %v5149 = vsel %vm5142, %v5140, %v4830
    %v5150 = vsel %vm5142, %v5141, %v4832
    %vm5151 = vcmask 916480
    %v5152 = vsel %vm5151, %v5143, %v4850
    %v5153 = vsel %vm5151, %v5144, %v4852
    %v5154 = vsel %vm5151, %v5145, %v4854
    %v5155 = vsel %vm5151, %v5146, %v4856
    %v5156 = vsel %vm5151, %v5147, %v4858
    %v5157 = vsel %vm5151, %v5148, %v4860
    %v5158 = vsel %vm5151, %v5149, %v4862
    %v5159 = vsel %vm5151, %v5150, %v4864
    %v5160 = vsel %vm5097, %v3669, %v4882
    %v5161 = vsel %vm5097, %v3805, %v4884
    %v5162 = vsel %vm5097, %v3941, %v4886
    %v5163 = vsel %vm5097, %v4077, %v4888
    %v5164 = vsel %vm5097, %v4213, %v4890
    %v5165 = vsel %vm5097, %v4349, %v4892
    %v5166 = vsel %vm5097, %v4485, %v4894
    %v5167 = vsel %vm5097, %v4621, %v4896
    %v5168 = vsel %vm5106, %v5160, %v4914
    %v5169 = vsel %vm5106, %v5161, %v4916
    %v5170 = vsel %vm5106, %v5162, %v4918
    %v5171 = vsel %vm5106, %v5163, %v4920
    %v5172 = vsel %vm5106, %v5164, %v4922
    %v5173 = vsel %vm5106, %v5165, %v4924
    %v5174 = vsel %vm5106, %v5166, %v4926
    %v5175 = vsel %vm5106, %v5167, %v4928
    %v5176 = vsel %vm5115, %v5168, %v4946
    %v5177 = vsel %vm5115, %v5169, %v4948
    %v5178 = vsel %vm5115, %v5170, %v4950
    %v5179 = vsel %vm5115, %v5171, %v4952
    %v5180 = vsel %vm5115, %v5172, %v4954
    %v5181 = vsel %vm5115, %v5173, %v4956
    %v5182 = vsel %vm5115, %v5174, %v4958
    %v5183 = vsel %vm5115, %v5175, %v4960
    %v5184 = vsel %vm5124, %v5176, %v4978
    %v5185 = vsel %vm5124, %v5177, %v4980
    %v5186 = vsel %vm5124, %v5178, %v4982
    %v5187 = vsel %vm5124, %v5179, %v4984
    %v5188 = vsel %vm5124, %v5180, %v4986
    %v5189 = vsel %vm5124, %v5181, %v4988
    %v5190 = vsel %vm5124, %v5182, %v4990
    %v5191 = vsel %vm5124, %v5183, %v4992
    %v5192 = vsel %vm5133, %v5184, %v5010
    %v5193 = vsel %vm5133, %v5185, %v5012
    %v5194 = vsel %vm5133, %v5186, %v5014
    %v5195 = vsel %vm5133, %v5187, %v5016
    %v5196 = vsel %vm5133, %v5188, %v5018
    %v5197 = vsel %vm5133, %v5189, %v5020
    %v5198 = vsel %vm5133, %v5190, %v5022
    %v5199 = vsel %vm5133, %v5191, %v5024
    %v5200 = vsel %vm5142, %v5192, %v5042
    %v5201 = vsel %vm5142, %v5193, %v5044
    %v5202 = vsel %vm5142, %v5194, %v5046
    %v5203 = vsel %vm5142, %v5195, %v5048
    %v5204 = vsel %vm5142, %v5196, %v5050
    %v5205 = vsel %vm5142, %v5197, %v5052
    %v5206 = vsel %vm5142, %v5198, %v5054
    %v5207 = vsel %vm5142, %v5199, %v5056
    %v5208 = vsel %vm5151, %v5200, %v5074
    %v5209 = vsel %vm5151, %v5201, %v5076
    %v5210 = vsel %vm5151, %v5202, %v5078
    %v5211 = vsel %vm5151, %v5203, %v5080
    %v5212 = vsel %vm5151, %v5204, %v5082
    %v5213 = vsel %vm5151, %v5205, %v5084
    %v5214 = vsel %vm5151, %v5206, %v5086
    %v5215 = vsel %vm5151, %v5207, %v5088
    %v5216 = vmul.f32 %v5152, 0.75
    %v5217 = vmul.f32 %v5208, 0.75
    %v5218 = vmul.f32 %v5153, 0.75
    %v5219 = vmul.f32 %v5209, 0.75
    %v5220 = vmul.f32 %v5154, 0.75
    %v5221 = vmul.f32 %v5210, 0.75
    %v5222 = vmul.f32 %v5155, 0.75
    %v5223 = vmul.f32 %v5211, 0.75
    %v5224 = vmul.f32 %v5156, 0.75
    %v5225 = vmul.f32 %v5212, 0.75
    %v5226 = vmul.f32 %v5157, 0.75
    %v5227 = vmul.f32 %v5213, 0.75
    %v5228 = vmul.f32 %v5158, 0.75
    %v5229 = vmul.f32 %v5214, 0.75
    %v5230 = vmul.f32 %v5159, 0.75
    %v5231 = vmul.f32 %v5215, 0.75
    %v5232 = vmul.f32 %v5152, 0.25
    %v5233 = vmul.f32 %v5208, 0.25
    %v5234 = vmul.f32 %v5153, 0.25
    %v5235 = vmul.f32 %v5209, 0.25
    %v5236 = vmul.f32 %v5154, 0.25
    %v5237 = vmul.f32 %v5210, 0.25
    %v5238 = vmul.f32 %v5155, 0.25
    %v5239 = vmul.f32 %v5211, 0.25
    %v5240 = vmul.f32 %v5156, 0.25
    %v5241 = vmul.f32 %v5212, 0.25
    %v5242 = vmul.f32 %v5157, 0.25
    %v5243 = vmul.f32 %v5213, 0.25
    %v5244 = vmul.f32 %v5158, 0.25
    %v5245 = vmul.f32 %v5214, 0.25
    %v5246 = vmul.f32 %v5159, 0.25
    %v5247 = vmul.f32 %v5215, 0.25
    %v5264 = vrot.slane %v5232, 7
    %v5265 = vrot.slane %v5233, 7
    %v5266 = vrot.slane %v5234, 7
    %v5267 = vrot.slane %v5235, 7
    %v5268 = vrot.slane %v5236, 7
    %v5269 = vrot.slane %v5237, 7
    %v5270 = vrot.slane %v5238, 7
    %v5271 = vrot.slane %v5239, 7
    %v5272 = vrot.slane %v5240, 7
    %v5273 = vrot.slane %v5241, 7
    %v5274 = vrot.slane %v5242, 7
    %v5275 = vrot.slane %v5243, 7
    %v5276 = vrot.slane %v5244, 7
    %v5277 = vrot.slane %v5245, 7
    %v5278 = vrot.slane %v5246, 7
    %v5279 = vrot.slane %v5247, 7
    %v5296 = vadd.f32 %v5216, %v5264
    %v5297 = vadd.f32 %v5217, %v5265
    %v5298 = vadd.f32 %v5218, %v5266
    %v5299 = vadd.f32 %v5219, %v5267
    %v5300 = vadd.f32 %v5220, %v5268
    %v5301 = vadd.f32 %v5221, %v5269
    %v5302 = vadd.f32 %v5222, %v5270
    %v5303 = vadd.f32 %v5223, %v5271
    %v5304 = vadd.f32 %v5224, %v5272
    %v5305 = vadd.f32 %v5225, %v5273
    %v5306 = vadd.f32 %v5226, %v5274
    %v5307 = vadd.f32 %v5227, %v5275
    %v5308 = vadd.f32 %v5228, %v5276
    %v5309 = vadd.f32 %v5229, %v5277
    %v5310 = vadd.f32 %v5230, %v5278
    %v5311 = vadd.f32 %v5231, %v5279
    %vm5312 = vcmask 1040384
    %v5313 = vsel %vm5312, %v5152, %v5296
    %v5314 = vsel %vm5312, %v5208, %v5297
    %v5315 = vsel %vm5312, %v5153, %v5298
    %v5316 = vsel %vm5312, %v5209, %v5299
    %v5317 = vsel %vm5312, %v5154, %v5300
    %v5318 = vsel %vm5312, %v5210, %v5301
    %v5319 = vsel %vm5312, %v5155, %v5302
    %v5320 = vsel %vm5312, %v5211, %v5303
    %v5321 = vsel %vm5312, %v5156, %v5304
    %v5322 = vsel %vm5312, %v5212, %v5305
    %v5323 = vsel %vm5312, %v5157, %v5306
    %v5324 = vsel %vm5312, %v5213, %v5307
    %v5325 = vsel %vm5312, %v5158, %v5308
    %v5326 = vsel %vm5312, %v5214, %v5309
    %v5327 = vsel %vm5312, %v5159, %v5310
    %v5328 = vsel %vm5312, %v5215, %v5311
    %v5329 = vrot.slane %v5232, 1
    %v5330 = vrot.slane %v5233, 1
    %v5331 = vrot.slane %v5234, 1
    %v5332 = vrot.slane %v5235, 1
    %v5333 = vrot.slane %v5236, 1
    %v5334 = vrot.slane %v5237, 1
    %v5335 = vrot.slane %v5238, 1
    %v5336 = vrot.slane %v5239, 1
    %v5337 = vrot.slane %v5240, 1
    %v5338 = vrot.slane %v5241, 1
    %v5339 = vrot.slane %v5242, 1
    %v5340 = vrot.slane %v5243, 1
    %v5341 = vrot.slane %v5244, 1
    %v5342 = vrot.slane %v5245, 1
    %v5343 = vrot.slane %v5246, 1
    %v5344 = vrot.slane %v5247, 1
    %v5361 = vadd.f32 %v5216, %v5329
    %v5362 = vadd.f32 %v5217, %v5330
    %v5363 = vadd.f32 %v5218, %v5331
    %v5364 = vadd.f32 %v5219, %v5332
    %v5365 = vadd.f32 %v5220, %v5333
    %v5366 = vadd.f32 %v5221, %v5334
    %v5367 = vadd.f32 %v5222, %v5335
    %v5368 = vadd.f32 %v5223, %v5336
    %v5369 = vadd.f32 %v5224, %v5337
    %v5370 = vadd.f32 %v5225, %v5338
    %v5371 = vadd.f32 %v5226, %v5339
    %v5372 = vadd.f32 %v5227, %v5340
    %v5373 = vadd.f32 %v5228, %v5341
    %v5374 = vadd.f32 %v5229, %v5342
    %v5375 = vadd.f32 %v5230, %v5343
    %v5376 = vadd.f32 %v5231, %v5344
    %vm5377 = vcmask 1042432
    %v5378 = vsel %vm5377, %v5361, %v5152
    %v5379 = vsel %vm5377, %v5362, %v5208
    %v5380 = vsel %vm5377, %v5363, %v5153
    %v5381 = vsel %vm5377, %v5364, %v5209
    %v5382 = vsel %vm5377, %v5365, %v5154
    %v5383 = vsel %vm5377, %v5366, %v5210
    %v5384 = vsel %vm5377, %v5367, %v5155
    %v5385 = vsel %vm5377, %v5368, %v5211
    %v5386 = vsel %vm5377, %v5369, %v5156
    %v5387 = vsel %vm5377, %v5370, %v5212
    %v5388 = vsel %vm5377, %v5371, %v5157
    %v5389 = vsel %vm5377, %v5372, %v5213
    %v5390 = vsel %vm5377, %v5373, %v5158
    %v5391 = vsel %vm5377, %v5374, %v5214
    %v5392 = vsel %vm5377, %v5375, %v5159
    %v5393 = vsel %vm5377, %v5376, %v5215
    %v5410 = vcombine.low %v5313, %v5314
    %v5411 = vcombine.low %v5315, %v5316
    %v5412 = vcombine.low %v5317, %v5318
    %v5413 = vcombine.low %v5319, %v5320
    %v5414 = vcombine.low %v5321, %v5322
    %v5415 = vcombine.low %v5323, %v5324
    %v5416 = vcombine.low %v5325, %v5326
    %v5417 = vcombine.low %v5327, %v5328
    %5426 = vst [vmem:[#allocation8] sm:$0xff] %v5410
    %5427 = vst [vmem:[#allocation8 + $0x10] sm:$0xff] %v5411
    %5428 = vst [vmem:[#allocation8 + $0x20] sm:$0xff] %v5412
    %5429 = vst [vmem:[#allocation8 + $0x30] sm:$0xff] %v5413
    %5430 = vst [vmem:[#allocation8 + $0x40] sm:$0xff] %v5414
    %5431 = vst [vmem:[#allocation8 + $0x50] sm:$0xff] %v5415
    %5432 = vst [vmem:[#allocation8 + $0x60] sm:$0xff] %v5416
    %5433 = vst [vmem:[#allocation8 + $0x70] sm:$0xff] %v5417
    %v5450 = vcombine.low %v5378, %v5379
    %v5451 = vcombine.low %v5380, %v5381
    %v5452 = vcombine.low %v5382, %v5383
    %v5453 = vcombine.low %v5384, %v5385
    %v5454 = vcombine.low %v5386, %v5387
    %v5455 = vcombine.low %v5388, %v5389
    %v5456 = vcombine.low %v5390, %v5391
    %v5457 = vcombine.low %v5392, %v5393
    %5466 = vst [vmem:[#allocation8 + $0x8] sm:$0xff] %v5450
    %5467 = vst [vmem:[#allocation8 + $0x18] sm:$0xff] %v5451
    %5468 = vst [vmem:[#allocation8 + $0x28] sm:$0xff] %v5452
    %5469 = vst [vmem:[#allocation8 + $0x38] sm:$0xff] %v5453
    %5470 = vst [vmem:[#allocation8 + $0x48] sm:$0xff] %v5454
    %5471 = vst [vmem:[#allocation8 + $0x58] sm:$0xff] %v5455
    %5472 = vst [vmem:[#allocation8 + $0x68] sm:$0xff] %v5456
    %5473 = vst [vmem:[#allocation8 + $0x78] sm:$0xff] %v5457
    // Predicated region
    $region26: #{tpu_custom_call.1} parent=1 // pred_check
      _
    $region27: #{tpu_custom_call.1} parent=1 // pred_check_branch
      %5475 = sbr.rel (0) target = $region29
    $region28: #{tpu_custom_call.1} parent=1 // pred_region
      %s5477 = ssub.s32 2048, 2048
      %5478 = vsyncadd [#allocation4], %s5477
      %s5479 = sshll.u32 [#allocation8], 4
      %s5480 = int_to_ptr.vmem [resolvable:$true] %s5479
      %5485 = dma.vmem_to_hbm [thread:$0]  %s5480, 2048, %s3, [#allocation4], 256, 256, 16
    $region29: #{tpu_custom_call.1} parent=1 // pred_fallthru
      _
    // Predicated region
    $region30: #{tpu_custom_call.1} parent=1 // pred_check
      _
    $region31: #{tpu_custom_call.1} parent=1 // pred_check_branch
      %5487 = sbr.rel (0) target = $region33
    $region32: #{tpu_custom_call.1} parent=1 // pred_region
      %5488 = dma.done [#allocation4], 2048
    $region33: #{tpu_custom_call.1} parent=1 // pred_fallthru
      _
    %5489 = vsyncpa [#allocation3], 1
    %5490 = vsyncpa [#allocation6], 1
    %5491 = vsyncpa [#allocation4], 1

</llo_original>
